<compile_context>
chip_gen: v6e
topology: v6e:2x2x1
jax: 0.10.0
libtpu: 0.0.40
codegen_flags: <defaults>
</compile_context>

<pallas_src>
import math
from functools import partial

import jax
import jax.numpy as jnp
from jax import lax
from jax.experimental import pallas as pl
from jax.experimental.pallas import tpu as pltpu

EPS = 1e-6
NEG_INF = -1e9


def _encoder_layer_kernel(H, compute_dtype,
                          lens_ref,                     # scalar prefetch: (B,) int32 in SMEM
                          x_ref,                        # (Bblk, S, D)   (read at l==0 only)
                          ln1a_ref, ln1b_ref,           # (1, 1, D)
                          wqkv_ref, bqkv_ref,           # (1, D, 3D), (1, 1, 3D)
                          wo_ref, bo_ref,               # (1, D, D),  (1, 1, D)
                          ln2a_ref, ln2b_ref,           # (1, 1, D)
                          w1_ref, b1_ref,               # (1, D, DFF), (1, 1, DFF)
                          w2_ref, b2_ref,               # (1, DFF, D), (1, 1, D)
                          lnfa_ref, lnfb_ref,           # (1, D)
                          out_ref,                      # (Bblk, S, D)
                          xres_ref):                    # VMEM scratch (Bblk*S, D) f32
    """One grid step == one encoder layer applied to one block of Bblk sequences."""
    Bblk, S, D = x_ref.shape
    DK = D // H
    M = Bblk * S
    scale = 1.0 / math.sqrt(DK)

    b = pl.program_id(0)
    l = pl.program_id(1)

    # ---- residual stream lives in VMEM scratch across the layer grid axis ----
    @pl.when(l == 0)
    def _():
        xres_ref[...] = x_ref[...].reshape(M, D).astype(jnp.float32)

    def layer_norm(v, a, b_):
        # torch.Tensor.std() is unbiased (divide by D-1); eps is OUTSIDE the sqrt.
        mean = jnp.mean(v, axis=-1, keepdims=True)
        c = v - mean
        var = jnp.sum(c * c, axis=-1, keepdims=True) * (1.0 / (D - 1))
        inv = pl.reciprocal(jnp.sqrt(var) + EPS, approx=True)   # EUP, not VALU
        return a * (c * inv) + b_

    x = xres_ref[...]                                           # (M, D) f32

    # ---- additive key-padding bias, built from SMEM lengths (no mask DMA) ----
    col = lax.broadcasted_iota(jnp.int32, (1, 1, S), 2)
    rows = [jnp.where(col < lens_ref[b * Bblk + j], 0.0, NEG_INF) for j in range(Bblk)]
    bias = jnp.concatenate(rows * H, axis=0).astype(jnp.float32)   # (H*Bblk, 1, S), idx=h*Bblk+j

    # ---------------- sublayer 0: x + SelfAttn(LN(x)) ----------------
    n1 = layer_norm(x, ln1a_ref[0], ln1b_ref[0]).astype(compute_dtype)
    # One fused QKV matmul on the (Bblk*S, D) slab, f32 accumulation.
    qkv = jnp.dot(n1, wqkv_ref[0], preferred_element_type=jnp.float32) + bqkv_ref[0]
    qkv3 = qkv.reshape(Bblk, S, 3 * D)

    def split_heads(off):
        # (H*Bblk, S, DK); h-major / sequence-minor batch ordering (matches `bias`).
        return jnp.concatenate(
            [qkv3[:, :, off + h * DK: off + (h + 1) * DK] for h in range(H)],
            axis=0).astype(compute_dtype)

    qh, kh, vh = split_heads(0), split_heads(D), split_heads(2 * D)

    # Head-and-sequence-batched score / context matmuls (single dot_general each).
    scores = jnp.einsum('bqd,bkd->bqk', qh, kh,
                        preferred_element_type=jnp.float32) * scale      # (H*Bblk, S, S)
    scores = scores + bias
    scores = scores - jnp.max(scores, axis=-1, keepdims=True)
    p = jnp.exp(scores)
    p = p * pl.reciprocal(jnp.sum(p, axis=-1, keepdims=True), approx=True)
    ctx = jnp.einsum('bqk,bkd->bqd', p.astype(compute_dtype), vh,
                     preferred_element_type=jnp.float32)                 # (H*Bblk, S, DK)

    # Head merge (data movement only) + single output projection matmul.
    cat = jnp.concatenate([ctx[h * Bblk:(h + 1) * Bblk] for h in range(H)],
                          axis=-1).reshape(M, D).astype(compute_dtype)
    attn = jnp.dot(cat, wo_ref[0], preferred_element_type=jnp.float32) + bo_ref[0]
    x = x + attn

    # ---------------- sublayer 1: x + FFN(LN(x)) ----------------
    n2 = layer_norm(x, ln2a_ref[0], ln2b_ref[0]).astype(compute_dtype)
    h1 = jnp.maximum(
        jnp.dot(n2, w1_ref[0], preferred_element_type=jnp.float32) + b1_ref[0], 0.0)
    ff = jnp.dot(h1.astype(compute_dtype), w2_ref[0],
                 preferred_element_type=jnp.float32) + b2_ref[0]
    x = x + ff

    xres_ref[...] = x

    # ---- final Encoder LayerNorm + store, only after the last layer ----
    @pl.when(l == pl.num_programs(1) - 1)
    def _():
        y = layer_norm(x, lnfa_ref[...], lnfb_ref[...])
        out_ref[...] = y.reshape(Bblk, S, D).astype(out_ref.dtype)


def _default_vmem_limit():
    # Tighter budget on v7x (64 MiB physical VMEM), looser on v5e/v6e (128 MiB).
    try:
        cap = pltpu.get_tpu_info().vmem_capacity_bytes
    except Exception:
        cap = 128 * 1024 * 1024
    return min(100 * 1024 * 1024, int(cap) * 3 // 4)


def encoder_forward(x, src_lens, params, H, *, block_b=None,
                    compute_dtype=jnp.float32, vmem_limit_bytes=None):
    """x: (B, S, D) f32, src_lens: (B,) int32 valid key lengths (prefix mask),
    params: per-layer weights stacked on a leading N axis (see kernel signature)."""
    B, S, D = x.shape
    (ln1a, ln1b, wqkv, bqkv, wo, bo, ln2a, ln2b, w1, b1, w2, b2, lnfa, lnfb) = params
    N = wqkv.shape[0]

    if block_b is None:
        divisors = [d for d in range(1, B + 1) if B % d == 0]
        # Prefer the largest block <= 8 that still leaves >= 2 blocks for megacore.
        cand = ([d for d in divisors if d <= 8 and B // d >= 2]
                or [d for d in divisors if d <= 8])
        block_b = max(cand)
    assert B % block_b == 0, "batch must be divisible by block_b"

    cd = compute_dtype
    # Only MXU operands are cast; biases / LN params stay f32 (stats & accum in f32).
    tensors = (ln1a, ln1b, wqkv.astype(cd), bqkv, wo.astype(cd), bo,
               ln2a, ln2b, w1.astype(cd), b1, w2.astype(cd), b2, lnfa, lnfb)

    def layer_spec(p):   # one layer slice per grid step along the "arbitrary" l axis
        return pl.BlockSpec((1,) + p.shape[1:],
                            lambda bb, ll, lens, _n=p.ndim: (ll,) + (0,) * (_n - 1))

    lnf_spec = pl.BlockSpec(lnfa.shape, lambda bb, ll, lens: (0, 0))

    in_specs = ([pl.BlockSpec((block_b, S, D), lambda bb, ll, lens: (bb, 0, 0))]
                + [layer_spec(p) for p in tensors[:-2]]
                + [lnf_spec, lnf_spec])

    if vmem_limit_bytes is None:
        vmem_limit_bytes = _default_vmem_limit()

    return pl.pallas_call(
        partial(_encoder_layer_kernel, H, cd),
        out_shape=jax.ShapeDtypeStruct((B, S, D), x.dtype),
        grid_spec=pltpu.PrefetchScalarGridSpec(
            num_scalar_prefetch=1,             # src_lens -> SMEM, no dense mask DMA
            grid=(B // block_b, N),            # batch blocks (parallel) x layers (arbitrary)
            in_specs=in_specs,
            out_specs=pl.BlockSpec((block_b, S, D), lambda bb, ll, lens: (bb, 0, 0)),
            scratch_shapes=[pltpu.VMEM((block_b * S, D), jnp.float32)],
        ),
        compiler_params=pltpu.CompilerParams(
            dimension_semantics=("parallel", "arbitrary"),
            vmem_limit_bytes=vmem_limit_bytes,
        ),
    )(src_lens, x, *tensors)


# ---------------- pure-JAX reference (mirrors the PyTorch module exactly) ----------------
def ref_forward(x, mask, raw, H):
    D = x.shape[-1]
    N = raw['wq'].shape[0]

    def ln(v, a, b):
        mean = v.mean(-1, keepdims=True)
        c = v - mean
        std = jnp.sqrt((c * c).sum(-1, keepdims=True) / (D - 1))
        return a * c / (std + EPS) + b

    def mha(xq, wq, bq, wk, bk, wv, bv, wo, bo):
        B, T, _ = xq.shape
        DK = D // H
        q = (xq @ wq + bq).reshape(B, T, H, DK).transpose(0, 2, 1, 3)
        k = (xq @ wk + bk).reshape(B, T, H, DK).transpose(0, 2, 1, 3)
        v = (xq @ wv + bv).reshape(B, T, H, DK).transpose(0, 2, 1, 3)
        s = jnp.einsum('bhtd,bhsd->bhts', q, k) / math.sqrt(DK)
        s = jnp.where(mask[:, None] == 0.0, NEG_INF, s)
        p = jax.nn.softmax(s, axis=-1)
        o = jnp.einsum('bhts,bhsd->bhtd', p, v).transpose(0, 2, 1, 3).reshape(B, T, D)
        return o @ wo + bo

    for l in range(N):
        n1 = ln(x, raw['ln1a'][l], raw['ln1b'][l])
        x = x + mha(n1, raw['wq'][l], raw['bq'][l], raw['wk'][l], raw['bk'][l],
                    raw['wv'][l], raw['bv'][l], raw['wo'][l], raw['bo'][l])
        n2 = ln(x, raw['ln2a'][l], raw['ln2b'][l])
        x = x + (jnp.maximum(n2 @ raw['w1'][l] + raw['b1'][l], 0.0) @ raw['w2'][l]
                 + raw['b2'][l])
    return ln(x, raw['lnfa'], raw['lnfb'])


if __name__ == "__main__":
    B, S, D, H, DFF, N = 4, 16, 32, 4, 64, 2

    key = jax.random.PRNGKey(0)
    ks = jax.random.split(key, 20)

    x = jax.random.normal(ks[0], (B, S, D), jnp.float32)
    src_lens = jnp.array([S, S - 5, S, 7], jnp.int32)                # prefix padding mask
    mask = (jnp.arange(S)[None, None, :] < src_lens[:, None, None]).astype(jnp.float32)

    def w(k, shape, scale=0.08):
        return scale * jax.random.normal(k, shape, jnp.float32)

    raw = dict(
        ln1a=1.0 + 0.1 * jax.random.normal(ks[1], (N, D), jnp.float32),
        ln1b=0.05 * jax.random.normal(ks[2], (N, D), jnp.float32),
        ln2a=1.0 + 0.1 * jax.random.normal(ks[3], (N, D), jnp.float32),
        ln2b=0.05 * jax.random.normal(ks[4], (N, D), jnp.float32),
        lnfa=1.0 + 0.1 * jax.random.normal(ks[5], (D,), jnp.float32),
        lnfb=0.05 * jax.random.normal(ks[6], (D,), jnp.float32),
        wq=w(ks[7], (N, D, D)),  bq=w(ks[8], (N, D), 0.02),
        wk=w(ks[9], (N, D, D)),  bk=w(ks[10], (N, D), 0.02),
        wv=w(ks[11], (N, D, D)), bv=w(ks[12], (N, D), 0.02),
        wo=w(ks[13], (N, D, D)), bo=w(ks[14], (N, D), 0.02),
        w1=w(ks[15], (N, D, DFF)), b1=w(ks[16], (N, DFF), 0.02),
        w2=w(ks[17], (N, DFF, D)), b2=w(ks[18], (N, D), 0.02),
    )

    # Kernel params: stacked per-layer, with QKV fused host-side (zero kernel cost).
    params = (
        raw['ln1a'][:, None, :], raw['ln1b'][:, None, :],
        jnp.concatenate([raw['wq'], raw['wk'], raw['wv']], axis=2),              # (N, D, 3D)
        jnp.concatenate([raw['bq'], raw['bk'], raw['bv']], axis=1)[:, None, :],  # (N, 1, 3D)
        raw['wo'], raw['bo'][:, None, :],
        raw['ln2a'][:, None, :], raw['ln2b'][:, None, :],
        raw['w1'], raw['b1'][:, None, :],
        raw['w2'], raw['b2'][:, None, :],
        raw['lnfa'][None, :], raw['lnfb'][None, :],
    )

    ref = ref_forward(x, mask, raw, H)

    # f32 matmul path (grid = (B/Bblk, N) = (2, 2): both batch blocks + layer streaming).
    out = jax.block_until_ready(encoder_forward(x, src_lens, params, H, block_b=2))
    assert out.shape == (B, S, D)
    err = float(jnp.max(jnp.abs(out - ref)))
    assert jnp.allclose(out, ref, atol=1e-2, rtol=1e-2), err

    # bf16 MXU-operand path (full-rate on v5e/v6e/v7x); stats/accumulation stay f32.
    out_bf16 = jax.block_until_ready(
        encoder_forward(x, src_lens, params, H, block_b=2, compute_dtype=jnp.bfloat16))
    err_bf16 = float(jnp.max(jnp.abs(out_bf16 - ref)))
    assert jnp.allclose(out_bf16, ref, atol=1e-1, rtol=1e-1), err_bf16

    print("KERNEL_OK")
</pallas_src>

<mosaic_0001>
module attributes {stable_mosaic.version = 11 : i64} {
  func.func @_encoder_layer_kernel(%arg0: i32, %arg1: i32, %arg2: memref<4xi32, #tpu.memory_space<smem>>, %arg3: memref<2x16x32xf32, #tpu.memory_space<vmem>>, %arg4: memref<1x1x32xf32, #tpu.memory_space<vmem>>, %arg5: memref<1x1x32xf32, #tpu.memory_space<vmem>>, %arg6: memref<1x32x96xf32, #tpu.memory_space<vmem>>, %arg7: memref<1x1x96xf32, #tpu.memory_space<vmem>>, %arg8: memref<1x32x32xf32, #tpu.memory_space<vmem>>, %arg9: memref<1x1x32xf32, #tpu.memory_space<vmem>>, %arg10: memref<1x1x32xf32, #tpu.memory_space<vmem>>, %arg11: memref<1x1x32xf32, #tpu.memory_space<vmem>>, %arg12: memref<1x32x64xf32, #tpu.memory_space<vmem>>, %arg13: memref<1x1x64xf32, #tpu.memory_space<vmem>>, %arg14: memref<1x64x32xf32, #tpu.memory_space<vmem>>, %arg15: memref<1x1x32xf32, #tpu.memory_space<vmem>>, %arg16: memref<1x32xf32, #tpu.memory_space<vmem>>, %arg17: memref<1x32xf32, #tpu.memory_space<vmem>>, %arg18: memref<2x16x32xf32, #tpu.memory_space<vmem>>, %arg19: memref<32x32xf32, #tpu.memory_space<vmem>>) attributes {dimension_semantics = [#tpu.dimension_semantics<parallel>, #tpu.dimension_semantics<arbitrary>], iteration_bounds = array<i64: 2, 2>, scalar_prefetch = 1 : i64, scratch_operands = 1 : i64, tpu.core_type = #tpu.core_type<tc>, window_params = [{transform_indices = @transform_0, window_bounds = array<i64: 2, 16, 32>}, {transform_indices = @transform_1, window_bounds = array<i64: 1, 1, 32>}, {transform_indices = @transform_2, window_bounds = array<i64: 1, 1, 32>}, {transform_indices = @transform_3, window_bounds = array<i64: 1, 32, 96>}, {transform_indices = @transform_4, window_bounds = array<i64: 1, 1, 96>}, {transform_indices = @transform_5, window_bounds = array<i64: 1, 32, 32>}, {transform_indices = @transform_6, window_bounds = array<i64: 1, 1, 32>}, {transform_indices = @transform_7, window_bounds = array<i64: 1, 1, 32>}, {transform_indices = @transform_8, window_bounds = array<i64: 1, 1, 32>}, {transform_indices = @transform_9, window_bounds = array<i64: 1, 32, 64>}, {transform_indices = @transform_10, window_bounds = array<i64: 1, 1, 64>}, {transform_indices = @transform_11, window_bounds = array<i64: 1, 64, 32>}, {transform_indices = @transform_12, window_bounds = array<i64: 1, 1, 32>}, {pipeline_mode = #tpu.pipeline_mode<synchronous>, transform_indices = @transform_13, window_bounds = array<i64: 1, 32>}, {pipeline_mode = #tpu.pipeline_mode<synchronous>, transform_indices = @transform_14, window_bounds = array<i64: 1, 32>}, {transform_indices = @transform_15, window_bounds = array<i64: 2, 16, 32>}]} {
    %c0_i32 = arith.constant 0 : i32
    %0 = arith.cmpi eq, %arg1, %c0_i32 : i32
    %1 = arith.extui %0 : i1 to i32
    %c0_i32_0 = arith.constant 0 : i32
    %2 = arith.cmpi ne, %1, %c0_i32_0 : i32
    scf.if %2 {
      %c0_67 = arith.constant 0 : index
      %c0_68 = arith.constant 0 : index
      %c0_69 = arith.constant 0 : index
      %148 = vector.load %arg3[%c0_67, %c0_68, %c0_69] : memref<2x16x32xf32, #tpu.memory_space<vmem>>, vector<2x16x32xf32>
      %149 = vector.shape_cast %148 : vector<2x16x32xf32> to vector<32x32xf32>
      %c0_70 = arith.constant 0 : index
      %c0_71 = arith.constant 0 : index
      %150 = vector.load %arg19[%c0_70, %c0_71] : memref<32x32xf32, #tpu.memory_space<vmem>>, vector<32x32xf32>
      tpu.vector_store %arg19[%c0_70, %c0_71], %149 {strides = array<i32>} : memref<32x32xf32, #tpu.memory_space<vmem>>, vector<32x32xf32>,
    } else {
    }
    %c0 = arith.constant 0 : index
    %c0_1 = arith.constant 0 : index
    %3 = vector.load %arg19[%c0, %c0_1] : memref<32x32xf32, #tpu.memory_space<vmem>>, vector<32x32xf32>
    %4 = tpu.iota {dimensions = array<i32: 2>} : vector<1x1x16xi32>
    %c2_i32 = arith.constant 2 : i32
    %5 = arith.muli %arg0, %c2_i32 : i32
    %c0_i32_2 = arith.constant 0 : i32
    %6 = arith.addi %5, %c0_i32_2 : i32
    %7 = arith.index_cast %6 : i32 to index
    %8 = memref.load %arg2[%7] : memref<4xi32, #tpu.memory_space<smem>>
    %9 = vector.broadcast %8 : i32 to vector<1x1x16xi32>
    %10 = arith.cmpi slt, %4, %9 : vector<1x1x16xi32>
    %cst = arith.constant 0.000000e+00 : f32
    %cst_3 = arith.constant -1.000000e+09 : f32
    %11 = vector.broadcast %cst : f32 to vector<1x1x16xf32>
    %12 = vector.broadcast %cst_3 : f32 to vector<1x1x16xf32>
    %13 = arith.select %10, %11, %12 : vector<1x1x16xi1>, vector<1x1x16xf32>
    %c2_i32_4 = arith.constant 2 : i32
    %14 = arith.muli %arg0, %c2_i32_4 : i32
    %c1_i32 = arith.constant 1 : i32
    %15 = arith.addi %14, %c1_i32 : i32
    %16 = arith.index_cast %15 : i32 to index
    %17 = memref.load %arg2[%16] : memref<4xi32, #tpu.memory_space<smem>>
    %18 = vector.broadcast %17 : i32 to vector<1x1x16xi32>
    %19 = arith.cmpi slt, %4, %18 : vector<1x1x16xi32>
    %cst_5 = arith.constant 0.000000e+00 : f32
    %cst_6 = arith.constant -1.000000e+09 : f32
    %20 = vector.broadcast %cst_5 : f32 to vector<1x1x16xf32>
    %21 = vector.broadcast %cst_6 : f32 to vector<1x1x16xf32>
    %22 = arith.select %19, %20, %21 : vector<1x1x16xi1>, vector<1x1x16xf32>
    %23 = tpu.concatenate %13, %22, %13, %22, %13, %22, %13, %22 in 0 : vector<1x1x16xf32>, vector<1x1x16xf32>, vector<1x1x16xf32>, vector<1x1x16xf32>, vector<1x1x16xf32>, vector<1x1x16xf32>, vector<1x1x16xf32>, vector<1x1x16xf32> -> vector<8x1x16xf32>
    %c0_7 = arith.constant 0 : index
    %c0_8 = arith.constant 0 : index
    %c0_9 = arith.constant 0 : index
    %24 = vector.load %arg4[%c0_7, %c0_8, %c0_9] : memref<1x1x32xf32, #tpu.memory_space<vmem>>, vector<1x1x32xf32>
    %25 = vector.shape_cast %24 : vector<1x1x32xf32> to vector<1x32xf32>
    %c0_10 = arith.constant 0 : index
    %c0_11 = arith.constant 0 : index
    %c0_12 = arith.constant 0 : index
    %26 = vector.load %arg5[%c0_10, %c0_11, %c0_12] : memref<1x1x32xf32, #tpu.memory_space<vmem>>, vector<1x1x32xf32>
    %27 = vector.shape_cast %26 : vector<1x1x32xf32> to vector<1x32xf32>
    %cst_13 = arith.constant dense<0.000000e+00> : vector<32xf32>
    %28 = vector.multi_reduction <add>, %3, %cst_13 [1] : vector<32x32xf32> to vector<32xf32>
    %29 = vector.shape_cast %28 : vector<32xf32> to vector<32x1xf32>
    %cst_14 = arith.constant 3.200000e+01 : f32
    %30 = vector.broadcast %cst_14 : f32 to vector<32x1xf32>
    %31 = arith.divf %29, %30 : vector<32x1xf32>
    %32 = vector.broadcast %31 : vector<32x1xf32> to vector<32x32xf32>
    %33 = arith.subf %3, %32 : vector<32x32xf32>
    %34 = arith.mulf %33, %33 : vector<32x32xf32>
    %cst_15 = arith.constant dense<0.000000e+00> : vector<32xf32>
    %35 = vector.multi_reduction <add>, %34, %cst_15 [1] : vector<32x32xf32> to vector<32xf32>
    %36 = vector.shape_cast %35 : vector<32xf32> to vector<32x1xf32>
    %cst_16 = arith.constant 0.0322580636 : f32
    %37 = vector.broadcast %cst_16 : f32 to vector<32x1xf32>
    %38 = arith.mulf %36, %37 : vector<32x1xf32>
    %39 = math.sqrt %38 : vector<32x1xf32>
    %cst_17 = arith.constant 9.99999997E-7 : f32
    %40 = vector.broadcast %cst_17 : f32 to vector<32x1xf32>
    %41 = arith.addf %39, %40 : vector<32x1xf32>
    %42 = tpu.reciprocal %41 {approx = true} : vector<32x1xf32> -> vector<32x1xf32>
    %43 = vector.broadcast %42 : vector<32x1xf32> to vector<32x32xf32>
    %44 = arith.mulf %33, %43 : vector<32x32xf32>
    %45 = vector.broadcast %25 : vector<1x32xf32> to vector<32x32xf32>
    %46 = arith.mulf %45, %44 : vector<32x32xf32>
    %47 = vector.broadcast %27 : vector<1x32xf32> to vector<32x32xf32>
    %48 = arith.addf %46, %47 : vector<32x32xf32>
    %c0_18 = arith.constant 0 : index
    %c0_19 = arith.constant 0 : index
    %c0_20 = arith.constant 0 : index
    %49 = vector.load %arg6[%c0_18, %c0_19, %c0_20] : memref<1x32x96xf32, #tpu.memory_space<vmem>>, vector<1x32x96xf32>
    %50 = vector.shape_cast %49 : vector<1x32x96xf32> to vector<32x96xf32>
    %cst_21 = arith.constant dense<0.000000e+00> : vector<32x96xf32>
    %51 = tpu.matmul %48, %50, %cst_21 {dimension_numbers = #tpu.dot_dimension_numbers<[1], [0], [0], [1], [0, 0, 1, 1], [], []>} : vector<32x32xf32>, vector<32x96xf32>, vector<32x96xf32> -> vector<32x96xf32>
    %c0_22 = arith.constant 0 : index
    %c0_23 = arith.constant 0 : index
    %c0_24 = arith.constant 0 : index
    %52 = vector.load %arg7[%c0_22, %c0_23, %c0_24] : memref<1x1x96xf32, #tpu.memory_space<vmem>>, vector<1x1x96xf32>
    %53 = vector.shape_cast %52 : vector<1x1x96xf32> to vector<1x96xf32>
    %54 = vector.broadcast %53 : vector<1x96xf32> to vector<32x96xf32>
    %55 = arith.addf %51, %54 : vector<32x96xf32>
    %56 = vector.shape_cast %55 : vector<32x96xf32> to vector<2x16x96xf32>
    %57 = vector.extract_strided_slice %56 {offsets = [0, 0, 0], sizes = [2, 16, 8], strides = [1, 1, 1]} : vector<2x16x96xf32> to vector<2x16x8xf32>
    %58 = vector.extract_strided_slice %56 {offsets = [0, 0, 8], sizes = [2, 16, 8], strides = [1, 1, 1]} : vector<2x16x96xf32> to vector<2x16x8xf32>
    %59 = vector.extract_strided_slice %56 {offsets = [0, 0, 16], sizes = [2, 16, 8], strides = [1, 1, 1]} : vector<2x16x96xf32> to vector<2x16x8xf32>
    %60 = vector.extract_strided_slice %56 {offsets = [0, 0, 24], sizes = [2, 16, 8], strides = [1, 1, 1]} : vector<2x16x96xf32> to vector<2x16x8xf32>
    %61 = tpu.concatenate %57, %58, %59, %60 in 0 : vector<2x16x8xf32>, vector<2x16x8xf32>, vector<2x16x8xf32>, vector<2x16x8xf32> -> vector<8x16x8xf32>
    %62 = vector.extract_strided_slice %56 {offsets = [0, 0, 32], sizes = [2, 16, 8], strides = [1, 1, 1]} : vector<2x16x96xf32> to vector<2x16x8xf32>
    %63 = vector.extract_strided_slice %56 {offsets = [0, 0, 40], sizes = [2, 16, 8], strides = [1, 1, 1]} : vector<2x16x96xf32> to vector<2x16x8xf32>
    %64 = vector.extract_strided_slice %56 {offsets = [0, 0, 48], sizes = [2, 16, 8], strides = [1, 1, 1]} : vector<2x16x96xf32> to vector<2x16x8xf32>
    %65 = vector.extract_strided_slice %56 {offsets = [0, 0, 56], sizes = [2, 16, 8], strides = [1, 1, 1]} : vector<2x16x96xf32> to vector<2x16x8xf32>
    %66 = tpu.concatenate %62, %63, %64, %65 in 0 : vector<2x16x8xf32>, vector<2x16x8xf32>, vector<2x16x8xf32>, vector<2x16x8xf32> -> vector<8x16x8xf32>
    %67 = vector.extract_strided_slice %56 {offsets = [0, 0, 64], sizes = [2, 16, 8], strides = [1, 1, 1]} : vector<2x16x96xf32> to vector<2x16x8xf32>
    %68 = vector.extract_strided_slice %56 {offsets = [0, 0, 72], sizes = [2, 16, 8], strides = [1, 1, 1]} : vector<2x16x96xf32> to vector<2x16x8xf32>
    %69 = vector.extract_strided_slice %56 {offsets = [0, 0, 80], sizes = [2, 16, 8], strides = [1, 1, 1]} : vector<2x16x96xf32> to vector<2x16x8xf32>
    %70 = vector.extract_strided_slice %56 {offsets = [0, 0, 88], sizes = [2, 16, 8], strides = [1, 1, 1]} : vector<2x16x96xf32> to vector<2x16x8xf32>
    %71 = tpu.concatenate %67, %68, %69, %70 in 0 : vector<2x16x8xf32>, vector<2x16x8xf32>, vector<2x16x8xf32>, vector<2x16x8xf32> -> vector<8x16x8xf32>
    "tpu.trace_start"() <{level = 10 : i32, message = "bqd,bkd->bqk"}> : () -> ()
    %cst_25 = arith.constant dense<0.000000e+00> : vector<8x16x16xf32>
    %72 = tpu.matmul %61, %66, %cst_25 {dimension_numbers = #tpu.dot_dimension_numbers<[2], [2], [1], [1], [0, 0, 0, 1, 1, 1], [0], [0]>} : vector<8x16x8xf32>, vector<8x16x8xf32>, vector<8x16x16xf32> -> vector<8x16x16xf32>
    "tpu.trace_stop"() : () -> ()
    %cst_26 = arith.constant 0.353553385 : f32
    %73 = vector.broadcast %cst_26 : f32 to vector<8x16x16xf32>
    %74 = arith.mulf %72, %73 : vector<8x16x16xf32>
    %75 = vector.broadcast %23 : vector<8x1x16xf32> to vector<8x16x16xf32>
    %76 = arith.addf %74, %75 : vector<8x16x16xf32>
    %cst_27 = arith.constant dense<0xFF800000> : vector<8x16xf32>
    %77 = vector.multi_reduction <maximumf>, %76, %cst_27 [2] : vector<8x16x16xf32> to vector<8x16xf32>
    %78 = vector.shape_cast %77 : vector<8x16xf32> to vector<8x16x1xf32>
    %79 = vector.broadcast %78 : vector<8x16x1xf32> to vector<8x16x16xf32>
    %80 = arith.subf %76, %79 : vector<8x16x16xf32>
    %81 = math.exp %80 : vector<8x16x16xf32>
    %cst_28 = arith.constant dense<0.000000e+00> : vector<8x16xf32>
    %82 = vector.multi_reduction <add>, %81, %cst_28 [2] : vector<8x16x16xf32> to vector<8x16xf32>
    %83 = vector.shape_cast %82 : vector<8x16xf32> to vector<8x16x1xf32>
    %84 = tpu.reciprocal %83 {approx = true} : vector<8x16x1xf32> -> vector<8x16x1xf32>
    %85 = vector.broadcast %84 : vector<8x16x1xf32> to vector<8x16x16xf32>
    %86 = arith.mulf %81, %85 : vector<8x16x16xf32>
    "tpu.trace_start"() <{level = 10 : i32, message = "bqk,bkd->bqd"}> : () -> ()
    %cst_29 = arith.constant dense<0.000000e+00> : vector<8x16x8xf32>
    %87 = tpu.matmul %86, %71, %cst_29 {dimension_numbers = #tpu.dot_dimension_numbers<[2], [1], [1], [2], [0, 0, 0, 1, 1, 2], [0], [0]>} : vector<8x16x16xf32>, vector<8x16x8xf32>, vector<8x16x8xf32> -> vector<8x16x8xf32>
    "tpu.trace_stop"() : () -> ()
    %88 = vector.extract_strided_slice %87 {offsets = [0, 0, 0], sizes = [2, 16, 8], strides = [1, 1, 1]} : vector<8x16x8xf32> to vector<2x16x8xf32>
    %89 = vector.extract_strided_slice %87 {offsets = [2, 0, 0], sizes = [2, 16, 8], strides = [1, 1, 1]} : vector<8x16x8xf32> to vector<2x16x8xf32>
    %90 = vector.extract_strided_slice %87 {offsets = [4, 0, 0], sizes = [2, 16, 8], strides = [1, 1, 1]} : vector<8x16x8xf32> to vector<2x16x8xf32>
    %91 = vector.extract_strided_slice %87 {offsets = [6, 0, 0], sizes = [2, 16, 8], strides = [1, 1, 1]} : vector<8x16x8xf32> to vector<2x16x8xf32>
    %92 = tpu.concatenate %88, %89, %90, %91 in 2 : vector<2x16x8xf32>, vector<2x16x8xf32>, vector<2x16x8xf32>, vector<2x16x8xf32> -> vector<2x16x32xf32>
    %93 = vector.shape_cast %92 : vector<2x16x32xf32> to vector<32x32xf32>
    %c0_30 = arith.constant 0 : index
    %c0_31 = arith.constant 0 : index
    %c0_32 = arith.constant 0 : index
    %94 = vector.load %arg8[%c0_30, %c0_31, %c0_32] : memref<1x32x32xf32, #tpu.memory_space<vmem>>, vector<1x32x32xf32>
    %95 = vector.shape_cast %94 : vector<1x32x32xf32> to vector<32x32xf32>
    %cst_33 = arith.constant dense<0.000000e+00> : vector<32x32xf32>
    %96 = tpu.matmul %93, %95, %cst_33 {dimension_numbers = #tpu.dot_dimension_numbers<[1], [0], [0], [1], [0, 0, 1, 1], [], []>} : vector<32x32xf32>, vector<32x32xf32>, vector<32x32xf32> -> vector<32x32xf32>
    %c0_34 = arith.constant 0 : index
    %c0_35 = arith.constant 0 : index
    %c0_36 = arith.constant 0 : index
    %97 = vector.load %arg9[%c0_34, %c0_35, %c0_36] : memref<1x1x32xf32, #tpu.memory_space<vmem>>, vector<1x1x32xf32>
    %98 = vector.shape_cast %97 : vector<1x1x32xf32> to vector<1x32xf32>
    %99 = vector.broadcast %98 : vector<1x32xf32> to vector<32x32xf32>
    %100 = arith.addf %96, %99 : vector<32x32xf32>
    %101 = arith.addf %3, %100 : vector<32x32xf32>
    %c0_37 = arith.constant 0 : index
    %c0_38 = arith.constant 0 : index
    %c0_39 = arith.constant 0 : index
    %102 = vector.load %arg10[%c0_37, %c0_38, %c0_39] : memref<1x1x32xf32, #tpu.memory_space<vmem>>, vector<1x1x32xf32>
    %103 = vector.shape_cast %102 : vector<1x1x32xf32> to vector<1x32xf32>
    %c0_40 = arith.constant 0 : index
    %c0_41 = arith.constant 0 : index
    %c0_42 = arith.constant 0 : index
    %104 = vector.load %arg11[%c0_40, %c0_41, %c0_42] : memref<1x1x32xf32, #tpu.memory_space<vmem>>, vector<1x1x32xf32>
    %105 = vector.shape_cast %104 : vector<1x1x32xf32> to vector<1x32xf32>
    %cst_43 = arith.constant dense<0.000000e+00> : vector<32xf32>
    %106 = vector.multi_reduction <add>, %101, %cst_43 [1] : vector<32x32xf32> to vector<32xf32>
    %107 = vector.shape_cast %106 : vector<32xf32> to vector<32x1xf32>
    %cst_44 = arith.constant 3.200000e+01 : f32
    %108 = vector.broadcast %cst_44 : f32 to vector<32x1xf32>
    %109 = arith.divf %107, %108 : vector<32x1xf32>
    %110 = vector.broadcast %109 : vector<32x1xf32> to vector<32x32xf32>
    %111 = arith.subf %101, %110 : vector<32x32xf32>
    %112 = arith.mulf %111, %111 : vector<32x32xf32>
    %cst_45 = arith.constant dense<0.000000e+00> : vector<32xf32>
    %113 = vector.multi_reduction <add>, %112, %cst_45 [1] : vector<32x32xf32> to vector<32xf32>
    %114 = vector.shape_cast %113 : vector<32xf32> to vector<32x1xf32>
    %cst_46 = arith.constant 0.0322580636 : f32
    %115 = vector.broadcast %cst_46 : f32 to vector<32x1xf32>
    %116 = arith.mulf %114, %115 : vector<32x1xf32>
    %117 = math.sqrt %116 : vector<32x1xf32>
    %cst_47 = arith.constant 9.99999997E-7 : f32
    %118 = vector.broadcast %cst_47 : f32 to vector<32x1xf32>
    %119 = arith.addf %117, %118 : vector<32x1xf32>
    %120 = tpu.reciprocal %119 {approx = true} : vector<32x1xf32> -> vector<32x1xf32>
    %121 = vector.broadcast %120 : vector<32x1xf32> to vector<32x32xf32>
    %122 = arith.mulf %111, %121 : vector<32x32xf32>
    %123 = vector.broadcast %103 : vector<1x32xf32> to vector<32x32xf32>
    %124 = arith.mulf %123, %122 : vector<32x32xf32>
    %125 = vector.broadcast %105 : vector<1x32xf32> to vector<32x32xf32>
    %126 = arith.addf %124, %125 : vector<32x32xf32>
    %c0_48 = arith.constant 0 : index
    %c0_49 = arith.constant 0 : index
    %c0_50 = arith.constant 0 : index
    %127 = vector.load %arg12[%c0_48, %c0_49, %c0_50] : memref<1x32x64xf32, #tpu.memory_space<vmem>>, vector<1x32x64xf32>
    %128 = vector.shape_cast %127 : vector<1x32x64xf32> to vector<32x64xf32>
    %cst_51 = arith.constant dense<0.000000e+00> : vector<32x64xf32>
    %129 = tpu.matmul %126, %128, %cst_51 {dimension_numbers = #tpu.dot_dimension_numbers<[1], [0], [0], [1], [0, 0, 1, 1], [], []>} : vector<32x32xf32>, vector<32x64xf32>, vector<32x64xf32> -> vector<32x64xf32>
    %c0_52 = arith.constant 0 : index
    %c0_53 = arith.constant 0 : index
    %c0_54 = arith.constant 0 : index
    %130 = vector.load %arg13[%c0_52, %c0_53, %c0_54] : memref<1x1x64xf32, #tpu.memory_space<vmem>>, vector<1x1x64xf32>
    %131 = vector.shape_cast %130 : vector<1x1x64xf32> to vector<1x64xf32>
    %132 = vector.broadcast %131 : vector<1x64xf32> to vector<32x64xf32>
    %133 = arith.addf %129, %132 : vector<32x64xf32>
    %cst_55 = arith.constant 0.000000e+00 : f32
    %134 = vector.broadcast %cst_55 : f32 to vector<32x64xf32>
    %135 = arith.maximumf %133, %134 : vector<32x64xf32>
    %c0_56 = arith.constant 0 : index
    %c0_57 = arith.constant 0 : index
    %c0_58 = arith.constant 0 : index
    %136 = vector.load %arg14[%c0_56, %c0_57, %c0_58] : memref<1x64x32xf32, #tpu.memory_space<vmem>>, vector<1x64x32xf32>
    %137 = vector.shape_cast %136 : vector<1x64x32xf32> to vector<64x32xf32>
    %cst_59 = arith.constant dense<0.000000e+00> : vector<32x32xf32>
    %138 = tpu.matmul %135, %137, %cst_59 {dimension_numbers = #tpu.dot_dimension_numbers<[1], [0], [0], [1], [0, 0, 1, 1], [], []>} : vector<32x64xf32>, vector<64x32xf32>, vector<32x32xf32> -> vector<32x32xf32>
    %c0_60 = arith.constant 0 : index
    %c0_61 = arith.constant 0 : index
    %c0_62 = arith.constant 0 : index
    %139 = vector.load %arg15[%c0_60, %c0_61, %c0_62] : memref<1x1x32xf32, #tpu.memory_space<vmem>>, vector<1x1x32xf32>
    %140 = vector.shape_cast %139 : vector<1x1x32xf32> to vector<1x32xf32>
    %141 = vector.broadcast %140 : vector<1x32xf32> to vector<32x32xf32>
    %142 = arith.addf %138, %141 : vector<32x32xf32>
    %143 = arith.addf %101, %142 : vector<32x32xf32>
    %c0_63 = arith.constant 0 : index
    %c0_64 = arith.constant 0 : index
    %144 = vector.load %arg19[%c0_63, %c0_64] : memref<32x32xf32, #tpu.memory_space<vmem>>, vector<32x32xf32>
    tpu.vector_store %arg19[%c0_63, %c0_64], %143 {strides = array<i32>} : memref<32x32xf32, #tpu.memory_space<vmem>>, vector<32x32xf32>,
    %c1_i32_65 = arith.constant 1 : i32
    %145 = arith.cmpi eq, %arg1, %c1_i32_65 : i32
    %146 = arith.extui %145 : i1 to i32
    %c0_i32_66 = arith.constant 0 : i32
    %147 = arith.cmpi ne, %146, %c0_i32_66 : i32
    scf.if %147 {
      %c0_67 = arith.constant 0 : index
      %c0_68 = arith.constant 0 : index
      %148 = vector.load %arg16[%c0_67, %c0_68] : memref<1x32xf32, #tpu.memory_space<vmem>>, vector<1x32xf32>
      %c0_69 = arith.constant 0 : index
      %c0_70 = arith.constant 0 : index
      %149 = vector.load %arg17[%c0_69, %c0_70] : memref<1x32xf32, #tpu.memory_space<vmem>>, vector<1x32xf32>
      %cst_71 = arith.constant dense<0.000000e+00> : vector<32xf32>
      %150 = vector.multi_reduction <add>, %143, %cst_71 [1] : vector<32x32xf32> to vector<32xf32>
      %151 = vector.shape_cast %150 : vector<32xf32> to vector<32x1xf32>
      %cst_72 = arith.constant 3.200000e+01 : f32
      %152 = vector.broadcast %cst_72 : f32 to vector<32x1xf32>
      %153 = arith.divf %151, %152 : vector<32x1xf32>
      %154 = vector.broadcast %153 : vector<32x1xf32> to vector<32x32xf32>
      %155 = arith.subf %143, %154 : vector<32x32xf32>
      %156 = arith.mulf %155, %155 : vector<32x32xf32>
      %cst_73 = arith.constant dense<0.000000e+00> : vector<32xf32>
      %157 = vector.multi_reduction <add>, %156, %cst_73 [1] : vector<32x32xf32> to vector<32xf32>
      %158 = vector.shape_cast %157 : vector<32xf32> to vector<32x1xf32>
      %cst_74 = arith.constant 0.0322580636 : f32
      %159 = vector.broadcast %cst_74 : f32 to vector<32x1xf32>
      %160 = arith.mulf %158, %159 : vector<32x1xf32>
      %161 = math.sqrt %160 : vector<32x1xf32>
      %cst_75 = arith.constant 9.99999997E-7 : f32
      %162 = vector.broadcast %cst_75 : f32 to vector<32x1xf32>
      %163 = arith.addf %161, %162 : vector<32x1xf32>
      %164 = tpu.reciprocal %163 {approx = true} : vector<32x1xf32> -> vector<32x1xf32>
      %165 = vector.broadcast %164 : vector<32x1xf32> to vector<32x32xf32>
      %166 = arith.mulf %155, %165 : vector<32x32xf32>
      %167 = vector.broadcast %148 : vector<1x32xf32> to vector<32x32xf32>
      %168 = arith.mulf %167, %166 : vector<32x32xf32>
      %169 = vector.broadcast %149 : vector<1x32xf32> to vector<32x32xf32>
      %170 = arith.addf %168, %169 : vector<32x32xf32>
      %171 = vector.shape_cast %170 : vector<32x32xf32> to vector<2x16x32xf32>
      %c0_76 = arith.constant 0 : index
      %c0_77 = arith.constant 0 : index
      %c0_78 = arith.constant 0 : index
      %172 = vector.load %arg18[%c0_76, %c0_77, %c0_78] : memref<2x16x32xf32, #tpu.memory_space<vmem>>, vector<2x16x32xf32>
      tpu.vector_store %arg18[%c0_76, %c0_77, %c0_78], %171 {strides = array<i32>} : memref<2x16x32xf32, #tpu.memory_space<vmem>>, vector<2x16x32xf32>,
    } else {
    }
    return
  }
  func.func @transform_0(%arg0: i32, %arg1: i32, %arg2: memref<4xi32, #tpu.memory_space<smem>>) -> (i32, i32, i32) {
    %c0_i32 = arith.constant 0 : i32
    %c0_i32_0 = arith.constant 0 : i32
    %c0_i32_1 = arith.constant 0 : i32
    return %arg0, %c0_i32, %c0_i32_0 : i32, i32, i32
  }
  func.func @transform_1(%arg0: i32, %arg1: i32, %arg2: memref<4xi32, #tpu.memory_space<smem>>) -> (i32, i32, i32) {
    %c0_i32 = arith.constant 0 : i32
    %c0_i32_0 = arith.constant 0 : i32
    %c0_i32_1 = arith.constant 0 : i32
    return %arg1, %c0_i32, %c0_i32_0 : i32, i32, i32
  }
  func.func @transform_2(%arg0: i32, %arg1: i32, %arg2: memref<4xi32, #tpu.memory_space<smem>>) -> (i32, i32, i32) {
    %c0_i32 = arith.constant 0 : i32
    %c0_i32_0 = arith.constant 0 : i32
    %c0_i32_1 = arith.constant 0 : i32
    return %arg1, %c0_i32, %c0_i32_0 : i32, i32, i32
  }
  func.func @transform_3(%arg0: i32, %arg1: i32, %arg2: memref<4xi32, #tpu.memory_space<smem>>) -> (i32, i32, i32) {
    %c0_i32 = arith.constant 0 : i32
    %c0_i32_0 = arith.constant 0 : i32
    %c0_i32_1 = arith.constant 0 : i32
    return %arg1, %c0_i32, %c0_i32_0 : i32, i32, i32
  }
  func.func @transform_4(%arg0: i32, %arg1: i32, %arg2: memref<4xi32, #tpu.memory_space<smem>>) -> (i32, i32, i32) {
    %c0_i32 = arith.constant 0 : i32
    %c0_i32_0 = arith.constant 0 : i32
    %c0_i32_1 = arith.constant 0 : i32
    return %arg1, %c0_i32, %c0_i32_0 : i32, i32, i32
  }
  func.func @transform_5(%arg0: i32, %arg1: i32, %arg2: memref<4xi32, #tpu.memory_space<smem>>) -> (i32, i32, i32) {
    %c0_i32 = arith.constant 0 : i32
    %c0_i32_0 = arith.constant 0 : i32
    %c0_i32_1 = arith.constant 0 : i32
    return %arg1, %c0_i32, %c0_i32_0 : i32, i32, i32
  }
  func.func @transform_6(%arg0: i32, %arg1: i32, %arg2: memref<4xi32, #tpu.memory_space<smem>>) -> (i32, i32, i32) {
    %c0_i32 = arith.constant 0 : i32
    %c0_i32_0 = arith.constant 0 : i32
    %c0_i32_1 = arith.constant 0 : i32
    return %arg1, %c0_i32, %c0_i32_0 : i32, i32, i32
  }
  func.func @transform_7(%arg0: i32, %arg1: i32, %arg2: memref<4xi32, #tpu.memory_space<smem>>) -> (i32, i32, i32) {
    %c0_i32 = arith.constant 0 : i32
    %c0_i32_0 = arith.constant 0 : i32
    %c0_i32_1 = arith.constant 0 : i32
    return %arg1, %c0_i32, %c0_i32_0 : i32, i32, i32
  }
  func.func @transform_8(%arg0: i32, %arg1: i32, %arg2: memref<4xi32, #tpu.memory_space<smem>>) -> (i32, i32, i32) {
    %c0_i32 = arith.constant 0 : i32
    %c0_i32_0 = arith.constant 0 : i32
    %c0_i32_1 = arith.constant 0 : i32
    return %arg1, %c0_i32, %c0_i32_0 : i32, i32, i32
  }
  func.func @transform_9(%arg0: i32, %arg1: i32, %arg2: memref<4xi32, #tpu.memory_space<smem>>) -> (i32, i32, i32) {
    %c0_i32 = arith.constant 0 : i32
    %c0_i32_0 = arith.constant 0 : i32
    %c0_i32_1 = arith.constant 0 : i32
    return %arg1, %c0_i32, %c0_i32_0 : i32, i32, i32
  }
  func.func @transform_10(%arg0: i32, %arg1: i32, %arg2: memref<4xi32, #tpu.memory_space<smem>>) -> (i32, i32, i32) {
    %c0_i32 = arith.constant 0 : i32
    %c0_i32_0 = arith.constant 0 : i32
    %c0_i32_1 = arith.constant 0 : i32
    return %arg1, %c0_i32, %c0_i32_0 : i32, i32, i32
  }
  func.func @transform_11(%arg0: i32, %arg1: i32, %arg2: memref<4xi32, #tpu.memory_space<smem>>) -> (i32, i32, i32) {
    %c0_i32 = arith.constant 0 : i32
    %c0_i32_0 = arith.constant 0 : i32
    %c0_i32_1 = arith.constant 0 : i32
    return %arg1, %c0_i32, %c0_i32_0 : i32, i32, i32
  }
  func.func @transform_12(%arg0: i32, %arg1: i32, %arg2: memref<4xi32, #tpu.memory_space<smem>>) -> (i32, i32, i32) {
    %c0_i32 = arith.constant 0 : i32
    %c0_i32_0 = arith.constant 0 : i32
    %c0_i32_1 = arith.constant 0 : i32
    return %arg1, %c0_i32, %c0_i32_0 : i32, i32, i32
  }
  func.func @transform_13(%arg0: i32, %arg1: i32, %arg2: memref<4xi32, #tpu.memory_space<smem>>) -> (i32, i32) {
    %c0_i32 = arith.constant 0 : i32
    %c0_i32_0 = arith.constant 0 : i32
    %c0_i32_1 = arith.constant 0 : i32
    return %c0_i32, %c0_i32_0 : i32, i32
  }
  func.func @transform_14(%arg0: i32, %arg1: i32, %arg2: memref<4xi32, #tpu.memory_space<smem>>) -> (i32, i32) {
    %c0_i32 = arith.constant 0 : i32
    %c0_i32_0 = arith.constant 0 : i32
    %c0_i32_1 = arith.constant 0 : i32
    return %c0_i32, %c0_i32_0 : i32, i32
  }
  func.func @transform_15(%arg0: i32, %arg1: i32, %arg2: memref<4xi32, #tpu.memory_space<smem>>) -> (i32, i32, i32) {
    %c0_i32 = arith.constant 0 : i32
    %c0_i32_0 = arith.constant 0 : i32
    %c0_i32_1 = arith.constant 0 : i32
    return %arg0, %c0_i32, %c0_i32_0 : i32, i32, i32
  }
}

</mosaic_0001>

<llo_original>
// kernel: tpu_custom_call.1
$region0: #{tpu_custom_call.1}
  #allocation0 [shape = 'u32[]', space=smem, size = 0x4, offset = 0x4, fixed_abs, tag = 'smem constant byte address 0x4 - core index']
  #allocation1 [shape = 'u32[144,128]{1,0:T(1,128)}', space=vmem, size = 0x12000, scoped, tag = 'internal scratch']
  #allocation2 [shape = 'f32[32,32]{1,0:T(8,128)}', space=vmem, size = 0x4000, scoped, tag = 'scratch operand']
  #allocation3 [shape = 's32[1]{0}', space=sflag, size = 0x4, scoped, tag = 'scoped memory for tpu_custom_call.1']
  #allocation4 [shape = 'u8[512]{0}', space=smem, size = 0x200, scoped, tag = 'prefetched SMEM operand 0']
  %s0 = inlined_call_operand.hbm [shape: s32[4], index: 0, kind: input, shape index: {}]
  %s1 = inlined_call_operand.vmem [shape: f32[4,16,32], index: 1, kind: input, shape index: {}]
  %s2 = inlined_call_operand.vmem [shape: f32[2,1,32], index: 2, kind: input, shape index: {}]
  %s3 = inlined_call_operand.hbm [shape: f32[2,1,32], index: 3, kind: input, shape index: {}]
  %s4 = inlined_call_operand.vmem [shape: f32[2,32,96], index: 4, kind: input, shape index: {}]
  %s5 = inlined_call_operand.vmem [shape: f32[2,1,96], index: 5, kind: input, shape index: {}]
  %s6 = inlined_call_operand.vmem [shape: f32[2,32,32], index: 6, kind: input, shape index: {}]
  %s7 = inlined_call_operand.vmem [shape: f32[2,1,32], index: 7, kind: input, shape index: {}]
  %s8 = inlined_call_operand.vmem [shape: f32[2,1,32], index: 8, kind: input, shape index: {}]
  %s9 = inlined_call_operand.vmem [shape: f32[2,1,32], index: 9, kind: input, shape index: {}]
  %s10 = inlined_call_operand.hbm [shape: f32[2,32,64], index: 10, kind: input, shape index: {}]
  %s11 = inlined_call_operand.vmem [shape: f32[2,1,64], index: 11, kind: input, shape index: {}]
  %s12 = inlined_call_operand.vmem [shape: f32[2,64,32], index: 12, kind: input, shape index: {}]
  %s13 = inlined_call_operand.vmem [shape: f32[2,1,32], index: 13, kind: input, shape index: {}]
  %s14 = inlined_call_operand.vmem [shape: f32[1,32], index: 14, kind: input, shape index: {}]
  %s15 = inlined_call_operand.vmem [shape: f32[1,32], index: 15, kind: input, shape index: {}]
  %s16 = inlined_call_operand.hbm [shape: f32[4,16,32], index: 16, kind: output, shape index: {}]
  %s17 = sld [smem:[#allocation0]]
  $region109: #{tpu_custom_call.1} parent=0
    _
  %s19 = ssub.s32 1, %s17
  %s20 = scalar_select 0, %s19, %s17
  %22 = dma.hbm_to_smem %s0, 16, [#allocation4], [#allocation3]
  %23 = dma.done [#allocation3], 16
  %24 = sfence
  $region1: #{tpu_custom_call.1} parent=0
    #allocation5 [shape = 'u8[1024]{0}', space=vmem, size = 0x400, scoped, tag = 'input window, operand 3']
    #allocation6 [shape = 's32[2]{0}', space=sflag, size = 0x8, scoped, tag = 'scoped memory for tpu_custom_call.1']
    #allocation7 [shape = 's32[2]{0}', space=sflag, size = 0x8, scoped, tag = 'scoped memory for tpu_custom_call.1']
    #allocation8 [shape = 'u8[32768]{0}', space=vmem, size = 0x8000, scoped, tag = 'input window, operand 10']
    #allocation9 [shape = 's32[2]{0}', space=sflag, size = 0x8, scoped, tag = 'scoped memory for tpu_custom_call.1']
    #allocation10 [shape = 'u8[32768]{0}', space=vmem, size = 0x8000, scoped, tag = 'output window, operand 0']
    %25 = vsyncpa [#allocation6], 0
    %s26 = scalar_lea.sflag [#allocation6], 1
    %27 = vsyncpa %s26, 0
    %28 = vsyncpa [#allocation9], 0
    %s29 = scalar_lea.sflag [#allocation9], 1
    %30 = vsyncpa %s29, 0
    %31 = vsyncpa [#allocation7], 0
    %s32 = scalar_lea.sflag [#allocation7], 1
    %33 = vsyncpa %s32, 0
    loop: start=0, step=1, limit=6
    $region2: #{tpu_custom_call.1} parent=1 // loop_pre_header
      _
    $region3: #{tpu_custom_call.1} parent=1 // loop_header
      %s35 = sphi 0, %s39
      %p36 = scmp.ge.s32.totalorder %s35, 6
      %s42 = sphi 0, %s54
      %s43 = sphi 0, %s50
      %s44 = sphi 0, %s42
      %s45 = sphi 0, %s43
      %s46 = sphi 0, %s44
      %s47 = sphi 0, %s45
      %s57 = sphi 0, %s59
      %s60 = sphi 0, %s57
      %s61 = sphi 0, %s60
      %s77 = sphi 0, %s61
      %s83 = sphi 0, %s85
      %s86 = sphi 0, %s83
      %s87 = sphi 0, %s86
      %s103 = sphi 0, %s87
      %s109 = sphi 0, %s111
      %s112 = sphi 0, %s109
      %s113 = sphi 0, %s112
      %s129 = sphi 0, %s113
      %s135 = sphi 0, %s137
      %s138 = sphi 0, %s135
      %s139 = sphi 0, %s138
      %s155 = sphi 0, %s139
      %s161 = sphi 0, %s163
      %s164 = sphi 0, %s161
      %s165 = sphi 0, %s164
      %s181 = sphi 0, %s165
      %s187 = sphi 0, %s189
      %s190 = sphi 0, %s187
      %s191 = sphi 0, %s190
      %s207 = sphi 0, %s191
      %s213 = sphi 0, %s215
      %s216 = sphi 0, %s213
      %s217 = sphi 0, %s216
      %s233 = sphi 0, %s217
      %s239 = sphi 0, %s241
      %s242 = sphi 0, %s239
      %s243 = sphi 0, %s242
      %s259 = sphi 0, %s243
      %s265 = sphi 0, %s267
      %s268 = sphi 0, %s265
      %s269 = sphi 0, %s268
      %s285 = sphi 0, %s269
      %s291 = sphi 0, %s293
      %s294 = sphi 0, %s291
      %s295 = sphi 0, %s294
      %s311 = sphi 0, %s295
      %s317 = sphi 0, %s319
      %s320 = sphi 0, %s317
      %s321 = sphi 0, %s320
      %s337 = sphi 0, %s321
      %s343 = sphi 0, %s345
      %s346 = sphi 0, %s343
      %s347 = sphi 0, %s346
      %s363 = sphi 0, %s347
      %s369 = sphi 0, %s371
      %s372 = sphi 0, %s369
      %s373 = sphi 0, %s372
      %s389 = sphi 0, %s373
      %s393 = sphi 0, %s393
      %s395 = sphi 0, %s393
      %s396 = sphi 0, %s395
      %s410 = sphi 0, %s396
      %s414 = sphi 0, %s414
      %s416 = sphi 0, %s414
      %s417 = sphi 0, %s416
      %s431 = sphi 0, %s417
      %s437 = sphi 0, %s439
      %s440 = sphi 0, %s437
      %s441 = sphi 0, %s440
      %s457 = sphi 0, %s441
    $region4: #{tpu_custom_call.1} parent=1 // loop_header_branch
      %38 = sbr.rel (%p36) target = $region8
    $region5: #{tpu_custom_call.1} parent=1 // loop_body
      %s40 = ssub.s32 %s35, 1
      %s41 = ssub.s32 %s35, 2
      %s48 = sadd.s32 1, %s43
      %p49 = scmp.ge.s32.totalorder %s48, 2
      %s50 = scalar_select %p49, 0, %s48
      %s51 = sadd.s32 1, %s42
      %s52 = scalar_select %p49, %s51, %s42
      %p53 = scmp.ge.s32.totalorder %s52, 2
      %s54 = scalar_select %p53, 0, %s52
      %s55 = ssub.s32 %s42, %s54
      %p56 = scmp.eq.s32.totalorder %s55, 0
      %s58 = sadd.s32 %s57, 1
      %s59 = scalar_select %p56, %s57, %s58
      %p62 = pneg %p56
      %p63 = scmp.eq.s32.totalorder %s35, 3
      %p64 = por %p62, %p63
      %p65 = scmp.ne.s32.totalorder %s57, %s60
      %p66 = scmp.eq.s32.totalorder %s35, 0
      %p67 = por %p65, %p66
      %p68 = scmp.ne.s32.totalorder %s57, %s60
      %p69 = scmp.eq.s32.totalorder %s40, 3
      %p70 = por %p68, %p69
      %p71 = scmp.ne.s32.totalorder %s60, %s61
      %p72 = scmp.eq.s32.totalorder %s40, 0
      %p73 = por %p71, %p72
      %p74 = scmp.ne.s32.totalorder %s60, %s61
      %p75 = scmp.eq.s32.totalorder %s41, 3
      %p76 = por %p74, %p75
      %p78 = scmp.ne.s32.totalorder %s61, %s77
      %p79 = scmp.eq.s32.totalorder %s41, 0
      %p80 = por %p78, %p79
      %s81 = ssub.s32 %s43, %s50
      %p82 = scmp.eq.s32.totalorder %s81, 0
      %s84 = sadd.s32 %s83, 1
      %s85 = scalar_select %p82, %s83, %s84
      %p88 = pneg %p82
      %p89 = scmp.eq.s32.totalorder %s35, 3
      %p90 = por %p88, %p89
      %p91 = scmp.ne.s32.totalorder %s83, %s86
      %p92 = scmp.eq.s32.totalorder %s35, 0
      %p93 = por %p91, %p92
      %p94 = scmp.ne.s32.totalorder %s83, %s86
      %p95 = scmp.eq.s32.totalorder %s40, 3
      %p96 = por %p94, %p95
      %p97 = scmp.ne.s32.totalorder %s86, %s87
      %p98 = scmp.eq.s32.totalorder %s40, 0
      %p99 = por %p97, %p98
      %p100 = scmp.ne.s32.totalorder %s86, %s87
      %p101 = scmp.eq.s32.totalorder %s41, 3
      %p102 = por %p100, %p101
      %p104 = scmp.ne.s32.totalorder %s87, %s103
      %p105 = scmp.eq.s32.totalorder %s41, 0
      %p106 = por %p104, %p105
      %s107 = ssub.s32 %s43, %s50
      %p108 = scmp.eq.s32.totalorder %s107, 0
      %s110 = sadd.s32 %s109, 1
      %s111 = scalar_select %p108, %s109, %s110
      %p114 = pneg %p108
      %p115 = scmp.eq.s32.totalorder %s35, 3
      %p116 = por %p114, %p115
      %p117 = scmp.ne.s32.totalorder %s109, %s112
      %p118 = scmp.eq.s32.totalorder %s35, 0
      %p119 = por %p117, %p118
      %p120 = scmp.ne.s32.totalorder %s109, %s112
      %p121 = scmp.eq.s32.totalorder %s40, 3
      %p122 = por %p120, %p121
      %p123 = scmp.ne.s32.totalorder %s112, %s113
      %p124 = scmp.eq.s32.totalorder %s40, 0
      %p125 = por %p123, %p124
      %p126 = scmp.ne.s32.totalorder %s112, %s113
      %p127 = scmp.eq.s32.totalorder %s41, 3
      %p128 = por %p126, %p127
      %p130 = scmp.ne.s32.totalorder %s113, %s129
      %p131 = scmp.eq.s32.totalorder %s41, 0
      %p132 = por %p130, %p131
      %s133 = ssub.s32 %s43, %s50
      %p134 = scmp.eq.s32.totalorder %s133, 0
      %s136 = sadd.s32 %s135, 1
      %s137 = scalar_select %p134, %s135, %s136
      %p140 = pneg %p134
      %p141 = scmp.eq.s32.totalorder %s35, 3
      %p142 = por %p140, %p141
      %p143 = scmp.ne.s32.totalorder %s135, %s138
      %p144 = scmp.eq.s32.totalorder %s35, 0
      %p145 = por %p143, %p144
      %p146 = scmp.ne.s32.totalorder %s135, %s138
      %p147 = scmp.eq.s32.totalorder %s40, 3
      %p148 = por %p146, %p147
      %p149 = scmp.ne.s32.totalorder %s138, %s139
      %p150 = scmp.eq.s32.totalorder %s40, 0
      %p151 = por %p149, %p150
      %p152 = scmp.ne.s32.totalorder %s138, %s139
      %p153 = scmp.eq.s32.totalorder %s41, 3
      %p154 = por %p152, %p153
      %p156 = scmp.ne.s32.totalorder %s139, %s155
      %p157 = scmp.eq.s32.totalorder %s41, 0
      %p158 = por %p156, %p157
      %s159 = ssub.s32 %s43, %s50
      %p160 = scmp.eq.s32.totalorder %s159, 0
      %s162 = sadd.s32 %s161, 1
      %s163 = scalar_select %p160, %s161, %s162
      %p166 = pneg %p160
      %p167 = scmp.eq.s32.totalorder %s35, 3
      %p168 = por %p166, %p167
      %p169 = scmp.ne.s32.totalorder %s161, %s164
      %p170 = scmp.eq.s32.totalorder %s35, 0
      %p171 = por %p169, %p170
      %p172 = scmp.ne.s32.totalorder %s161, %s164
      %p173 = scmp.eq.s32.totalorder %s40, 3
      %p174 = por %p172, %p173
      %p175 = scmp.ne.s32.totalorder %s164, %s165
      %p176 = scmp.eq.s32.totalorder %s40, 0
      %p177 = por %p175, %p176
      %p178 = scmp.ne.s32.totalorder %s164, %s165
      %p179 = scmp.eq.s32.totalorder %s41, 3
      %p180 = por %p178, %p179
      %p182 = scmp.ne.s32.totalorder %s165, %s181
      %p183 = scmp.eq.s32.totalorder %s41, 0
      %p184 = por %p182, %p183
      %s185 = ssub.s32 %s43, %s50
      %p186 = scmp.eq.s32.totalorder %s185, 0
      %s188 = sadd.s32 %s187, 1
      %s189 = scalar_select %p186, %s187, %s188
      %p192 = pneg %p186
      %p193 = scmp.eq.s32.totalorder %s35, 3
      %p194 = por %p192, %p193
      %p195 = scmp.ne.s32.totalorder %s187, %s190
      %p196 = scmp.eq.s32.totalorder %s35, 0
      %p197 = por %p195, %p196
      %p198 = scmp.ne.s32.totalorder %s187, %s190
      %p199 = scmp.eq.s32.totalorder %s40, 3
      %p200 = por %p198, %p199
      %p201 = scmp.ne.s32.totalorder %s190, %s191
      %p202 = scmp.eq.s32.totalorder %s40, 0
      %p203 = por %p201, %p202
      %p204 = scmp.ne.s32.totalorder %s190, %s191
      %p205 = scmp.eq.s32.totalorder %s41, 3
      %p206 = por %p204, %p205
      %p208 = scmp.ne.s32.totalorder %s191, %s207
      %p209 = scmp.eq.s32.totalorder %s41, 0
      %p210 = por %p208, %p209
      %s211 = ssub.s32 %s43, %s50
      %p212 = scmp.eq.s32.totalorder %s211, 0
      %s214 = sadd.s32 %s213, 1
      %s215 = scalar_select %p212, %s213, %s214
      %p218 = pneg %p212
      %p219 = scmp.eq.s32.totalorder %s35, 3
      %p220 = por %p218, %p219
      %p221 = scmp.ne.s32.totalorder %s213, %s216
      %p222 = scmp.eq.s32.totalorder %s35, 0
      %p223 = por %p221, %p222
      %p224 = scmp.ne.s32.totalorder %s213, %s216
      %p225 = scmp.eq.s32.totalorder %s40, 3
      %p226 = por %p224, %p225
      %p227 = scmp.ne.s32.totalorder %s216, %s217
      %p228 = scmp.eq.s32.totalorder %s40, 0
      %p229 = por %p227, %p228
      %p230 = scmp.ne.s32.totalorder %s216, %s217
      %p231 = scmp.eq.s32.totalorder %s41, 3
      %p232 = por %p230, %p231
      %p234 = scmp.ne.s32.totalorder %s217, %s233
      %p235 = scmp.eq.s32.totalorder %s41, 0
      %p236 = por %p234, %p235
      %s237 = ssub.s32 %s43, %s50
      %p238 = scmp.eq.s32.totalorder %s237, 0
      %s240 = sadd.s32 %s239, 1
      %s241 = scalar_select %p238, %s239, %s240
      %p244 = pneg %p238
      %p245 = scmp.eq.s32.totalorder %s35, 3
      %p246 = por %p244, %p245
      %p247 = scmp.ne.s32.totalorder %s239, %s242
      %p248 = scmp.eq.s32.totalorder %s35, 0
      %p249 = por %p247, %p248
      %p250 = scmp.ne.s32.totalorder %s239, %s242
      %p251 = scmp.eq.s32.totalorder %s40, 3
      %p252 = por %p250, %p251
      %p253 = scmp.ne.s32.totalorder %s242, %s243
      %p254 = scmp.eq.s32.totalorder %s40, 0
      %p255 = por %p253, %p254
      %p256 = scmp.ne.s32.totalorder %s242, %s243
      %p257 = scmp.eq.s32.totalorder %s41, 3
      %p258 = por %p256, %p257
      %p260 = scmp.ne.s32.totalorder %s243, %s259
      %p261 = scmp.eq.s32.totalorder %s41, 0
      %p262 = por %p260, %p261
      %s263 = ssub.s32 %s43, %s50
      %p264 = scmp.eq.s32.totalorder %s263, 0
      %s266 = sadd.s32 %s265, 1
      %s267 = scalar_select %p264, %s265, %s266
      %p270 = pneg %p264
      %p271 = scmp.eq.s32.totalorder %s35, 3
      %p272 = por %p270, %p271
      %p273 = scmp.ne.s32.totalorder %s265, %s268
      %p274 = scmp.eq.s32.totalorder %s35, 0
      %p275 = por %p273, %p274
      %p276 = scmp.ne.s32.totalorder %s265, %s268
      %p277 = scmp.eq.s32.totalorder %s40, 3
      %p278 = por %p276, %p277
      %p279 = scmp.ne.s32.totalorder %s268, %s269
      %p280 = scmp.eq.s32.totalorder %s40, 0
      %p281 = por %p279, %p280
      %p282 = scmp.ne.s32.totalorder %s268, %s269
      %p283 = scmp.eq.s32.totalorder %s41, 3
      %p284 = por %p282, %p283
      %p286 = scmp.ne.s32.totalorder %s269, %s285
      %p287 = scmp.eq.s32.totalorder %s41, 0
      %p288 = por %p286, %p287
      %s289 = ssub.s32 %s43, %s50
      %p290 = scmp.eq.s32.totalorder %s289, 0
      %s292 = sadd.s32 %s291, 1
      %s293 = scalar_select %p290, %s291, %s292
      %p296 = pneg %p290
      %p297 = scmp.eq.s32.totalorder %s35, 3
      %p298 = por %p296, %p297
      %p299 = scmp.ne.s32.totalorder %s291, %s294
      %p300 = scmp.eq.s32.totalorder %s35, 0
      %p301 = por %p299, %p300
      %p302 = scmp.ne.s32.totalorder %s291, %s294
      %p303 = scmp.eq.s32.totalorder %s40, 3
      %p304 = por %p302, %p303
      %p305 = scmp.ne.s32.totalorder %s294, %s295
      %p306 = scmp.eq.s32.totalorder %s40, 0
      %p307 = por %p305, %p306
      %p308 = scmp.ne.s32.totalorder %s294, %s295
      %p309 = scmp.eq.s32.totalorder %s41, 3
      %p310 = por %p308, %p309
      %p312 = scmp.ne.s32.totalorder %s295, %s311
      %p313 = scmp.eq.s32.totalorder %s41, 0
      %p314 = por %p312, %p313
      %s315 = ssub.s32 %s43, %s50
      %p316 = scmp.eq.s32.totalorder %s315, 0
      %s318 = sadd.s32 %s317, 1
      %s319 = scalar_select %p316, %s317, %s318
      %p322 = pneg %p316
      %p323 = scmp.eq.s32.totalorder %s35, 3
      %p324 = por %p322, %p323
      %p325 = scmp.ne.s32.totalorder %s317, %s320
      %p326 = scmp.eq.s32.totalorder %s35, 0
      %p327 = por %p325, %p326
      %p328 = scmp.ne.s32.totalorder %s317, %s320
      %p329 = scmp.eq.s32.totalorder %s40, 3
      %p330 = por %p328, %p329
      %p331 = scmp.ne.s32.totalorder %s320, %s321
      %p332 = scmp.eq.s32.totalorder %s40, 0
      %p333 = por %p331, %p332
      %p334 = scmp.ne.s32.totalorder %s320, %s321
      %p335 = scmp.eq.s32.totalorder %s41, 3
      %p336 = por %p334, %p335
      %p338 = scmp.ne.s32.totalorder %s321, %s337
      %p339 = scmp.eq.s32.totalorder %s41, 0
      %p340 = por %p338, %p339
      %s341 = ssub.s32 %s43, %s50
      %p342 = scmp.eq.s32.totalorder %s341, 0
      %s344 = sadd.s32 %s343, 1
      %s345 = scalar_select %p342, %s343, %s344
      %p348 = pneg %p342
      %p349 = scmp.eq.s32.totalorder %s35, 3
      %p350 = por %p348, %p349
      %p351 = scmp.ne.s32.totalorder %s343, %s346
      %p352 = scmp.eq.s32.totalorder %s35, 0
      %p353 = por %p351, %p352
      %p354 = scmp.ne.s32.totalorder %s343, %s346
      %p355 = scmp.eq.s32.totalorder %s40, 3
      %p356 = por %p354, %p355
      %p357 = scmp.ne.s32.totalorder %s346, %s347
      %p358 = scmp.eq.s32.totalorder %s40, 0
      %p359 = por %p357, %p358
      %p360 = scmp.ne.s32.totalorder %s346, %s347
      %p361 = scmp.eq.s32.totalorder %s41, 3
      %p362 = por %p360, %p361
      %p364 = scmp.ne.s32.totalorder %s347, %s363
      %p365 = scmp.eq.s32.totalorder %s41, 0
      %p366 = por %p364, %p365
      %s367 = ssub.s32 %s43, %s50
      %p368 = scmp.eq.s32.totalorder %s367, 0
      %s370 = sadd.s32 %s369, 1
      %s371 = scalar_select %p368, %s369, %s370
      %p374 = pneg %p368
      %p375 = scmp.eq.s32.totalorder %s35, 3
      %p376 = por %p374, %p375
      %p377 = scmp.ne.s32.totalorder %s369, %s372
      %p378 = scmp.eq.s32.totalorder %s35, 0
      %p379 = por %p377, %p378
      %p380 = scmp.ne.s32.totalorder %s369, %s372
      %p381 = scmp.eq.s32.totalorder %s40, 3
      %p382 = por %p380, %p381
      %p383 = scmp.ne.s32.totalorder %s372, %s373
      %p384 = scmp.eq.s32.totalorder %s40, 0
      %p385 = por %p383, %p384
      %p386 = scmp.ne.s32.totalorder %s372, %s373
      %p387 = scmp.eq.s32.totalorder %s41, 3
      %p388 = por %p386, %p387
      %p390 = scmp.ne.s32.totalorder %s373, %s389
      %p391 = scmp.eq.s32.totalorder %s41, 0
      %p392 = por %p390, %p391
      %s394 = sadd.s32 %s393, 1
      %p397 = scmp.eq.s32.totalorder %s35, 3
      %p398 = scmp.ne.s32.totalorder %s393, %s395
      %p399 = scmp.eq.s32.totalorder %s35, 0
      %p400 = por %p398, %p399
      %p401 = scmp.ne.s32.totalorder %s393, %s395
      %p402 = scmp.eq.s32.totalorder %s40, 3
      %p403 = por %p401, %p402
      %p404 = scmp.ne.s32.totalorder %s395, %s396
      %p405 = scmp.eq.s32.totalorder %s40, 0
      %p406 = por %p404, %p405
      %p407 = scmp.ne.s32.totalorder %s395, %s396
      %p408 = scmp.eq.s32.totalorder %s41, 3
      %p409 = por %p407, %p408
      %p411 = scmp.ne.s32.totalorder %s396, %s410
      %p412 = scmp.eq.s32.totalorder %s41, 0
      %p413 = por %p411, %p412
      %s415 = sadd.s32 %s414, 1
      %p418 = scmp.eq.s32.totalorder %s35, 3
      %p419 = scmp.ne.s32.totalorder %s414, %s416
      %p420 = scmp.eq.s32.totalorder %s35, 0
      %p421 = por %p419, %p420
      %p422 = scmp.ne.s32.totalorder %s414, %s416
      %p423 = scmp.eq.s32.totalorder %s40, 3
      %p424 = por %p422, %p423
      %p425 = scmp.ne.s32.totalorder %s416, %s417
      %p426 = scmp.eq.s32.totalorder %s40, 0
      %p427 = por %p425, %p426
      %p428 = scmp.ne.s32.totalorder %s416, %s417
      %p429 = scmp.eq.s32.totalorder %s41, 3
      %p430 = por %p428, %p429
      %p432 = scmp.ne.s32.totalorder %s417, %s431
      %p433 = scmp.eq.s32.totalorder %s41, 0
      %p434 = por %p432, %p433
      %s435 = ssub.s32 %s42, %s54
      %p436 = scmp.eq.s32.totalorder %s435, 0
      %s438 = sadd.s32 %s437, 1
      %s439 = scalar_select %p436, %s437, %s438
      %p442 = pneg %p436
      %p443 = scmp.eq.s32.totalorder %s35, 3
      %p444 = por %p442, %p443
      %p445 = scmp.ne.s32.totalorder %s437, %s440
      %p446 = scmp.eq.s32.totalorder %s35, 0
      %p447 = por %p445, %p446
      %p448 = scmp.ne.s32.totalorder %s437, %s440
      %p449 = scmp.eq.s32.totalorder %s40, 3
      %p450 = por %p448, %p449
      %p451 = scmp.ne.s32.totalorder %s440, %s441
      %p452 = scmp.eq.s32.totalorder %s40, 0
      %p453 = por %p451, %p452
      %p454 = scmp.ne.s32.totalorder %s440, %s441
      %p455 = scmp.eq.s32.totalorder %s41, 3
      %p456 = por %p454, %p455
      %p458 = scmp.ne.s32.totalorder %s441, %s457
      %p459 = scmp.eq.s32.totalorder %s41, 0
      %p460 = por %p458, %p459
      %p461 = scmp.le.s32.totalorder 1, %s35
      %p462 = scmp.lt.s32.totalorder %s35, 5
      %p463 = pnand %p461, %p462
      %p464 = pneg %p463
      // Predicated region
      $region9: #{tpu_custom_call.1} parent=5 // pred_check
        _
      $region10: #{tpu_custom_call.1} parent=5 // pred_check_branch
        %466 = sbr.rel (%p463) target = $region12
      $region11: #{tpu_custom_call.1} parent=5 // pred_region
        %s467 = ssub.s32 %s35, 1
        // Predicated region
        $region13: #{tpu_custom_call.1} parent=11 // pred_check
          %p468 = pneg %p406
        $region14: #{tpu_custom_call.1} parent=11 // pred_check_branch
          %470 = sbr.rel (%p468) target = $region16
        $region15: #{tpu_custom_call.1} parent=11 // pred_region
          _
        $region16: #{tpu_custom_call.1} parent=11 // pred_fallthru
          _
        // Predicated region
        $region17: #{tpu_custom_call.1} parent=11 // pred_check
          %p471 = pneg %p427
        $region18: #{tpu_custom_call.1} parent=11 // pred_check_branch
          %473 = sbr.rel (%p471) target = $region20
        $region19: #{tpu_custom_call.1} parent=11 // pred_region
          _
        $region20: #{tpu_custom_call.1} parent=11 // pred_fallthru
          _
      $region12: #{tpu_custom_call.1} parent=5 // pred_fallthru
        _
      %p474 = scmp.lt.s32.totalorder %s35, 4
      // Predicated region
      $region21: #{tpu_custom_call.1} parent=5 // pred_check
        %p475 = pneg %p474
      $region22: #{tpu_custom_call.1} parent=5 // pred_check_branch
        %477 = sbr.rel (%p475) target = $region24
      $region23: #{tpu_custom_call.1} parent=5 // pred_region
        // Predicated region
        $region25: #{tpu_custom_call.1} parent=23 // pred_check
          %p478 = pneg %p67
        $region26: #{tpu_custom_call.1} parent=23 // pred_check_branch
          %480 = sbr.rel (%p478) target = $region28
        $region27: #{tpu_custom_call.1} parent=23 // pred_region
          %s481 = smul.u32 2, %s42
          %p482 = scmp.lt.s32.totalorder %s481, 3
          %s483 = scalar_select %p482, %s481, 3
          %s484 = smul.addr %s483, 2
          %s485 = smul.addr %s484, 8
          %s486 = scalar_lea.vmem %s1, %s485
          %s487 = smul.u32 2, %s42
        $region28: #{tpu_custom_call.1} parent=23 // pred_fallthru
          _
        // Predicated region
        $region29: #{tpu_custom_call.1} parent=23 // pred_check
          %p488 = pneg %p93
        $region30: #{tpu_custom_call.1} parent=23 // pred_check_branch
          %490 = sbr.rel (%p488) target = $region32
        $region31: #{tpu_custom_call.1} parent=23 // pred_region
          %p491 = scmp.lt.s32.totalorder %s43, 1
          %s492 = scalar_select %p491, %s43, 1
          %s493 = scalar_lea.vmem %s2, %s492
        $region32: #{tpu_custom_call.1} parent=23 // pred_fallthru
          _
        // Predicated region
        $region33: #{tpu_custom_call.1} parent=23 // pred_check
          %p494 = pneg %p119
        $region34: #{tpu_custom_call.1} parent=23 // pred_check_branch
          %496 = sbr.rel (%p494) target = $region36
        $region35: #{tpu_custom_call.1} parent=23 // pred_region
          %s497 = sand.u32 %s109, 1
          %s498 = scalar_lea.sflag [#allocation6], %s497
          %s499 = sand.u32 %s109, 1
          %s500 = scalar_lea.vmem [#allocation5], %s499
          %s502 = ssub.s32 16, 16
          %503 = vsyncadd %s498, %s502
          %s504 = smul.addr %s43, 16
          %s505 = scalar_lea.hbm %s3, %s504
          %s507 = sshll.u32 %s500, 4
          %s508 = int_to_ptr.vmem [resolvable:$true] %s507
          %510 = dma.hbm_to_vmem [thread:$0]  %s505, 16, %s508, %s498
        $region36: #{tpu_custom_call.1} parent=23 // pred_fallthru
          _
        // Predicated region
        $region37: #{tpu_custom_call.1} parent=23 // pred_check
          %p511 = pneg %p145
        $region38: #{tpu_custom_call.1} parent=23 // pred_check_branch
          %513 = sbr.rel (%p511) target = $region40
        $region39: #{tpu_custom_call.1} parent=23 // pred_region
          %p514 = scmp.lt.s32.totalorder %s43, 1
          %s515 = scalar_select %p514, %s43, 1
          %s516 = smul.addr %s515, 4
          %s517 = smul.addr %s516, 8
          %s518 = scalar_lea.vmem %s4, %s517
        $region40: #{tpu_custom_call.1} parent=23 // pred_fallthru
          _
        // Predicated region
        $region41: #{tpu_custom_call.1} parent=23 // pred_check
          %p519 = pneg %p171
        $region42: #{tpu_custom_call.1} parent=23 // pred_check_branch
          %521 = sbr.rel (%p519) target = $region44
        $region43: #{tpu_custom_call.1} parent=23 // pred_region
          %p522 = scmp.lt.s32.totalorder %s43, 1
          %s523 = scalar_select %p522, %s43, 1
          %s524 = scalar_lea.vmem %s5, %s523
        $region44: #{tpu_custom_call.1} parent=23 // pred_fallthru
          _
        // Predicated region
        $region45: #{tpu_custom_call.1} parent=23 // pred_check
          %p525 = pneg %p197
        $region46: #{tpu_custom_call.1} parent=23 // pred_check_branch
          %527 = sbr.rel (%p525) target = $region48
        $region47: #{tpu_custom_call.1} parent=23 // pred_region
          %p528 = scmp.lt.s32.totalorder %s43, 1
          %s529 = scalar_select %p528, %s43, 1
          %s530 = smul.addr %s529, 4
          %s531 = smul.addr %s530, 8
          %s532 = scalar_lea.vmem %s6, %s531
        $region48: #{tpu_custom_call.1} parent=23 // pred_fallthru
          _
        // Predicated region
        $region49: #{tpu_custom_call.1} parent=23 // pred_check
          %p533 = pneg %p223
        $region50: #{tpu_custom_call.1} parent=23 // pred_check_branch
          %535 = sbr.rel (%p533) target = $region52
        $region51: #{tpu_custom_call.1} parent=23 // pred_region
          %p536 = scmp.lt.s32.totalorder %s43, 1
          %s537 = scalar_select %p536, %s43, 1
          %s538 = scalar_lea.vmem %s7, %s537
        $region52: #{tpu_custom_call.1} parent=23 // pred_fallthru
          _
        // Predicated region
        $region53: #{tpu_custom_call.1} parent=23 // pred_check
          %p539 = pneg %p249
        $region54: #{tpu_custom_call.1} parent=23 // pred_check_branch
          %541 = sbr.rel (%p539) target = $region56
        $region55: #{tpu_custom_call.1} parent=23 // pred_region
          %p542 = scmp.lt.s32.totalorder %s43, 1
          %s543 = scalar_select %p542, %s43, 1
          %s544 = scalar_lea.vmem %s8, %s543
        $region56: #{tpu_custom_call.1} parent=23 // pred_fallthru
          _
        // Predicated region
        $region57: #{tpu_custom_call.1} parent=23 // pred_check
          %p545 = pneg %p275
        $region58: #{tpu_custom_call.1} parent=23 // pred_check_branch
          %547 = sbr.rel (%p545) target = $region60
        $region59: #{tpu_custom_call.1} parent=23 // pred_region
          %p548 = scmp.lt.s32.totalorder %s43, 1
          %s549 = scalar_select %p548, %s43, 1
          %s550 = scalar_lea.vmem %s9, %s549
        $region60: #{tpu_custom_call.1} parent=23 // pred_fallthru
          _
        // Predicated region
        $region61: #{tpu_custom_call.1} parent=23 // pred_check
          %p551 = pneg %p301
        $region62: #{tpu_custom_call.1} parent=23 // pred_check_branch
          %553 = sbr.rel (%p551) target = $region64
        $region63: #{tpu_custom_call.1} parent=23 // pred_region
          %s554 = sand.u32 %s291, 1
          %s555 = scalar_lea.sflag [#allocation9], %s554
          %s556 = sand.u32 %s291, 1
          %s557 = smul.addr %s556, 32
          %s558 = scalar_lea.vmem [#allocation8], %s557
          %s560 = ssub.s32 512, 512
          %561 = vsyncadd %s555, %s560
          %s562 = smul.addr %s43, 4
          %s563 = smul.addr %s562, 128
          %s564 = scalar_lea.hbm %s10, %s563
          %s565 = sshll.u32 %s558, 4
          %s566 = int_to_ptr.vmem [resolvable:$true] %s565
          %571 = dma.hbm_to_vmem [thread:$0]  %s564, 512, %s566, %s555, 128, 128, 8
        $region64: #{tpu_custom_call.1} parent=23 // pred_fallthru
          _
        // Predicated region
        $region65: #{tpu_custom_call.1} parent=23 // pred_check
          %p572 = pneg %p327
        $region66: #{tpu_custom_call.1} parent=23 // pred_check_branch
          %574 = sbr.rel (%p572) target = $region68
        $region67: #{tpu_custom_call.1} parent=23 // pred_region
          %p575 = scmp.lt.s32.totalorder %s43, 1
          %s576 = scalar_select %p575, %s43, 1
          %s577 = scalar_lea.vmem %s11, %s576
        $region68: #{tpu_custom_call.1} parent=23 // pred_fallthru
          _
        // Predicated region
        $region69: #{tpu_custom_call.1} parent=23 // pred_check
          %p578 = pneg %p353
        $region70: #{tpu_custom_call.1} parent=23 // pred_check_branch
          %580 = sbr.rel (%p578) target = $region72
        $region71: #{tpu_custom_call.1} parent=23 // pred_region
          %p581 = scmp.lt.s32.totalorder %s43, 1
          %s582 = scalar_select %p581, %s43, 1
          %s583 = smul.addr %s582, 8
          %s584 = smul.addr %s583, 8
          %s585 = scalar_lea.vmem %s12, %s584
        $region72: #{tpu_custom_call.1} parent=23 // pred_fallthru
          _
        // Predicated region
        $region73: #{tpu_custom_call.1} parent=23 // pred_check
          %p586 = pneg %p379
        $region74: #{tpu_custom_call.1} parent=23 // pred_check_branch
          %588 = sbr.rel (%p586) target = $region76
        $region75: #{tpu_custom_call.1} parent=23 // pred_region
          %p589 = scmp.lt.s32.totalorder %s43, 1
          %s590 = scalar_select %p589, %s43, 1
          %s591 = scalar_lea.vmem %s13, %s590
        $region76: #{tpu_custom_call.1} parent=23 // pred_fallthru
          _
      $region24: #{tpu_custom_call.1} parent=5 // pred_fallthru
        _
      %p592 = scmp.le.s32.totalorder 1, %s35
      %p593 = scmp.lt.s32.totalorder %s35, 5
      %p594 = pnand %p592, %p593
      %p595 = pneg %p594
      // Predicated region
      $region77: #{tpu_custom_call.1} parent=5 // pred_check
        _
      $region78: #{tpu_custom_call.1} parent=5 // pred_check_branch
        %597 = sbr.rel (%p594) target = $region80
      $region79: #{tpu_custom_call.1} parent=5 // pred_region
        %s598 = ssub.s32 %s35, 1
        %s599 = sand.u32 %s112, 1
        %s600 = scalar_lea.sflag [#allocation6], %s599
        %s601 = sand.u32 %s112, 1
        %s602 = scalar_lea.vmem [#allocation5], %s601
        // Predicated region
        $region81: #{tpu_custom_call.1} parent=79 // pred_check
          %p603 = pneg %p125
        $region82: #{tpu_custom_call.1} parent=79 // pred_check_branch
          %605 = sbr.rel (%p603) target = $region84
        $region83: #{tpu_custom_call.1} parent=79 // pred_region
          %606 = dma.done %s600, 16
        $region84: #{tpu_custom_call.1} parent=79 // pred_fallthru
          _
        %s607 = sand.u32 %s294, 1
        %s608 = scalar_lea.sflag [#allocation9], %s607
        %s609 = sand.u32 %s294, 1
        %s610 = smul.addr %s609, 32
        %s611 = scalar_lea.vmem [#allocation8], %s610
        // Predicated region
        $region85: #{tpu_custom_call.1} parent=79 // pred_check
          %p612 = pneg %p307
        $region86: #{tpu_custom_call.1} parent=79 // pred_check_branch
          %614 = sbr.rel (%p612) target = $region88
        $region87: #{tpu_custom_call.1} parent=79 // pred_region
          %615 = dma.done %s608, 512
        $region88: #{tpu_custom_call.1} parent=79 // pred_fallthru
          _
        %s616 = smul.u32 2, %s44
        %p617 = scmp.lt.s32.totalorder %s616, 3
        %s618 = scalar_select %p617, %s616, 3
        %s619 = smul.addr %s618, 2
        %s620 = smul.addr %s619, 8
        %s621 = scalar_lea.vmem %s1, %s620
        %p622 = pneg %p73
        %p623 = pneg %p70
        %p624 = scmp.lt.s32.totalorder %s45, 1
        %s625 = scalar_select %p624, %s45, 1
        %s626 = scalar_lea.vmem %s2, %s625
        %p627 = pneg %p99
        %p628 = pneg %p96
        %s629 = sand.u32 %s112, 1
        %s630 = scalar_lea.sflag [#allocation6], %s629
        %s631 = sand.u32 %s112, 1
        %s632 = scalar_lea.vmem [#allocation5], %s631
        %p633 = pneg %p125
        %p634 = pneg %p122
        %p635 = scmp.lt.s32.totalorder %s45, 1
        %s636 = scalar_select %p635, %s45, 1
        %s637 = smul.addr %s636, 4
        %s638 = smul.addr %s637, 8
        %s639 = scalar_lea.vmem %s4, %s638
        %p640 = pneg %p151
        %p641 = pneg %p148
        %p642 = scmp.lt.s32.totalorder %s45, 1
        %s643 = scalar_select %p642, %s45, 1
        %s644 = scalar_lea.vmem %s5, %s643
        %p645 = pneg %p177
        %p646 = pneg %p174
        %p647 = scmp.lt.s32.totalorder %s45, 1
        %s648 = scalar_select %p647, %s45, 1
        %s649 = smul.addr %s648, 4
        %s650 = smul.addr %s649, 8
        %s651 = scalar_lea.vmem %s6, %s650
        %p652 = pneg %p203
        %p653 = pneg %p200
        %p654 = scmp.lt.s32.totalorder %s45, 1
        %s655 = scalar_select %p654, %s45, 1
        %s656 = scalar_lea.vmem %s7, %s655
        %p657 = pneg %p229
        %p658 = pneg %p226
        %p659 = scmp.lt.s32.totalorder %s45, 1
        %s660 = scalar_select %p659, %s45, 1
        %s661 = scalar_lea.vmem %s8, %s660
        %p662 = pneg %p255
        %p663 = pneg %p252
        %p664 = scmp.lt.s32.totalorder %s45, 1
        %s665 = scalar_select %p664, %s45, 1
        %s666 = scalar_lea.vmem %s9, %s665
        %p667 = pneg %p281
        %p668 = pneg %p278
        %s669 = sand.u32 %s294, 1
        %s670 = scalar_lea.sflag [#allocation9], %s669
        %s671 = sand.u32 %s294, 1
        %s672 = smul.addr %s671, 32
        %s673 = scalar_lea.vmem [#allocation8], %s672
        %p674 = pneg %p307
        %p675 = pneg %p304
        %p676 = scmp.lt.s32.totalorder %s45, 1
        %s677 = scalar_select %p676, %s45, 1
        %s678 = scalar_lea.vmem %s11, %s677
        %p679 = pneg %p333
        %p680 = pneg %p330
        %p681 = scmp.lt.s32.totalorder %s45, 1
        %s682 = scalar_select %p681, %s45, 1
        %s683 = smul.addr %s682, 8
        %s684 = smul.addr %s683, 8
        %s685 = scalar_lea.vmem %s12, %s684
        %p686 = pneg %p359
        %p687 = pneg %p356
        %p688 = scmp.lt.s32.totalorder %s45, 1
        %s689 = scalar_select %p688, %s45, 1
        %s690 = scalar_lea.vmem %s13, %s689
        %p691 = pneg %p385
        %p692 = pneg %p382
        %p693 = pneg %p406
        %p694 = pneg %p403
        %p695 = pneg %p427
        %p696 = pneg %p424
        %p697 = pneg %p453
        %p698 = pneg %p450
        %s699 = sand.u32 %s440, 1
        %s700 = scalar_lea.sflag [#allocation7], %s699
        %s701 = sand.u32 %s440, 1
        %s702 = smul.addr %s701, 32
        %s703 = scalar_lea.vmem [#allocation10], %s702
        %s704 = smul.u32 2, %s44
        %p705 = scmp.lt.s32.totalorder %s704, 3
        %s706 = scalar_select %p705, %s704, 3
        %s707 = smul.addr %s706, 2
        %s708 = smul.addr %s707, 8
        %s709 = scalar_lea.vmem %s1, %s708
        %s710 = smul.u32 2, %s44
        %p711 = scmp.lt.s32.totalorder %s45, 1
        %s712 = scalar_select %p711, %s45, 1
        %s713 = scalar_lea.vmem %s2, %s712
        %p714 = scmp.lt.s32.totalorder %s45, 1
        %s715 = scalar_select %p714, %s45, 1
        %s716 = smul.addr %s715, 4
        %s717 = smul.addr %s716, 8
        %s718 = scalar_lea.vmem %s4, %s717
        %p719 = scmp.lt.s32.totalorder %s45, 1
        %s720 = scalar_select %p719, %s45, 1
        %s721 = scalar_lea.vmem %s5, %s720
        %p722 = scmp.lt.s32.totalorder %s45, 1
        %s723 = scalar_select %p722, %s45, 1
        %s724 = smul.addr %s723, 4
        %s725 = smul.addr %s724, 8
        %s726 = scalar_lea.vmem %s6, %s725
        %p727 = scmp.lt.s32.totalorder %s45, 1
        %s728 = scalar_select %p727, %s45, 1
        %s729 = scalar_lea.vmem %s7, %s728
        %p730 = scmp.lt.s32.totalorder %s45, 1
        %s731 = scalar_select %p730, %s45, 1
        %s732 = scalar_lea.vmem %s8, %s731
        %p733 = scmp.lt.s32.totalorder %s45, 1
        %s734 = scalar_select %p733, %s45, 1
        %s735 = scalar_lea.vmem %s9, %s734
        %p736 = scmp.lt.s32.totalorder %s45, 1
        %s737 = scalar_select %p736, %s45, 1
        %s738 = scalar_lea.vmem %s11, %s737
        %p739 = scmp.lt.s32.totalorder %s45, 1
        %s740 = scalar_select %p739, %s45, 1
        %s741 = smul.addr %s740, 8
        %s742 = smul.addr %s741, 8
        %s743 = scalar_lea.vmem %s12, %s742
        %p744 = scmp.lt.s32.totalorder %s45, 1
        %s745 = scalar_select %p744, %s45, 1
        %s746 = scalar_lea.vmem %s13, %s745
        %s747 = smul.u32 2, %s44
        %p748 = scmp.eq.s32.totalorder %s45, 0
        // Predicated region
        $region89: #{tpu_custom_call.1} parent=79 // pred_check
          %p749 = pneg %p748
        $region90: #{tpu_custom_call.1} parent=79 // pred_check_branch
          %751 = sbr.rel (%p749) target = $region92
        $region91: #{tpu_custom_call.1} parent=79 // pred_region
          %v752 = vld [vmem:[%s709] sm:$0xff]
          %v753 = vld [vmem:[%s709 + $0x8] sm:$0xff]
          %v754 = vld [vmem:[%s709 + $0x10] sm:$0xff]
          %v755 = vld [vmem:[%s709 + $0x18] sm:$0xff]
          %vm756 = vcmask 261120
          %757 = vst.msk [vmem:[#allocation2] sm:$0xff] %vm756, %v752
          %758 = vst.msk [vmem:[#allocation2 + $0x8] sm:$0xff] %vm756, %v753
          %759 = vst.msk [vmem:[#allocation2 + $0x10] sm:$0xff] %vm756, %v754
          %760 = vst.msk [vmem:[#allocation2 + $0x18] sm:$0xff] %vm756, %v755
        $region92: #{tpu_custom_call.1} parent=79 // pred_fallthru
          _
        %v761 = vld [vmem:[#allocation2] sm:$0xff]
        %v762 = vld [vmem:[#allocation2 + $0x8] sm:$0xff]
        %v763 = vld [vmem:[#allocation2 + $0x10] sm:$0xff]
        %v764 = vld [vmem:[#allocation2 + $0x18] sm:$0xff]
        %v765 = vlaneseq
        %v766 = vand.u32 %v765, 127
        %s767 = smul.u32 %s44, 2
        %s768 = sld [smem:[#allocation4 + %s767]]
        %v769 = vstv %s768
        %vm770 = vcmp.lt.s32.totalorder %v766, %v769
        %v771 = vsel %vm770, 0.0, -1e+09
        %s772 = sadd.s32 %s767, 1
        %s773 = sld [smem:[#allocation4 + %s772]]
        %v774 = vstv %s773
        %vm775 = vcmp.lt.s32.totalorder %v766, %v774
        %v776 = vsel %vm775, 0.0, -1e+09
        %v777 = vld [vmem:[%s713] sm:$0x1]
        %v778 = vld [vmem:[%s602] sm:$0x1]
        %vm779 = vcmask 261120
        %v780 = vsel %vm779, %v761, 0.0
        %781 = vadd.xlane.f32.xlu0 %v780
        %v782 = vpop.xlane.xlu0 %781
        %v783 = vsel %vm779, %v762, 0.0
        %784 = vadd.xlane.f32.xlu0 %v783
        %v785 = vpop.xlane.xlu0 %784
        %v786 = vsel %vm779, %v763, 0.0
        %787 = vadd.xlane.f32.xlu0 %v786
        %v788 = vpop.xlane.xlu0 %787
        %v789 = vsel %vm779, %v764, 0.0
        %790 = vadd.xlane.f32.xlu0 %v789
        %v791 = vpop.xlane.xlu0 %790
        %v792 = vrcp.pop 32.0
        %v793 = vmul.f32 %v782, %v792
        %v794 = vmul.f32 %v785, %v792
        %v795 = vmul.f32 %v788, %v792
        %v796 = vmul.f32 %v791, %v792
        %v797 = vsub.f32 %v761, %v793
        %v798 = vsub.f32 %v762, %v794
        %v799 = vsub.f32 %v763, %v795
        %v800 = vsub.f32 %v764, %v796
        %v801 = vmul.f32 %v797, %v797
        %v802 = vmul.f32 %v798, %v798
        %v803 = vmul.f32 %v799, %v799
        %v804 = vmul.f32 %v800, %v800
        %v805 = vsel %vm779, %v801, 0.0
        %806 = vadd.xlane.f32.xlu0 %v805
        %v807 = vpop.xlane.xlu0 %806
        %v808 = vsel %vm779, %v802, 0.0
        %809 = vadd.xlane.f32.xlu0 %v808
        %v810 = vpop.xlane.xlu0 %809
        %v811 = vsel %vm779, %v803, 0.0
        %812 = vadd.xlane.f32.xlu0 %v811
        %v813 = vpop.xlane.xlu0 %812
        %v814 = vsel %vm779, %v804, 0.0
        %815 = vadd.xlane.f32.xlu0 %v814
        %v816 = vpop.xlane.xlu0 %815
        %v817 = vmul.f32 %v807, 0.032258064
        %v818 = vmul.f32 %v810, 0.032258064
        %v819 = vmul.f32 %v813, 0.032258064
        %v820 = vmul.f32 %v816, 0.032258064
        %v821 = vrsqrt.pop %v817
        %v822 = vmul.f32 %v817, %v821
        %vm823 = vcmp.eq.f32.partialorder %v817, inf
        %v824 = vsel %vm823, %v817, %v822
        %vm825 = vcmp.eq.f32.partialorder %v817, 0.0
        %v826 = vand.u32 %v817, 2147483648
        %v827 = vsel %vm825, %v826, %v824
        %v828 = vrsqrt.pop %v818
        %v829 = vmul.f32 %v818, %v828
        %vm830 = vcmp.eq.f32.partialorder %v818, inf
        %v831 = vsel %vm830, %v818, %v829
        %vm832 = vcmp.eq.f32.partialorder %v818, 0.0
        %v833 = vand.u32 %v818, 2147483648
        %v834 = vsel %vm832, %v833, %v831
        %v835 = vrsqrt.pop %v819
        %v836 = vmul.f32 %v819, %v835
        %vm837 = vcmp.eq.f32.partialorder %v819, inf
        %v838 = vsel %vm837, %v819, %v836
        %vm839 = vcmp.eq.f32.partialorder %v819, 0.0
        %v840 = vand.u32 %v819, 2147483648
        %v841 = vsel %vm839, %v840, %v838
        %v842 = vrsqrt.pop %v820
        %v843 = vmul.f32 %v820, %v842
        %vm844 = vcmp.eq.f32.partialorder %v820, inf
        %v845 = vsel %vm844, %v820, %v843
        %vm846 = vcmp.eq.f32.partialorder %v820, 0.0
        %v847 = vand.u32 %v820, 2147483648
        %v848 = vsel %vm846, %v847, %v845
        %v849 = vadd.f32 %v827, 1e-06
        %v850 = vadd.f32 %v834, 1e-06
        %v851 = vadd.f32 %v841, 1e-06
        %v852 = vadd.f32 %v848, 1e-06
        %v853 = vrcp.pop %v849
        %v854 = vrcp.pop %v850
        %v855 = vrcp.pop %v851
        %v856 = vrcp.pop %v852
        %v857 = vmul.f32 %v797, %v853
        %v858 = vmul.f32 %v798, %v854
        %v859 = vmul.f32 %v799, %v855
        %v860 = vmul.f32 %v800, %v856
        %v862 = vlaneseq
        %v863 = vshrl.u32 %v862, 7
        %v864 = vsub.s32 0, %v863
        %v865 = vrot.slane %v777, %v864
        %v867 = vmul.f32 %v865, %v857
        %v868 = vmul.f32 %v865, %v858
        %v869 = vmul.f32 %v865, %v859
        %v870 = vmul.f32 %v865, %v860
        %v872 = vlaneseq
        %v873 = vshrl.u32 %v872, 7
        %v874 = vsub.s32 0, %v873
        %v875 = vrot.slane %v778, %v874
        %v877 = vadd.f32 %v867, %v875
        %v878 = vadd.f32 %v868, %v875
        %v879 = vadd.f32 %v869, %v875
        %v880 = vadd.f32 %v870, %v875
        %v881 = vld [vmem:[%s718] sm:$0xff]
        %v882 = vld [vmem:[%s718 + $0x8] sm:$0xff]
        %v883 = vld [vmem:[%s718 + $0x10] sm:$0xff]
        %v884 = vld [vmem:[%s718 + $0x18] sm:$0xff]
        %v885 = vld [vmem:[%s721] sm:$0x1]
        %v887 = vlaneseq
        %v888 = vshrl.u32 %v887, 7
        %v889 = vsub.s32 0, %v888
        %v890 = vrot.slane %v885, %v889
        %v893 = vsel %vm779, %v877, 0
        %v896 = vsel %vm779, %v878, 0
        %v899 = vsel %vm779, %v879, 0
        %v902 = vsel %vm779, %v880, 0
        %904 = vmatprep.subr.mxu0 0.0
        %905 = vmatpush1.msra.mxu0 0.0
        %906 = vmatprep.subr.mxu0 0.0
        %907 = vmatpush1.msra.mxu0 0.0
        %908 = vmatprep.subr.mxu0 0.0
        %909 = vmatpush1.msra.mxu0 0.0
        %910 = vmatprep.subr.mxu0 0.0
        %911 = vmatpush1.msra.mxu0 0.0
        %912 = vmatprep.subr.mxu0 0.0
        %913 = vmatpush1.msra.mxu0 0.0
        %914 = vmatprep.subr.mxu0 0.0
        %915 = vmatpush1.msra.mxu0 0.0
        %916 = vmatprep.subr.mxu0 0.0
        %917 = vmatpush1.msra.mxu0 0.0
        %918 = vmatprep.subr.mxu0 0.0
        %919 = vmatpush1.msra.mxu0 0.0
        %920 = vmatprep.subr.mxu0 0.0
        %921 = vmatpush1.msra.mxu0 0.0
        %922 = vmatprep.subr.mxu0 0.0
        %923 = vmatpush1.msra.mxu0 0.0
        %924 = vmatprep.subr.mxu0 0.0
        %925 = vmatpush1.msra.mxu0 0.0
        %926 = vmatprep.subr.mxu0 0.0
        %927 = vmatpush1.msra.mxu0 0.0
        %928 = vmatprep.subr.mxu0 0.0
        %929 = vmatpush1.msra.mxu0 %v884
        %930 = vmatprep.subr.mxu0 0.0
        %931 = vmatpush1.msra.mxu0 %v883
        %932 = vmatprep.subr.mxu0 0.0
        %933 = vmatpush1.msra.mxu0 %v882
        %934 = vmatprep.subr.mxu0 0.0
        %935 = vmatpush1.msra.mxu0 %v881
        %936 = vmatprep.subr.mxu0 0.0
        %937 = vmatpush2.msra.mxu0 0.0
        %938 = vmatprep.subr.mxu0 0.0
        %939 = vmatpush2.msra.mxu0 0.0
        %940 = vmatprep.subr.mxu0 0.0
        %941 = vmatpush2.msra.mxu0 0.0
        %942 = vmatprep.subr.mxu0 0.0
        %943 = vmatpush2.msra.mxu0 0.0
        %944 = vmatprep.subr.mxu0 0.0
        %945 = vmatpush2.msra.mxu0 0.0
        %946 = vmatprep.subr.mxu0 0.0
        %947 = vmatpush2.msra.mxu0 0.0
        %948 = vmatprep.subr.mxu0 0.0
        %949 = vmatpush2.msra.mxu0 0.0
        %950 = vmatprep.subr.mxu0 0.0
        %951 = vmatpush2.msra.mxu0 0.0
        %952 = vmatprep.subr.mxu0 0.0
        %953 = vmatpush2.msra.mxu0 0.0
        %954 = vmatprep.subr.mxu0 0.0
        %955 = vmatpush2.msra.mxu0 0.0
        %956 = vmatprep.subr.mxu0 0.0
        %957 = vmatpush2.msra.mxu0 0.0
        %958 = vmatprep.subr.mxu0 0.0
        %959 = vmatpush2.msra.mxu0 0.0
        %960 = vmatprep.subr.mxu0 0.0
        %961 = vmatpush2.msra.mxu0 0.0
        %962 = vmatprep.subr.mxu0 0.0
        %963 = vmatpush2.msra.mxu0 0.0
        %964 = vmatprep.subr.mxu0 0.0
        %965 = vmatpush2.msra.mxu0 0.0
        %966 = vmatprep.subr.mxu0 0.0
        %967 = vmatpush2.msra.mxu0 0.0
        %968 = vmatprep.mubr.f32.mxu0 0.0
        %969 = vmatmul.mubr.f32.gmra.mxu0 %v893
        %v970 = vpop.f32.mrf.mxu0
        %v971 = vadd.f32 %v890, %v970
        %v972 = vpop.f32.mrf.mxu0
        %973 = vmatprep.mubr.f32.mxu0 0.0
        %974 = vmatmul.mubr.f32.gmra.mxu0 %v896
        %v975 = vpop.f32.mrf.mxu0
        %v976 = vadd.f32 %v890, %v975
        %v977 = vpop.f32.mrf.mxu0
        %978 = vmatprep.mubr.f32.mxu0 0.0
        %979 = vmatmul.mubr.f32.gmra.mxu0 %v899
        %v980 = vpop.f32.mrf.mxu0
        %v981 = vadd.f32 %v890, %v980
        %v982 = vpop.f32.mrf.mxu0
        %983 = vmatprep.mubr.f32.mxu0 0.0
        %984 = vmatmul.mubr.f32.gmra.mxu0 %v902
        %v985 = vpop.f32.mrf.mxu0
        %v986 = vadd.f32 %v890, %v985
        %v987 = vpop.f32.mrf.mxu0
        %988 = vdwg.mxu0
        %993 = vrot.lane.b32.xlu0 %v971, 120
        %v994 = vpop.permute.xlu0 %993
        %995 = vrot.lane.b32.xlu0 %v976, 120
        %v996 = vpop.permute.xlu0 %995
        %997 = vrot.lane.b32.xlu0 %v981, 120
        %v998 = vpop.permute.xlu0 %997
        %999 = vrot.lane.b32.xlu0 %v986, 120
        %v1000 = vpop.permute.xlu0 %999
        %1001 = vrot.lane.b32.xlu0 %v971, 112
        %v1002 = vpop.permute.xlu0 %1001
        %1003 = vrot.lane.b32.xlu0 %v976, 112
        %v1004 = vpop.permute.xlu0 %1003
        %1005 = vrot.lane.b32.xlu0 %v981, 112
        %v1006 = vpop.permute.xlu0 %1005
        %1007 = vrot.lane.b32.xlu0 %v986, 112
        %v1008 = vpop.permute.xlu0 %1007
        %1009 = vrot.lane.b32.xlu0 %v971, 104
        %v1010 = vpop.permute.xlu0 %1009
        %1011 = vrot.lane.b32.xlu0 %v976, 104
        %v1012 = vpop.permute.xlu0 %1011
        %1013 = vrot.lane.b32.xlu0 %v981, 104
        %v1014 = vpop.permute.xlu0 %1013
        %1015 = vrot.lane.b32.xlu0 %v986, 104
        %v1016 = vpop.permute.xlu0 %1015
        %1017 = vrot.lane.b32.xlu0 %v971, 96
        %v1018 = vpop.permute.xlu0 %1017
        %1019 = vrot.lane.b32.xlu0 %v976, 96
        %v1020 = vpop.permute.xlu0 %1019
        %vm1021 = vcmask 64512
        %v1022 = vsel %vm1021, %v971, 0
        %v1024 = vsel %vm1021, %v976, 0
        %v1026 = vsel %vm1021, %v1018, 0
        %v1028 = vsel %vm1021, %v1020, 0
        %1030 = vmatprep.subr.mxu0 0.0
        %1031 = vmatpush1.xpose.msra.mxu0 0.0
        %1032 = vmatprep.subr.mxu0 0.0
        %1033 = vmatpush1.xpose.msra.mxu0 0.0
        %1034 = vmatprep.subr.mxu0 0.0
        %1035 = vmatpush1.xpose.msra.mxu0 0.0
        %1036 = vmatprep.subr.mxu0 0.0
        %1037 = vmatpush1.xpose.msra.mxu0 0.0
        %1038 = vmatprep.subr.mxu0 0.0
        %1039 = vmatpush1.xpose.msra.mxu0 0.0
        %1040 = vmatprep.subr.mxu0 0.0
        %1041 = vmatpush1.xpose.msra.mxu0 0.0
        %1042 = vmatprep.subr.mxu0 0.0
        %1043 = vmatpush1.xpose.msra.mxu0 0.0
        %1044 = vmatprep.subr.mxu0 0.0
        %1045 = vmatpush1.xpose.msra.mxu0 0.0
        %1046 = vmatprep.subr.mxu0 0.0
        %1047 = vmatpush1.xpose.msra.mxu0 0.0
        %1048 = vmatprep.subr.mxu0 0.0
        %1049 = vmatpush1.xpose.msra.mxu0 0.0
        %1050 = vmatprep.subr.mxu0 0.0
        %1051 = vmatpush1.xpose.msra.mxu0 0.0
        %1052 = vmatprep.subr.mxu0 0.0
        %1053 = vmatpush1.xpose.msra.mxu0 0.0
        %1054 = vmatprep.subr.mxu0 0.0
        %1055 = vmatpush1.xpose.msra.mxu0 0.0
        %1056 = vmatprep.subr.mxu0 0.0
        %1057 = vmatpush1.xpose.msra.mxu0 0.0
        %1058 = vmatprep.subr.mxu0 0.0
        %1059 = vmatpush1.xpose.msra.mxu0 %v1028
        %1060 = vmatprep.subr.mxu0 0.0
        %1061 = vmatpush1.xpose.msra.mxu0 %v1026
        %1062 = vmatprep.subr.mxu0 0.0
        %1063 = vmatpush2.xpose.msra.mxu0 0.0
        %1064 = vmatprep.subr.mxu0 0.0
        %1065 = vmatpush2.xpose.msra.mxu0 0.0
        %1066 = vmatprep.subr.mxu0 0.0
        %1067 = vmatpush2.xpose.msra.mxu0 0.0
        %1068 = vmatprep.subr.mxu0 0.0
        %1069 = vmatpush2.xpose.msra.mxu0 0.0
        %1070 = vmatprep.subr.mxu0 0.0
        %1071 = vmatpush2.xpose.msra.mxu0 0.0
        %1072 = vmatprep.subr.mxu0 0.0
        %1073 = vmatpush2.xpose.msra.mxu0 0.0
        %1074 = vmatprep.subr.mxu0 0.0
        %1075 = vmatpush2.xpose.msra.mxu0 0.0
        %1076 = vmatprep.subr.mxu0 0.0
        %1077 = vmatpush2.xpose.msra.mxu0 0.0
        %1078 = vmatprep.subr.mxu0 0.0
        %1079 = vmatpush2.xpose.msra.mxu0 0.0
        %1080 = vmatprep.subr.mxu0 0.0
        %1081 = vmatpush2.xpose.msra.mxu0 0.0
        %1082 = vmatprep.subr.mxu0 0.0
        %1083 = vmatpush2.xpose.msra.mxu0 0.0
        %1084 = vmatprep.subr.mxu0 0.0
        %1085 = vmatpush2.xpose.msra.mxu0 0.0
        %1086 = vmatprep.subr.mxu0 0.0
        %1087 = vmatpush2.xpose.msra.mxu0 0.0
        %1088 = vmatprep.subr.mxu0 0.0
        %1089 = vmatpush2.xpose.msra.mxu0 0.0
        %1090 = vmatprep.subr.mxu0 0.0
        %1091 = vmatpush2.xpose.msra.mxu0 0.0
        %1092 = vmatprep.subr.mxu0 0.0
        %1093 = vmatpush2.xpose.msra.mxu0 0.0
        %1094 = vmatprep.mubr.f32.mxu0 0.0
        %1095 = vmatmul.mubr.f32.gmra.mxu0 %v1022
        %v1096 = vpop.f32.mrf.mxu0
        %v1097 = vadd.f32 0.0, %v1096
        %v1098 = vpop.f32.mrf.mxu0
        %1099 = vmatprep.mubr.f32.mxu0 0.0
        %1100 = vmatmul.mubr.f32.gmra.mxu0 %v1024
        %v1101 = vpop.f32.mrf.mxu0
        %v1102 = vadd.f32 0.0, %v1101
        %v1103 = vpop.f32.mrf.mxu0
        %1104 = vdwg.mxu0
        %1105 = vrot.lane.b32.xlu0 %v981, 96
        %v1106 = vpop.permute.xlu0 %1105
        %1107 = vrot.lane.b32.xlu0 %v986, 96
        %v1108 = vpop.permute.xlu0 %1107
        %v1109 = vsel %vm1021, %v981, 0
        %v1111 = vsel %vm1021, %v986, 0
        %v1113 = vsel %vm1021, %v1106, 0
        %v1115 = vsel %vm1021, %v1108, 0
        %1117 = vmatprep.subr.mxu0 0.0
        %1118 = vmatpush1.xpose.msra.mxu0 0.0
        %1119 = vmatprep.subr.mxu0 0.0
        %1120 = vmatpush1.xpose.msra.mxu0 0.0
        %1121 = vmatprep.subr.mxu0 0.0
        %1122 = vmatpush1.xpose.msra.mxu0 0.0
        %1123 = vmatprep.subr.mxu0 0.0
        %1124 = vmatpush1.xpose.msra.mxu0 0.0
        %1125 = vmatprep.subr.mxu0 0.0
        %1126 = vmatpush1.xpose.msra.mxu0 0.0
        %1127 = vmatprep.subr.mxu0 0.0
        %1128 = vmatpush1.xpose.msra.mxu0 0.0
        %1129 = vmatprep.subr.mxu0 0.0
        %1130 = vmatpush1.xpose.msra.mxu0 0.0
        %1131 = vmatprep.subr.mxu0 0.0
        %1132 = vmatpush1.xpose.msra.mxu0 0.0
        %1133 = vmatprep.subr.mxu0 0.0
        %1134 = vmatpush1.xpose.msra.mxu0 0.0
        %1135 = vmatprep.subr.mxu0 0.0
        %1136 = vmatpush1.xpose.msra.mxu0 0.0
        %1137 = vmatprep.subr.mxu0 0.0
        %1138 = vmatpush1.xpose.msra.mxu0 0.0
        %1139 = vmatprep.subr.mxu0 0.0
        %1140 = vmatpush1.xpose.msra.mxu0 0.0
        %1141 = vmatprep.subr.mxu0 0.0
        %1142 = vmatpush1.xpose.msra.mxu0 0.0
        %1143 = vmatprep.subr.mxu0 0.0
        %1144 = vmatpush1.xpose.msra.mxu0 0.0
        %1145 = vmatprep.subr.mxu0 0.0
        %1146 = vmatpush1.xpose.msra.mxu0 %v1115
        %1147 = vmatprep.subr.mxu0 0.0
        %1148 = vmatpush1.xpose.msra.mxu0 %v1113
        %1149 = vmatprep.subr.mxu0 0.0
        %1150 = vmatpush2.xpose.msra.mxu0 0.0
        %1151 = vmatprep.subr.mxu0 0.0
        %1152 = vmatpush2.xpose.msra.mxu0 0.0
        %1153 = vmatprep.subr.mxu0 0.0
        %1154 = vmatpush2.xpose.msra.mxu0 0.0
        %1155 = vmatprep.subr.mxu0 0.0
        %1156 = vmatpush2.xpose.msra.mxu0 0.0
        %1157 = vmatprep.subr.mxu0 0.0
        %1158 = vmatpush2.xpose.msra.mxu0 0.0
        %1159 = vmatprep.subr.mxu0 0.0
        %1160 = vmatpush2.xpose.msra.mxu0 0.0
        %1161 = vmatprep.subr.mxu0 0.0
        %1162 = vmatpush2.xpose.msra.mxu0 0.0
        %1163 = vmatprep.subr.mxu0 0.0
        %1164 = vmatpush2.xpose.msra.mxu0 0.0
        %1165 = vmatprep.subr.mxu0 0.0
        %1166 = vmatpush2.xpose.msra.mxu0 0.0
        %1167 = vmatprep.subr.mxu0 0.0
        %1168 = vmatpush2.xpose.msra.mxu0 0.0
        %1169 = vmatprep.subr.mxu0 0.0
        %1170 = vmatpush2.xpose.msra.mxu0 0.0
        %1171 = vmatprep.subr.mxu0 0.0
        %1172 = vmatpush2.xpose.msra.mxu0 0.0
        %1173 = vmatprep.subr.mxu0 0.0
        %1174 = vmatpush2.xpose.msra.mxu0 0.0
        %1175 = vmatprep.subr.mxu0 0.0
        %1176 = vmatpush2.xpose.msra.mxu0 0.0
        %1177 = vmatprep.subr.mxu0 0.0
        %1178 = vmatpush2.xpose.msra.mxu0 0.0
        %1179 = vmatprep.subr.mxu0 0.0
        %1180 = vmatpush2.xpose.msra.mxu0 0.0
        %1181 = vmatprep.mubr.f32.mxu0 0.0
        %1182 = vmatmul.mubr.f32.gmra.mxu0 %v1109
        %v1183 = vpop.f32.mrf.mxu0
        %v1184 = vadd.f32 0.0, %v1183
        %v1185 = vpop.f32.mrf.mxu0
        %1186 = vmatprep.mubr.f32.mxu0 0.0
        %1187 = vmatmul.mubr.f32.gmra.mxu0 %v1111
        %v1188 = vpop.f32.mrf.mxu0
        %v1189 = vadd.f32 0.0, %v1188
        %v1190 = vpop.f32.mrf.mxu0
        %1191 = vdwg.mxu0
        %1192 = vrot.lane.b32.xlu0 %v994, 96
        %v1193 = vpop.permute.xlu0 %1192
        %1194 = vrot.lane.b32.xlu0 %v996, 96
        %v1195 = vpop.permute.xlu0 %1194
        %v1196 = vsel %vm1021, %v994, 0
        %v1198 = vsel %vm1021, %v996, 0
        %v1200 = vsel %vm1021, %v1193, 0
        %v1202 = vsel %vm1021, %v1195, 0
        %1204 = vmatprep.subr.mxu0 0.0
        %1205 = vmatpush1.xpose.msra.mxu0 0.0
        %1206 = vmatprep.subr.mxu0 0.0
        %1207 = vmatpush1.xpose.msra.mxu0 0.0
        %1208 = vmatprep.subr.mxu0 0.0
        %1209 = vmatpush1.xpose.msra.mxu0 0.0
        %1210 = vmatprep.subr.mxu0 0.0
        %1211 = vmatpush1.xpose.msra.mxu0 0.0
        %1212 = vmatprep.subr.mxu0 0.0
        %1213 = vmatpush1.xpose.msra.mxu0 0.0
        %1214 = vmatprep.subr.mxu0 0.0
        %1215 = vmatpush1.xpose.msra.mxu0 0.0
        %1216 = vmatprep.subr.mxu0 0.0
        %1217 = vmatpush1.xpose.msra.mxu0 0.0
        %1218 = vmatprep.subr.mxu0 0.0
        %1219 = vmatpush1.xpose.msra.mxu0 0.0
        %1220 = vmatprep.subr.mxu0 0.0
        %1221 = vmatpush1.xpose.msra.mxu0 0.0
        %1222 = vmatprep.subr.mxu0 0.0
        %1223 = vmatpush1.xpose.msra.mxu0 0.0
        %1224 = vmatprep.subr.mxu0 0.0
        %1225 = vmatpush1.xpose.msra.mxu0 0.0
        %1226 = vmatprep.subr.mxu0 0.0
        %1227 = vmatpush1.xpose.msra.mxu0 0.0
        %1228 = vmatprep.subr.mxu0 0.0
        %1229 = vmatpush1.xpose.msra.mxu0 0.0
        %1230 = vmatprep.subr.mxu0 0.0
        %1231 = vmatpush1.xpose.msra.mxu0 0.0
        %1232 = vmatprep.subr.mxu0 0.0
        %1233 = vmatpush1.xpose.msra.mxu0 %v1202
        %1234 = vmatprep.subr.mxu0 0.0
        %1235 = vmatpush1.xpose.msra.mxu0 %v1200
        %1236 = vmatprep.subr.mxu0 0.0
        %1237 = vmatpush2.xpose.msra.mxu0 0.0
        %1238 = vmatprep.subr.mxu0 0.0
        %1239 = vmatpush2.xpose.msra.mxu0 0.0
        %1240 = vmatprep.subr.mxu0 0.0
        %1241 = vmatpush2.xpose.msra.mxu0 0.0
        %1242 = vmatprep.subr.mxu0 0.0
        %1243 = vmatpush2.xpose.msra.mxu0 0.0
        %1244 = vmatprep.subr.mxu0 0.0
        %1245 = vmatpush2.xpose.msra.mxu0 0.0
        %1246 = vmatprep.subr.mxu0 0.0
        %1247 = vmatpush2.xpose.msra.mxu0 0.0
        %1248 = vmatprep.subr.mxu0 0.0
        %1249 = vmatpush2.xpose.msra.mxu0 0.0
        %1250 = vmatprep.subr.mxu0 0.0
        %1251 = vmatpush2.xpose.msra.mxu0 0.0
        %1252 = vmatprep.subr.mxu0 0.0
        %1253 = vmatpush2.xpose.msra.mxu0 0.0
        %1254 = vmatprep.subr.mxu0 0.0
        %1255 = vmatpush2.xpose.msra.mxu0 0.0
        %1256 = vmatprep.subr.mxu0 0.0
        %1257 = vmatpush2.xpose.msra.mxu0 0.0
        %1258 = vmatprep.subr.mxu0 0.0
        %1259 = vmatpush2.xpose.msra.mxu0 0.0
        %1260 = vmatprep.subr.mxu0 0.0
        %1261 = vmatpush2.xpose.msra.mxu0 0.0
        %1262 = vmatprep.subr.mxu0 0.0
        %1263 = vmatpush2.xpose.msra.mxu0 0.0
        %1264 = vmatprep.subr.mxu0 0.0
        %1265 = vmatpush2.xpose.msra.mxu0 0.0
        %1266 = vmatprep.subr.mxu0 0.0
        %1267 = vmatpush2.xpose.msra.mxu0 0.0
        %1268 = vmatprep.mubr.f32.mxu0 0.0
        %1269 = vmatmul.mubr.f32.gmra.mxu0 %v1196
        %v1270 = vpop.f32.mrf.mxu0
        %v1271 = vadd.f32 0.0, %v1270
        %v1272 = vpop.f32.mrf.mxu0
        %1273 = vmatprep.mubr.f32.mxu0 0.0
        %1274 = vmatmul.mubr.f32.gmra.mxu0 %v1198
        %v1275 = vpop.f32.mrf.mxu0
        %v1276 = vadd.f32 0.0, %v1275
        %v1277 = vpop.f32.mrf.mxu0
        %1278 = vdwg.mxu0
        %1279 = vrot.lane.b32.xlu0 %v998, 96
        %v1280 = vpop.permute.xlu0 %1279
        %1281 = vrot.lane.b32.xlu0 %v1000, 96
        %v1282 = vpop.permute.xlu0 %1281
        %v1283 = vsel %vm1021, %v998, 0
        %v1285 = vsel %vm1021, %v1000, 0
        %v1287 = vsel %vm1021, %v1280, 0
        %v1289 = vsel %vm1021, %v1282, 0
        %1291 = vmatprep.subr.mxu0 0.0
        %1292 = vmatpush1.xpose.msra.mxu0 0.0
        %1293 = vmatprep.subr.mxu0 0.0
        %1294 = vmatpush1.xpose.msra.mxu0 0.0
        %1295 = vmatprep.subr.mxu0 0.0
        %1296 = vmatpush1.xpose.msra.mxu0 0.0
        %1297 = vmatprep.subr.mxu0 0.0
        %1298 = vmatpush1.xpose.msra.mxu0 0.0
        %1299 = vmatprep.subr.mxu0 0.0
        %1300 = vmatpush1.xpose.msra.mxu0 0.0
        %1301 = vmatprep.subr.mxu0 0.0
        %1302 = vmatpush1.xpose.msra.mxu0 0.0
        %1303 = vmatprep.subr.mxu0 0.0
        %1304 = vmatpush1.xpose.msra.mxu0 0.0
        %1305 = vmatprep.subr.mxu0 0.0
        %1306 = vmatpush1.xpose.msra.mxu0 0.0
        %1307 = vmatprep.subr.mxu0 0.0
        %1308 = vmatpush1.xpose.msra.mxu0 0.0
        %1309 = vmatprep.subr.mxu0 0.0
        %1310 = vmatpush1.xpose.msra.mxu0 0.0
        %1311 = vmatprep.subr.mxu0 0.0
        %1312 = vmatpush1.xpose.msra.mxu0 0.0
        %1313 = vmatprep.subr.mxu0 0.0
        %1314 = vmatpush1.xpose.msra.mxu0 0.0
        %1315 = vmatprep.subr.mxu0 0.0
        %1316 = vmatpush1.xpose.msra.mxu0 0.0
        %1317 = vmatprep.subr.mxu0 0.0
        %1318 = vmatpush1.xpose.msra.mxu0 0.0
        %1319 = vmatprep.subr.mxu0 0.0
        %1320 = vmatpush1.xpose.msra.mxu0 %v1289
        %1321 = vmatprep.subr.mxu0 0.0
        %1322 = vmatpush1.xpose.msra.mxu0 %v1287
        %1323 = vmatprep.subr.mxu0 0.0
        %1324 = vmatpush2.xpose.msra.mxu0 0.0
        %1325 = vmatprep.subr.mxu0 0.0
        %1326 = vmatpush2.xpose.msra.mxu0 0.0
        %1327 = vmatprep.subr.mxu0 0.0
        %1328 = vmatpush2.xpose.msra.mxu0 0.0
        %1329 = vmatprep.subr.mxu0 0.0
        %1330 = vmatpush2.xpose.msra.mxu0 0.0
        %1331 = vmatprep.subr.mxu0 0.0
        %1332 = vmatpush2.xpose.msra.mxu0 0.0
        %1333 = vmatprep.subr.mxu0 0.0
        %1334 = vmatpush2.xpose.msra.mxu0 0.0
        %1335 = vmatprep.subr.mxu0 0.0
        %1336 = vmatpush2.xpose.msra.mxu0 0.0
        %1337 = vmatprep.subr.mxu0 0.0
        %1338 = vmatpush2.xpose.msra.mxu0 0.0
        %1339 = vmatprep.subr.mxu0 0.0
        %1340 = vmatpush2.xpose.msra.mxu0 0.0
        %1341 = vmatprep.subr.mxu0 0.0
        %1342 = vmatpush2.xpose.msra.mxu0 0.0
        %1343 = vmatprep.subr.mxu0 0.0
        %1344 = vmatpush2.xpose.msra.mxu0 0.0
        %1345 = vmatprep.subr.mxu0 0.0
        %1346 = vmatpush2.xpose.msra.mxu0 0.0
        %1347 = vmatprep.subr.mxu0 0.0
        %1348 = vmatpush2.xpose.msra.mxu0 0.0
        %1349 = vmatprep.subr.mxu0 0.0
        %1350 = vmatpush2.xpose.msra.mxu0 0.0
        %1351 = vmatprep.subr.mxu0 0.0
        %1352 = vmatpush2.xpose.msra.mxu0 0.0
        %1353 = vmatprep.subr.mxu0 0.0
        %1354 = vmatpush2.xpose.msra.mxu0 0.0
        %1355 = vmatprep.mubr.f32.mxu0 0.0
        %1356 = vmatmul.mubr.f32.gmra.mxu0 %v1283
        %v1357 = vpop.f32.mrf.mxu0
        %v1358 = vadd.f32 0.0, %v1357
        %v1359 = vpop.f32.mrf.mxu0
        %1360 = vmatprep.mubr.f32.mxu0 0.0
        %1361 = vmatmul.mubr.f32.gmra.mxu0 %v1285
        %v1362 = vpop.f32.mrf.mxu0
        %v1363 = vadd.f32 0.0, %v1362
        %v1364 = vpop.f32.mrf.mxu0
        %1365 = vdwg.mxu0
        %1366 = vrot.lane.b32.xlu0 %v1002, 96
        %v1367 = vpop.permute.xlu0 %1366
        %1368 = vrot.lane.b32.xlu0 %v1004, 96
        %v1369 = vpop.permute.xlu0 %1368
        %v1370 = vsel %vm1021, %v1002, 0
        %v1372 = vsel %vm1021, %v1004, 0
        %v1374 = vsel %vm1021, %v1367, 0
        %v1376 = vsel %vm1021, %v1369, 0
        %1378 = vmatprep.subr.mxu0 0.0
        %1379 = vmatpush1.xpose.msra.mxu0 0.0
        %1380 = vmatprep.subr.mxu0 0.0
        %1381 = vmatpush1.xpose.msra.mxu0 0.0
        %1382 = vmatprep.subr.mxu0 0.0
        %1383 = vmatpush1.xpose.msra.mxu0 0.0
        %1384 = vmatprep.subr.mxu0 0.0
        %1385 = vmatpush1.xpose.msra.mxu0 0.0
        %1386 = vmatprep.subr.mxu0 0.0
        %1387 = vmatpush1.xpose.msra.mxu0 0.0
        %1388 = vmatprep.subr.mxu0 0.0
        %1389 = vmatpush1.xpose.msra.mxu0 0.0
        %1390 = vmatprep.subr.mxu0 0.0
        %1391 = vmatpush1.xpose.msra.mxu0 0.0
        %1392 = vmatprep.subr.mxu0 0.0
        %1393 = vmatpush1.xpose.msra.mxu0 0.0
        %1394 = vmatprep.subr.mxu0 0.0
        %1395 = vmatpush1.xpose.msra.mxu0 0.0
        %1396 = vmatprep.subr.mxu0 0.0
        %1397 = vmatpush1.xpose.msra.mxu0 0.0
        %1398 = vmatprep.subr.mxu0 0.0
        %1399 = vmatpush1.xpose.msra.mxu0 0.0
        %1400 = vmatprep.subr.mxu0 0.0
        %1401 = vmatpush1.xpose.msra.mxu0 0.0
        %1402 = vmatprep.subr.mxu0 0.0
        %1403 = vmatpush1.xpose.msra.mxu0 0.0
        %1404 = vmatprep.subr.mxu0 0.0
        %1405 = vmatpush1.xpose.msra.mxu0 0.0
        %1406 = vmatprep.subr.mxu0 0.0
        %1407 = vmatpush1.xpose.msra.mxu0 %v1376
        %1408 = vmatprep.subr.mxu0 0.0
        %1409 = vmatpush1.xpose.msra.mxu0 %v1374
        %1410 = vmatprep.subr.mxu0 0.0
        %1411 = vmatpush2.xpose.msra.mxu0 0.0
        %1412 = vmatprep.subr.mxu0 0.0
        %1413 = vmatpush2.xpose.msra.mxu0 0.0
        %1414 = vmatprep.subr.mxu0 0.0
        %1415 = vmatpush2.xpose.msra.mxu0 0.0
        %1416 = vmatprep.subr.mxu0 0.0
        %1417 = vmatpush2.xpose.msra.mxu0 0.0
        %1418 = vmatprep.subr.mxu0 0.0
        %1419 = vmatpush2.xpose.msra.mxu0 0.0
        %1420 = vmatprep.subr.mxu0 0.0
        %1421 = vmatpush2.xpose.msra.mxu0 0.0
        %1422 = vmatprep.subr.mxu0 0.0
        %1423 = vmatpush2.xpose.msra.mxu0 0.0
        %1424 = vmatprep.subr.mxu0 0.0
        %1425 = vmatpush2.xpose.msra.mxu0 0.0
        %1426 = vmatprep.subr.mxu0 0.0
        %1427 = vmatpush2.xpose.msra.mxu0 0.0
        %1428 = vmatprep.subr.mxu0 0.0
        %1429 = vmatpush2.xpose.msra.mxu0 0.0
        %1430 = vmatprep.subr.mxu0 0.0
        %1431 = vmatpush2.xpose.msra.mxu0 0.0
        %1432 = vmatprep.subr.mxu0 0.0
        %1433 = vmatpush2.xpose.msra.mxu0 0.0
        %1434 = vmatprep.subr.mxu0 0.0
        %1435 = vmatpush2.xpose.msra.mxu0 0.0
        %1436 = vmatprep.subr.mxu0 0.0
        %1437 = vmatpush2.xpose.msra.mxu0 0.0
        %1438 = vmatprep.subr.mxu0 0.0
        %1439 = vmatpush2.xpose.msra.mxu0 0.0
        %1440 = vmatprep.subr.mxu0 0.0
        %1441 = vmatpush2.xpose.msra.mxu0 0.0
        %1442 = vmatprep.mubr.f32.mxu0 0.0
        %1443 = vmatmul.mubr.f32.gmra.mxu0 %v1370
        %v1444 = vpop.f32.mrf.mxu0
        %v1445 = vadd.f32 0.0, %v1444
        %v1446 = vpop.f32.mrf.mxu0
        %1447 = vmatprep.mubr.f32.mxu0 0.0
        %1448 = vmatmul.mubr.f32.gmra.mxu0 %v1372
        %v1449 = vpop.f32.mrf.mxu0
        %v1450 = vadd.f32 0.0, %v1449
        %v1451 = vpop.f32.mrf.mxu0
        %1452 = vdwg.mxu0
        %1453 = vrot.lane.b32.xlu0 %v1006, 96
        %v1454 = vpop.permute.xlu0 %1453
        %1455 = vrot.lane.b32.xlu0 %v1008, 96
        %v1456 = vpop.permute.xlu0 %1455
        %v1457 = vsel %vm1021, %v1006, 0
        %v1459 = vsel %vm1021, %v1008, 0
        %v1461 = vsel %vm1021, %v1454, 0
        %v1463 = vsel %vm1021, %v1456, 0
        %1465 = vmatprep.subr.mxu0 0.0
        %1466 = vmatpush1.xpose.msra.mxu0 0.0
        %1467 = vmatprep.subr.mxu0 0.0
        %1468 = vmatpush1.xpose.msra.mxu0 0.0
        %1469 = vmatprep.subr.mxu0 0.0
        %1470 = vmatpush1.xpose.msra.mxu0 0.0
        %1471 = vmatprep.subr.mxu0 0.0
        %1472 = vmatpush1.xpose.msra.mxu0 0.0
        %1473 = vmatprep.subr.mxu0 0.0
        %1474 = vmatpush1.xpose.msra.mxu0 0.0
        %1475 = vmatprep.subr.mxu0 0.0
        %1476 = vmatpush1.xpose.msra.mxu0 0.0
        %1477 = vmatprep.subr.mxu0 0.0
        %1478 = vmatpush1.xpose.msra.mxu0 0.0
        %1479 = vmatprep.subr.mxu0 0.0
        %1480 = vmatpush1.xpose.msra.mxu0 0.0
        %1481 = vmatprep.subr.mxu0 0.0
        %1482 = vmatpush1.xpose.msra.mxu0 0.0
        %1483 = vmatprep.subr.mxu0 0.0
        %1484 = vmatpush1.xpose.msra.mxu0 0.0
        %1485 = vmatprep.subr.mxu0 0.0
        %1486 = vmatpush1.xpose.msra.mxu0 0.0
        %1487 = vmatprep.subr.mxu0 0.0
        %1488 = vmatpush1.xpose.msra.mxu0 0.0
        %1489 = vmatprep.subr.mxu0 0.0
        %1490 = vmatpush1.xpose.msra.mxu0 0.0
        %1491 = vmatprep.subr.mxu0 0.0
        %1492 = vmatpush1.xpose.msra.mxu0 0.0
        %1493 = vmatprep.subr.mxu0 0.0
        %1494 = vmatpush1.xpose.msra.mxu0 %v1463
        %1495 = vmatprep.subr.mxu0 0.0
        %1496 = vmatpush1.xpose.msra.mxu0 %v1461
        %1497 = vmatprep.subr.mxu0 0.0
        %1498 = vmatpush2.xpose.msra.mxu0 0.0
        %1499 = vmatprep.subr.mxu0 0.0
        %1500 = vmatpush2.xpose.msra.mxu0 0.0
        %1501 = vmatprep.subr.mxu0 0.0
        %1502 = vmatpush2.xpose.msra.mxu0 0.0
        %1503 = vmatprep.subr.mxu0 0.0
        %1504 = vmatpush2.xpose.msra.mxu0 0.0
        %1505 = vmatprep.subr.mxu0 0.0
        %1506 = vmatpush2.xpose.msra.mxu0 0.0
        %1507 = vmatprep.subr.mxu0 0.0
        %1508 = vmatpush2.xpose.msra.mxu0 0.0
        %1509 = vmatprep.subr.mxu0 0.0
        %1510 = vmatpush2.xpose.msra.mxu0 0.0
        %1511 = vmatprep.subr.mxu0 0.0
        %1512 = vmatpush2.xpose.msra.mxu0 0.0
        %1513 = vmatprep.subr.mxu0 0.0
        %1514 = vmatpush2.xpose.msra.mxu0 0.0
        %1515 = vmatprep.subr.mxu0 0.0
        %1516 = vmatpush2.xpose.msra.mxu0 0.0
        %1517 = vmatprep.subr.mxu0 0.0
        %1518 = vmatpush2.xpose.msra.mxu0 0.0
        %1519 = vmatprep.subr.mxu0 0.0
        %1520 = vmatpush2.xpose.msra.mxu0 0.0
        %1521 = vmatprep.subr.mxu0 0.0
        %1522 = vmatpush2.xpose.msra.mxu0 0.0
        %1523 = vmatprep.subr.mxu0 0.0
        %1524 = vmatpush2.xpose.msra.mxu0 0.0
        %1525 = vmatprep.subr.mxu0 0.0
        %1526 = vmatpush2.xpose.msra.mxu0 0.0
        %1527 = vmatprep.subr.mxu0 0.0
        %1528 = vmatpush2.xpose.msra.mxu0 0.0
        %1529 = vmatprep.mubr.f32.mxu0 0.0
        %1530 = vmatmul.mubr.f32.gmra.mxu0 %v1457
        %v1531 = vpop.f32.mrf.mxu0
        %v1532 = vadd.f32 0.0, %v1531
        %v1533 = vpop.f32.mrf.mxu0
        %1534 = vmatprep.mubr.f32.mxu0 0.0
        %1535 = vmatmul.mubr.f32.gmra.mxu0 %v1459
        %v1536 = vpop.f32.mrf.mxu0
        %v1537 = vadd.f32 0.0, %v1536
        %v1538 = vpop.f32.mrf.mxu0
        %1539 = vdwg.mxu0
        %1540 = vrot.lane.b32.xlu0 %v1010, 96
        %v1541 = vpop.permute.xlu0 %1540
        %1542 = vrot.lane.b32.xlu0 %v1012, 96
        %v1543 = vpop.permute.xlu0 %1542
        %v1544 = vsel %vm1021, %v1010, 0
        %v1546 = vsel %vm1021, %v1012, 0
        %v1548 = vsel %vm1021, %v1541, 0
        %v1550 = vsel %vm1021, %v1543, 0
        %1552 = vmatprep.subr.mxu0 0.0
        %1553 = vmatpush1.xpose.msra.mxu0 0.0
        %1554 = vmatprep.subr.mxu0 0.0
        %1555 = vmatpush1.xpose.msra.mxu0 0.0
        %1556 = vmatprep.subr.mxu0 0.0
        %1557 = vmatpush1.xpose.msra.mxu0 0.0
        %1558 = vmatprep.subr.mxu0 0.0
        %1559 = vmatpush1.xpose.msra.mxu0 0.0
        %1560 = vmatprep.subr.mxu0 0.0
        %1561 = vmatpush1.xpose.msra.mxu0 0.0
        %1562 = vmatprep.subr.mxu0 0.0
        %1563 = vmatpush1.xpose.msra.mxu0 0.0
        %1564 = vmatprep.subr.mxu0 0.0
        %1565 = vmatpush1.xpose.msra.mxu0 0.0
        %1566 = vmatprep.subr.mxu0 0.0
        %1567 = vmatpush1.xpose.msra.mxu0 0.0
        %1568 = vmatprep.subr.mxu0 0.0
        %1569 = vmatpush1.xpose.msra.mxu0 0.0
        %1570 = vmatprep.subr.mxu0 0.0
        %1571 = vmatpush1.xpose.msra.mxu0 0.0
        %1572 = vmatprep.subr.mxu0 0.0
        %1573 = vmatpush1.xpose.msra.mxu0 0.0
        %1574 = vmatprep.subr.mxu0 0.0
        %1575 = vmatpush1.xpose.msra.mxu0 0.0
        %1576 = vmatprep.subr.mxu0 0.0
        %1577 = vmatpush1.xpose.msra.mxu0 0.0
        %1578 = vmatprep.subr.mxu0 0.0
        %1579 = vmatpush1.xpose.msra.mxu0 0.0
        %1580 = vmatprep.subr.mxu0 0.0
        %1581 = vmatpush1.xpose.msra.mxu0 %v1550
        %1582 = vmatprep.subr.mxu0 0.0
        %1583 = vmatpush1.xpose.msra.mxu0 %v1548
        %1584 = vmatprep.subr.mxu0 0.0
        %1585 = vmatpush2.xpose.msra.mxu0 0.0
        %1586 = vmatprep.subr.mxu0 0.0
        %1587 = vmatpush2.xpose.msra.mxu0 0.0
        %1588 = vmatprep.subr.mxu0 0.0
        %1589 = vmatpush2.xpose.msra.mxu0 0.0
        %1590 = vmatprep.subr.mxu0 0.0
        %1591 = vmatpush2.xpose.msra.mxu0 0.0
        %1592 = vmatprep.subr.mxu0 0.0
        %1593 = vmatpush2.xpose.msra.mxu0 0.0
        %1594 = vmatprep.subr.mxu0 0.0
        %1595 = vmatpush2.xpose.msra.mxu0 0.0
        %1596 = vmatprep.subr.mxu0 0.0
        %1597 = vmatpush2.xpose.msra.mxu0 0.0
        %1598 = vmatprep.subr.mxu0 0.0
        %1599 = vmatpush2.xpose.msra.mxu0 0.0
        %1600 = vmatprep.subr.mxu0 0.0
        %1601 = vmatpush2.xpose.msra.mxu0 0.0
        %1602 = vmatprep.subr.mxu0 0.0
        %1603 = vmatpush2.xpose.msra.mxu0 0.0
        %1604 = vmatprep.subr.mxu0 0.0
        %1605 = vmatpush2.xpose.msra.mxu0 0.0
        %1606 = vmatprep.subr.mxu0 0.0
        %1607 = vmatpush2.xpose.msra.mxu0 0.0
        %1608 = vmatprep.subr.mxu0 0.0
        %1609 = vmatpush2.xpose.msra.mxu0 0.0
        %1610 = vmatprep.subr.mxu0 0.0
        %1611 = vmatpush2.xpose.msra.mxu0 0.0
        %1612 = vmatprep.subr.mxu0 0.0
        %1613 = vmatpush2.xpose.msra.mxu0 0.0
        %1614 = vmatprep.subr.mxu0 0.0
        %1615 = vmatpush2.xpose.msra.mxu0 0.0
        %1616 = vmatprep.mubr.f32.mxu0 0.0
        %1617 = vmatmul.mubr.f32.gmra.mxu0 %v1544
        %v1618 = vpop.f32.mrf.mxu0
        %v1619 = vadd.f32 0.0, %v1618
        %v1620 = vpop.f32.mrf.mxu0
        %1621 = vmatprep.mubr.f32.mxu0 0.0
        %1622 = vmatmul.mubr.f32.gmra.mxu0 %v1546
        %v1623 = vpop.f32.mrf.mxu0
        %v1624 = vadd.f32 0.0, %v1623
        %v1625 = vpop.f32.mrf.mxu0
        %1626 = vdwg.mxu0
        %1627 = vrot.lane.b32.xlu0 %v1014, 96
        %v1628 = vpop.permute.xlu0 %1627
        %1629 = vrot.lane.b32.xlu0 %v1016, 96
        %v1630 = vpop.permute.xlu0 %1629
        %v1631 = vsel %vm1021, %v1014, 0
        %v1633 = vsel %vm1021, %v1016, 0
        %v1635 = vsel %vm1021, %v1628, 0
        %v1637 = vsel %vm1021, %v1630, 0
        %1639 = vmatprep.subr.mxu0 0.0
        %1640 = vmatpush1.xpose.msra.mxu0 0.0
        %1641 = vmatprep.subr.mxu0 0.0
        %1642 = vmatpush1.xpose.msra.mxu0 0.0
        %1643 = vmatprep.subr.mxu0 0.0
        %1644 = vmatpush1.xpose.msra.mxu0 0.0
        %1645 = vmatprep.subr.mxu0 0.0
        %1646 = vmatpush1.xpose.msra.mxu0 0.0
        %1647 = vmatprep.subr.mxu0 0.0
        %1648 = vmatpush1.xpose.msra.mxu0 0.0
        %1649 = vmatprep.subr.mxu0 0.0
        %1650 = vmatpush1.xpose.msra.mxu0 0.0
        %1651 = vmatprep.subr.mxu0 0.0
        %1652 = vmatpush1.xpose.msra.mxu0 0.0
        %1653 = vmatprep.subr.mxu0 0.0
        %1654 = vmatpush1.xpose.msra.mxu0 0.0
        %1655 = vmatprep.subr.mxu0 0.0
        %1656 = vmatpush1.xpose.msra.mxu0 0.0
        %1657 = vmatprep.subr.mxu0 0.0
        %1658 = vmatpush1.xpose.msra.mxu0 0.0
        %1659 = vmatprep.subr.mxu0 0.0
        %1660 = vmatpush1.xpose.msra.mxu0 0.0
        %1661 = vmatprep.subr.mxu0 0.0
        %1662 = vmatpush1.xpose.msra.mxu0 0.0
        %1663 = vmatprep.subr.mxu0 0.0
        %1664 = vmatpush1.xpose.msra.mxu0 0.0
        %1665 = vmatprep.subr.mxu0 0.0
        %1666 = vmatpush1.xpose.msra.mxu0 0.0
        %1667 = vmatprep.subr.mxu0 0.0
        %1668 = vmatpush1.xpose.msra.mxu0 %v1637
        %1669 = vmatprep.subr.mxu0 0.0
        %1670 = vmatpush1.xpose.msra.mxu0 %v1635
        %1671 = vmatprep.subr.mxu0 0.0
        %1672 = vmatpush2.xpose.msra.mxu0 0.0
        %1673 = vmatprep.subr.mxu0 0.0
        %1674 = vmatpush2.xpose.msra.mxu0 0.0
        %1675 = vmatprep.subr.mxu0 0.0
        %1676 = vmatpush2.xpose.msra.mxu0 0.0
        %1677 = vmatprep.subr.mxu0 0.0
        %1678 = vmatpush2.xpose.msra.mxu0 0.0
        %1679 = vmatprep.subr.mxu0 0.0
        %1680 = vmatpush2.xpose.msra.mxu0 0.0
        %1681 = vmatprep.subr.mxu0 0.0
        %1682 = vmatpush2.xpose.msra.mxu0 0.0
        %1683 = vmatprep.subr.mxu0 0.0
        %1684 = vmatpush2.xpose.msra.mxu0 0.0
        %1685 = vmatprep.subr.mxu0 0.0
        %1686 = vmatpush2.xpose.msra.mxu0 0.0
        %1687 = vmatprep.subr.mxu0 0.0
        %1688 = vmatpush2.xpose.msra.mxu0 0.0
        %1689 = vmatprep.subr.mxu0 0.0
        %1690 = vmatpush2.xpose.msra.mxu0 0.0
        %1691 = vmatprep.subr.mxu0 0.0
        %1692 = vmatpush2.xpose.msra.mxu0 0.0
        %1693 = vmatprep.subr.mxu0 0.0
        %1694 = vmatpush2.xpose.msra.mxu0 0.0
        %1695 = vmatprep.subr.mxu0 0.0
        %1696 = vmatpush2.xpose.msra.mxu0 0.0
        %1697 = vmatprep.subr.mxu0 0.0
        %1698 = vmatpush2.xpose.msra.mxu0 0.0
        %1699 = vmatprep.subr.mxu0 0.0
        %1700 = vmatpush2.xpose.msra.mxu0 0.0
        %1701 = vmatprep.subr.mxu0 0.0
        %1702 = vmatpush2.xpose.msra.mxu0 0.0
        %1703 = vmatprep.mubr.f32.mxu0 0.0
        %1704 = vmatmul.mubr.f32.gmra.mxu0 %v1631
        %v1705 = vpop.f32.mrf.mxu0
        %v1706 = vadd.f32 0.0, %v1705
        %v1707 = vpop.f32.mrf.mxu0
        %1708 = vmatprep.mubr.f32.mxu0 0.0
        %1709 = vmatmul.mubr.f32.gmra.mxu0 %v1633
        %v1710 = vpop.f32.mrf.mxu0
        %v1711 = vadd.f32 0.0, %v1710
        %v1712 = vpop.f32.mrf.mxu0
        %1713 = vdwg.mxu0
        %v1714 = vmul.f32 %v1097, 0.35355338
        %v1715 = vmul.f32 %v1102, 0.35355338
        %v1716 = vmul.f32 %v1184, 0.35355338
        %v1717 = vmul.f32 %v1189, 0.35355338
        %v1718 = vmul.f32 %v1271, 0.35355338
        %v1719 = vmul.f32 %v1276, 0.35355338
        %v1720 = vmul.f32 %v1358, 0.35355338
        %v1721 = vmul.f32 %v1363, 0.35355338
        %v1722 = vmul.f32 %v1445, 0.35355338
        %v1723 = vmul.f32 %v1450, 0.35355338
        %v1724 = vmul.f32 %v1532, 0.35355338
        %v1725 = vmul.f32 %v1537, 0.35355338
        %v1726 = vmul.f32 %v1619, 0.35355338
        %v1727 = vmul.f32 %v1624, 0.35355338
        %v1728 = vmul.f32 %v1706, 0.35355338
        %v1729 = vmul.f32 %v1711, 0.35355338
        %v1730 = vlaneseq
        %v1731 = vshrl.u32 %v1730, 7
        %v1732 = vsub.s32 0, %v1731
        %v1733 = vrot.slane %v771, %v1732
        %v1734 = vlaneseq
        %v1735 = vshrl.u32 %v1734, 7
        %v1736 = vsub.s32 0, %v1735
        %v1737 = vrot.slane %v776, %v1736
        %v1738 = vadd.f32 %v1714, %v1733
        %v1739 = vadd.f32 %v1715, %v1733
        %v1740 = vadd.f32 %v1716, %v1737
        %v1741 = vadd.f32 %v1717, %v1737
        %v1742 = vadd.f32 %v1718, %v1733
        %v1743 = vadd.f32 %v1719, %v1733
        %v1744 = vadd.f32 %v1720, %v1737
        %v1745 = vadd.f32 %v1721, %v1737
        %v1746 = vadd.f32 %v1722, %v1733
        %v1747 = vadd.f32 %v1723, %v1733
        %v1748 = vadd.f32 %v1724, %v1737
        %v1749 = vadd.f32 %v1725, %v1737
        %v1750 = vadd.f32 %v1726, %v1733
        %v1751 = vadd.f32 %v1727, %v1733
        %v1752 = vadd.f32 %v1728, %v1737
        %v1753 = vadd.f32 %v1729, %v1737
        %vm1754 = vcmask 130048
        %v1755 = vsel %vm1754, %v1738, -inf
        %1756 = vmax.xlane.f32.xlu0 %v1755
        %v1757 = vpop.xlane.xlu0 %1756
        %v1758 = vsel %vm1754, %v1739, -inf
        %1759 = vmax.xlane.f32.xlu0 %v1758
        %v1760 = vpop.xlane.xlu0 %1759
        %v1761 = vsel %vm1754, %v1740, -inf
        %1762 = vmax.xlane.f32.xlu0 %v1761
        %v1763 = vpop.xlane.xlu0 %1762
        %v1764 = vsel %vm1754, %v1741, -inf
        %1765 = vmax.xlane.f32.xlu0 %v1764
        %v1766 = vpop.xlane.xlu0 %1765
        %v1767 = vsel %vm1754, %v1742, -inf
        %1768 = vmax.xlane.f32.xlu0 %v1767
        %v1769 = vpop.xlane.xlu0 %1768
        %v1770 = vsel %vm1754, %v1743, -inf
        %1771 = vmax.xlane.f32.xlu0 %v1770
        %v1772 = vpop.xlane.xlu0 %1771
        %v1773 = vsel %vm1754, %v1744, -inf
        %1774 = vmax.xlane.f32.xlu0 %v1773
        %v1775 = vpop.xlane.xlu0 %1774
        %v1776 = vsel %vm1754, %v1745, -inf
        %1777 = vmax.xlane.f32.xlu0 %v1776
        %v1778 = vpop.xlane.xlu0 %1777
        %v1779 = vsel %vm1754, %v1746, -inf
        %1780 = vmax.xlane.f32.xlu0 %v1779
        %v1781 = vpop.xlane.xlu0 %1780
        %v1782 = vsel %vm1754, %v1747, -inf
        %1783 = vmax.xlane.f32.xlu0 %v1782
        %v1784 = vpop.xlane.xlu0 %1783
        %v1785 = vsel %vm1754, %v1748, -inf
        %1786 = vmax.xlane.f32.xlu0 %v1785
        %v1787 = vpop.xlane.xlu0 %1786
        %v1788 = vsel %vm1754, %v1749, -inf
        %1789 = vmax.xlane.f32.xlu0 %v1788
        %v1790 = vpop.xlane.xlu0 %1789
        %v1791 = vsel %vm1754, %v1750, -inf
        %1792 = vmax.xlane.f32.xlu0 %v1791
        %v1793 = vpop.xlane.xlu0 %1792
        %v1794 = vsel %vm1754, %v1751, -inf
        %1795 = vmax.xlane.f32.xlu0 %v1794
        %v1796 = vpop.xlane.xlu0 %1795
        %v1797 = vsel %vm1754, %v1752, -inf
        %1798 = vmax.xlane.f32.xlu0 %v1797
        %v1799 = vpop.xlane.xlu0 %1798
        %v1800 = vsel %vm1754, %v1753, -inf
        %1801 = vmax.xlane.f32.xlu0 %v1800
        %v1802 = vpop.xlane.xlu0 %1801
        %v1803 = vsub.f32 %v1738, %v1757
        %v1804 = vsub.f32 %v1739, %v1760
        %v1805 = vsub.f32 %v1740, %v1763
        %v1806 = vsub.f32 %v1741, %v1766
        %v1807 = vsub.f32 %v1742, %v1769
        %v1808 = vsub.f32 %v1743, %v1772
        %v1809 = vsub.f32 %v1744, %v1775
        %v1810 = vsub.f32 %v1745, %v1778
        %v1811 = vsub.f32 %v1746, %v1781
        %v1812 = vsub.f32 %v1747, %v1784
        %v1813 = vsub.f32 %v1748, %v1787
        %v1814 = vsub.f32 %v1749, %v1790
        %v1815 = vsub.f32 %v1750, %v1793
        %v1816 = vsub.f32 %v1751, %v1796
        %v1817 = vsub.f32 %v1752, %v1799
        %v1818 = vsub.f32 %v1753, %v1802
        %v1819 = vmul.f32 %v1803, 1.442695
        %v1820 = vpow.pop %v1819
        %v1821 = vmul.f32 %v1804, 1.442695
        %v1822 = vpow.pop %v1821
        %v1823 = vmul.f32 %v1805, 1.442695
        %v1824 = vpow.pop %v1823
        %v1825 = vmul.f32 %v1806, 1.442695
        %v1826 = vpow.pop %v1825
        %v1827 = vmul.f32 %v1807, 1.442695
        %v1828 = vpow.pop %v1827
        %v1829 = vmul.f32 %v1808, 1.442695
        %v1830 = vpow.pop %v1829
        %v1831 = vmul.f32 %v1809, 1.442695
        %v1832 = vpow.pop %v1831
        %v1833 = vmul.f32 %v1810, 1.442695
        %v1834 = vpow.pop %v1833
        %v1835 = vmul.f32 %v1811, 1.442695
        %v1836 = vpow.pop %v1835
        %v1837 = vmul.f32 %v1812, 1.442695
        %v1838 = vpow.pop %v1837
        %v1839 = vmul.f32 %v1813, 1.442695
        %v1840 = vpow.pop %v1839
        %v1841 = vmul.f32 %v1814, 1.442695
        %v1842 = vpow.pop %v1841
        %v1843 = vmul.f32 %v1815, 1.442695
        %v1844 = vpow.pop %v1843
        %v1845 = vmul.f32 %v1816, 1.442695
        %v1846 = vpow.pop %v1845
        %v1847 = vmul.f32 %v1817, 1.442695
        %v1848 = vpow.pop %v1847
        %v1849 = vmul.f32 %v1818, 1.442695
        %v1850 = vpow.pop %v1849
        %v1851 = vsel %vm1754, %v1820, 0.0
        %1852 = vadd.xlane.f32.xlu0 %v1851
        %v1853 = vpop.xlane.xlu0 %1852
        %v1854 = vsel %vm1754, %v1822, 0.0
        %1855 = vadd.xlane.f32.xlu0 %v1854
        %v1856 = vpop.xlane.xlu0 %1855
        %v1857 = vsel %vm1754, %v1824, 0.0
        %1858 = vadd.xlane.f32.xlu0 %v1857
        %v1859 = vpop.xlane.xlu0 %1858
        %v1860 = vsel %vm1754, %v1826, 0.0
        %1861 = vadd.xlane.f32.xlu0 %v1860
        %v1862 = vpop.xlane.xlu0 %1861
        %v1863 = vsel %vm1754, %v1828, 0.0
        %1864 = vadd.xlane.f32.xlu0 %v1863
        %v1865 = vpop.xlane.xlu0 %1864
        %v1866 = vsel %vm1754, %v1830, 0.0
        %1867 = vadd.xlane.f32.xlu0 %v1866
        %v1868 = vpop.xlane.xlu0 %1867
        %v1869 = vsel %vm1754, %v1832, 0.0
        %1870 = vadd.xlane.f32.xlu0 %v1869
        %v1871 = vpop.xlane.xlu0 %1870
        %v1872 = vsel %vm1754, %v1834, 0.0
        %1873 = vadd.xlane.f32.xlu0 %v1872
        %v1874 = vpop.xlane.xlu0 %1873
        %v1875 = vsel %vm1754, %v1836, 0.0
        %1876 = vadd.xlane.f32.xlu0 %v1875
        %v1877 = vpop.xlane.xlu0 %1876
        %v1878 = vsel %vm1754, %v1838, 0.0
        %1879 = vadd.xlane.f32.xlu0 %v1878
        %v1880 = vpop.xlane.xlu0 %1879
        %v1881 = vsel %vm1754, %v1840, 0.0
        %1882 = vadd.xlane.f32.xlu0 %v1881
        %v1883 = vpop.xlane.xlu0 %1882
        %v1884 = vsel %vm1754, %v1842, 0.0
        %1885 = vadd.xlane.f32.xlu0 %v1884
        %v1886 = vpop.xlane.xlu0 %1885
        %v1887 = vsel %vm1754, %v1844, 0.0
        %1888 = vadd.xlane.f32.xlu0 %v1887
        %v1889 = vpop.xlane.xlu0 %1888
        %v1890 = vsel %vm1754, %v1846, 0.0
        %1891 = vadd.xlane.f32.xlu0 %v1890
        %v1892 = vpop.xlane.xlu0 %1891
        %v1893 = vsel %vm1754, %v1848, 0.0
        %1894 = vadd.xlane.f32.xlu0 %v1893
        %v1895 = vpop.xlane.xlu0 %1894
        %v1896 = vsel %vm1754, %v1850, 0.0
        %1897 = vadd.xlane.f32.xlu0 %v1896
        %v1898 = vpop.xlane.xlu0 %1897
        %v1899 = vrcp.pop %v1853
        %v1900 = vrcp.pop %v1856
        %v1901 = vrcp.pop %v1859
        %v1902 = vrcp.pop %v1862
        %v1903 = vrcp.pop %v1865
        %v1904 = vrcp.pop %v1868
        %v1905 = vrcp.pop %v1871
        %v1906 = vrcp.pop %v1874
        %v1907 = vrcp.pop %v1877
        %v1908 = vrcp.pop %v1880
        %v1909 = vrcp.pop %v1883
        %v1910 = vrcp.pop %v1886
        %v1911 = vrcp.pop %v1889
        %v1912 = vrcp.pop %v1892
        %v1913 = vrcp.pop %v1895
        %v1914 = vrcp.pop %v1898
        %v1915 = vmul.f32 %v1820, %v1899
        %v1916 = vmul.f32 %v1822, %v1900
        %v1917 = vmul.f32 %v1824, %v1901
        %v1918 = vmul.f32 %v1826, %v1902
        %v1919 = vmul.f32 %v1828, %v1903
        %v1920 = vmul.f32 %v1830, %v1904
        %v1921 = vmul.f32 %v1832, %v1905
        %v1922 = vmul.f32 %v1834, %v1906
        %v1923 = vmul.f32 %v1836, %v1907
        %v1924 = vmul.f32 %v1838, %v1908
        %v1925 = vmul.f32 %v1840, %v1909
        %v1926 = vmul.f32 %v1842, %v1910
        %v1927 = vmul.f32 %v1844, %v1911
        %v1928 = vmul.f32 %v1846, %v1912
        %v1929 = vmul.f32 %v1848, %v1913
        %v1930 = vmul.f32 %v1850, %v1914
        %1931 = vrot.lane.b32.xlu0 %v971, 64
        %v1932 = vpop.permute.xlu0 %1931
        %1933 = vrot.lane.b32.xlu0 %v976, 64
        %v1934 = vpop.permute.xlu0 %1933
        %v1938 = vsel %vm1754, %v1915, 0
        %v1941 = vsel %vm1754, %v1916, 0
        %1943 = vmatprep.subr.mxu0 0.0
        %1944 = vmatpush1.msra.mxu0 0.0
        %1945 = vmatprep.subr.mxu0 0.0
        %1946 = vmatpush1.msra.mxu0 0.0
        %1947 = vmatprep.subr.mxu0 0.0
        %1948 = vmatpush1.msra.mxu0 0.0
        %1949 = vmatprep.subr.mxu0 0.0
        %1950 = vmatpush1.msra.mxu0 0.0
        %1951 = vmatprep.subr.mxu0 0.0
        %1952 = vmatpush1.msra.mxu0 0.0
        %1953 = vmatprep.subr.mxu0 0.0
        %1954 = vmatpush1.msra.mxu0 0.0
        %1955 = vmatprep.subr.mxu0 0.0
        %1956 = vmatpush1.msra.mxu0 0.0
        %1957 = vmatprep.subr.mxu0 0.0
        %1958 = vmatpush1.msra.mxu0 0.0
        %1959 = vmatprep.subr.mxu0 0.0
        %1960 = vmatpush1.msra.mxu0 0.0
        %1961 = vmatprep.subr.mxu0 0.0
        %1962 = vmatpush1.msra.mxu0 0.0
        %1963 = vmatprep.subr.mxu0 0.0
        %1964 = vmatpush1.msra.mxu0 0.0
        %1965 = vmatprep.subr.mxu0 0.0
        %1966 = vmatpush1.msra.mxu0 0.0
        %1967 = vmatprep.subr.mxu0 0.0
        %1968 = vmatpush1.msra.mxu0 0.0
        %1969 = vmatprep.subr.mxu0 0.0
        %1970 = vmatpush1.msra.mxu0 0.0
        %1971 = vmatprep.subr.mxu0 0.0
        %1972 = vmatpush1.msra.mxu0 %v1934
        %1973 = vmatprep.subr.mxu0 0.0
        %1974 = vmatpush1.msra.mxu0 %v1932
        %1975 = vmatprep.subr.mxu0 0.0
        %1976 = vmatpush2.msra.mxu0 0.0
        %1977 = vmatprep.subr.mxu0 0.0
        %1978 = vmatpush2.msra.mxu0 0.0
        %1979 = vmatprep.subr.mxu0 0.0
        %1980 = vmatpush2.msra.mxu0 0.0
        %1981 = vmatprep.subr.mxu0 0.0
        %1982 = vmatpush2.msra.mxu0 0.0
        %1983 = vmatprep.subr.mxu0 0.0
        %1984 = vmatpush2.msra.mxu0 0.0
        %1985 = vmatprep.subr.mxu0 0.0
        %1986 = vmatpush2.msra.mxu0 0.0
        %1987 = vmatprep.subr.mxu0 0.0
        %1988 = vmatpush2.msra.mxu0 0.0
        %1989 = vmatprep.subr.mxu0 0.0
        %1990 = vmatpush2.msra.mxu0 0.0
        %1991 = vmatprep.subr.mxu0 0.0
        %1992 = vmatpush2.msra.mxu0 0.0
        %1993 = vmatprep.subr.mxu0 0.0
        %1994 = vmatpush2.msra.mxu0 0.0
        %1995 = vmatprep.subr.mxu0 0.0
        %1996 = vmatpush2.msra.mxu0 0.0
        %1997 = vmatprep.subr.mxu0 0.0
        %1998 = vmatpush2.msra.mxu0 0.0
        %1999 = vmatprep.subr.mxu0 0.0
        %2000 = vmatpush2.msra.mxu0 0.0
        %2001 = vmatprep.subr.mxu0 0.0
        %2002 = vmatpush2.msra.mxu0 0.0
        %2003 = vmatprep.subr.mxu0 0.0
        %2004 = vmatpush2.msra.mxu0 0.0
        %2005 = vmatprep.subr.mxu0 0.0
        %2006 = vmatpush2.msra.mxu0 0.0
        %2007 = vmatprep.mubr.f32.mxu0 0.0
        %2008 = vmatmul.mubr.f32.gmra.mxu0 %v1938
        %v2009 = vpop.f32.mrf.mxu0
        %v2010 = vadd.f32 0.0, %v2009
        %v2011 = vpop.f32.mrf.mxu0
        %2012 = vmatprep.mubr.f32.mxu0 0.0
        %2013 = vmatmul.mubr.f32.gmra.mxu0 %v1941
        %v2014 = vpop.f32.mrf.mxu0
        %v2015 = vadd.f32 0.0, %v2014
        %v2016 = vpop.f32.mrf.mxu0
        %2017 = vdwg.mxu0
        %2018 = vrot.lane.b32.xlu0 %v981, 64
        %v2019 = vpop.permute.xlu0 %2018
        %2020 = vrot.lane.b32.xlu0 %v986, 64
        %v2021 = vpop.permute.xlu0 %2020
        %v2025 = vsel %vm1754, %v1917, 0
        %v2028 = vsel %vm1754, %v1918, 0
        %2030 = vmatprep.subr.mxu0 0.0
        %2031 = vmatpush1.msra.mxu0 0.0
        %2032 = vmatprep.subr.mxu0 0.0
        %2033 = vmatpush1.msra.mxu0 0.0
        %2034 = vmatprep.subr.mxu0 0.0
        %2035 = vmatpush1.msra.mxu0 0.0
        %2036 = vmatprep.subr.mxu0 0.0
        %2037 = vmatpush1.msra.mxu0 0.0
        %2038 = vmatprep.subr.mxu0 0.0
        %2039 = vmatpush1.msra.mxu0 0.0
        %2040 = vmatprep.subr.mxu0 0.0
        %2041 = vmatpush1.msra.mxu0 0.0
        %2042 = vmatprep.subr.mxu0 0.0
        %2043 = vmatpush1.msra.mxu0 0.0
        %2044 = vmatprep.subr.mxu0 0.0
        %2045 = vmatpush1.msra.mxu0 0.0
        %2046 = vmatprep.subr.mxu0 0.0
        %2047 = vmatpush1.msra.mxu0 0.0
        %2048 = vmatprep.subr.mxu0 0.0
        %2049 = vmatpush1.msra.mxu0 0.0
        %2050 = vmatprep.subr.mxu0 0.0
        %2051 = vmatpush1.msra.mxu0 0.0
        %2052 = vmatprep.subr.mxu0 0.0
        %2053 = vmatpush1.msra.mxu0 0.0
        %2054 = vmatprep.subr.mxu0 0.0
        %2055 = vmatpush1.msra.mxu0 0.0
        %2056 = vmatprep.subr.mxu0 0.0
        %2057 = vmatpush1.msra.mxu0 0.0
        %2058 = vmatprep.subr.mxu0 0.0
        %2059 = vmatpush1.msra.mxu0 %v2021
        %2060 = vmatprep.subr.mxu0 0.0
        %2061 = vmatpush1.msra.mxu0 %v2019
        %2062 = vmatprep.subr.mxu0 0.0
        %2063 = vmatpush2.msra.mxu0 0.0
        %2064 = vmatprep.subr.mxu0 0.0
        %2065 = vmatpush2.msra.mxu0 0.0
        %2066 = vmatprep.subr.mxu0 0.0
        %2067 = vmatpush2.msra.mxu0 0.0
        %2068 = vmatprep.subr.mxu0 0.0
        %2069 = vmatpush2.msra.mxu0 0.0
        %2070 = vmatprep.subr.mxu0 0.0
        %2071 = vmatpush2.msra.mxu0 0.0
        %2072 = vmatprep.subr.mxu0 0.0
        %2073 = vmatpush2.msra.mxu0 0.0
        %2074 = vmatprep.subr.mxu0 0.0
        %2075 = vmatpush2.msra.mxu0 0.0
        %2076 = vmatprep.subr.mxu0 0.0
        %2077 = vmatpush2.msra.mxu0 0.0
        %2078 = vmatprep.subr.mxu0 0.0
        %2079 = vmatpush2.msra.mxu0 0.0
        %2080 = vmatprep.subr.mxu0 0.0
        %2081 = vmatpush2.msra.mxu0 0.0
        %2082 = vmatprep.subr.mxu0 0.0
        %2083 = vmatpush2.msra.mxu0 0.0
        %2084 = vmatprep.subr.mxu0 0.0
        %2085 = vmatpush2.msra.mxu0 0.0
        %2086 = vmatprep.subr.mxu0 0.0
        %2087 = vmatpush2.msra.mxu0 0.0
        %2088 = vmatprep.subr.mxu0 0.0
        %2089 = vmatpush2.msra.mxu0 0.0
        %2090 = vmatprep.subr.mxu0 0.0
        %2091 = vmatpush2.msra.mxu0 0.0
        %2092 = vmatprep.subr.mxu0 0.0
        %2093 = vmatpush2.msra.mxu0 0.0
        %2094 = vmatprep.mubr.f32.mxu0 0.0
        %2095 = vmatmul.mubr.f32.gmra.mxu0 %v2025
        %v2096 = vpop.f32.mrf.mxu0
        %v2097 = vadd.f32 0.0, %v2096
        %v2098 = vpop.f32.mrf.mxu0
        %2099 = vmatprep.mubr.f32.mxu0 0.0
        %2100 = vmatmul.mubr.f32.gmra.mxu0 %v2028
        %v2101 = vpop.f32.mrf.mxu0
        %v2102 = vadd.f32 0.0, %v2101
        %v2103 = vpop.f32.mrf.mxu0
        %2104 = vdwg.mxu0
        %2105 = vrot.lane.b32.xlu0 %v994, 64
        %v2106 = vpop.permute.xlu0 %2105
        %2107 = vrot.lane.b32.xlu0 %v996, 64
        %v2108 = vpop.permute.xlu0 %2107
        %v2112 = vsel %vm1754, %v1919, 0
        %v2115 = vsel %vm1754, %v1920, 0
        %2117 = vmatprep.subr.mxu0 0.0
        %2118 = vmatpush1.msra.mxu0 0.0
        %2119 = vmatprep.subr.mxu0 0.0
        %2120 = vmatpush1.msra.mxu0 0.0
        %2121 = vmatprep.subr.mxu0 0.0
        %2122 = vmatpush1.msra.mxu0 0.0
        %2123 = vmatprep.subr.mxu0 0.0
        %2124 = vmatpush1.msra.mxu0 0.0
        %2125 = vmatprep.subr.mxu0 0.0
        %2126 = vmatpush1.msra.mxu0 0.0
        %2127 = vmatprep.subr.mxu0 0.0
        %2128 = vmatpush1.msra.mxu0 0.0
        %2129 = vmatprep.subr.mxu0 0.0
        %2130 = vmatpush1.msra.mxu0 0.0
        %2131 = vmatprep.subr.mxu0 0.0
        %2132 = vmatpush1.msra.mxu0 0.0
        %2133 = vmatprep.subr.mxu0 0.0
        %2134 = vmatpush1.msra.mxu0 0.0
        %2135 = vmatprep.subr.mxu0 0.0
        %2136 = vmatpush1.msra.mxu0 0.0
        %2137 = vmatprep.subr.mxu0 0.0
        %2138 = vmatpush1.msra.mxu0 0.0
        %2139 = vmatprep.subr.mxu0 0.0
        %2140 = vmatpush1.msra.mxu0 0.0
        %2141 = vmatprep.subr.mxu0 0.0
        %2142 = vmatpush1.msra.mxu0 0.0
        %2143 = vmatprep.subr.mxu0 0.0
        %2144 = vmatpush1.msra.mxu0 0.0
        %2145 = vmatprep.subr.mxu0 0.0
        %2146 = vmatpush1.msra.mxu0 %v2108
        %2147 = vmatprep.subr.mxu0 0.0
        %2148 = vmatpush1.msra.mxu0 %v2106
        %2149 = vmatprep.subr.mxu0 0.0
        %2150 = vmatpush2.msra.mxu0 0.0
        %2151 = vmatprep.subr.mxu0 0.0
        %2152 = vmatpush2.msra.mxu0 0.0
        %2153 = vmatprep.subr.mxu0 0.0
        %2154 = vmatpush2.msra.mxu0 0.0
        %2155 = vmatprep.subr.mxu0 0.0
        %2156 = vmatpush2.msra.mxu0 0.0
        %2157 = vmatprep.subr.mxu0 0.0
        %2158 = vmatpush2.msra.mxu0 0.0
        %2159 = vmatprep.subr.mxu0 0.0
        %2160 = vmatpush2.msra.mxu0 0.0
        %2161 = vmatprep.subr.mxu0 0.0
        %2162 = vmatpush2.msra.mxu0 0.0
        %2163 = vmatprep.subr.mxu0 0.0
        %2164 = vmatpush2.msra.mxu0 0.0
        %2165 = vmatprep.subr.mxu0 0.0
        %2166 = vmatpush2.msra.mxu0 0.0
        %2167 = vmatprep.subr.mxu0 0.0
        %2168 = vmatpush2.msra.mxu0 0.0
        %2169 = vmatprep.subr.mxu0 0.0
        %2170 = vmatpush2.msra.mxu0 0.0
        %2171 = vmatprep.subr.mxu0 0.0
        %2172 = vmatpush2.msra.mxu0 0.0
        %2173 = vmatprep.subr.mxu0 0.0
        %2174 = vmatpush2.msra.mxu0 0.0
        %2175 = vmatprep.subr.mxu0 0.0
        %2176 = vmatpush2.msra.mxu0 0.0
        %2177 = vmatprep.subr.mxu0 0.0
        %2178 = vmatpush2.msra.mxu0 0.0
        %2179 = vmatprep.subr.mxu0 0.0
        %2180 = vmatpush2.msra.mxu0 0.0
        %2181 = vmatprep.mubr.f32.mxu0 0.0
        %2182 = vmatmul.mubr.f32.gmra.mxu0 %v2112
        %v2183 = vpop.f32.mrf.mxu0
        %v2184 = vadd.f32 0.0, %v2183
        %v2185 = vpop.f32.mrf.mxu0
        %2186 = vmatprep.mubr.f32.mxu0 0.0
        %2187 = vmatmul.mubr.f32.gmra.mxu0 %v2115
        %v2188 = vpop.f32.mrf.mxu0
        %v2189 = vadd.f32 0.0, %v2188
        %v2190 = vpop.f32.mrf.mxu0
        %2191 = vdwg.mxu0
        %2192 = vrot.lane.b32.xlu0 %v998, 64
        %v2193 = vpop.permute.xlu0 %2192
        %2194 = vrot.lane.b32.xlu0 %v1000, 64
        %v2195 = vpop.permute.xlu0 %2194
        %v2199 = vsel %vm1754, %v1921, 0
        %v2202 = vsel %vm1754, %v1922, 0
        %2204 = vmatprep.subr.mxu0 0.0
        %2205 = vmatpush1.msra.mxu0 0.0
        %2206 = vmatprep.subr.mxu0 0.0
        %2207 = vmatpush1.msra.mxu0 0.0
        %2208 = vmatprep.subr.mxu0 0.0
        %2209 = vmatpush1.msra.mxu0 0.0
        %2210 = vmatprep.subr.mxu0 0.0
        %2211 = vmatpush1.msra.mxu0 0.0
        %2212 = vmatprep.subr.mxu0 0.0
        %2213 = vmatpush1.msra.mxu0 0.0
        %2214 = vmatprep.subr.mxu0 0.0
        %2215 = vmatpush1.msra.mxu0 0.0
        %2216 = vmatprep.subr.mxu0 0.0
        %2217 = vmatpush1.msra.mxu0 0.0
        %2218 = vmatprep.subr.mxu0 0.0
        %2219 = vmatpush1.msra.mxu0 0.0
        %2220 = vmatprep.subr.mxu0 0.0
        %2221 = vmatpush1.msra.mxu0 0.0
        %2222 = vmatprep.subr.mxu0 0.0
        %2223 = vmatpush1.msra.mxu0 0.0
        %2224 = vmatprep.subr.mxu0 0.0
        %2225 = vmatpush1.msra.mxu0 0.0
        %2226 = vmatprep.subr.mxu0 0.0
        %2227 = vmatpush1.msra.mxu0 0.0
        %2228 = vmatprep.subr.mxu0 0.0
        %2229 = vmatpush1.msra.mxu0 0.0
        %2230 = vmatprep.subr.mxu0 0.0
        %2231 = vmatpush1.msra.mxu0 0.0
        %2232 = vmatprep.subr.mxu0 0.0
        %2233 = vmatpush1.msra.mxu0 %v2195
        %2234 = vmatprep.subr.mxu0 0.0
        %2235 = vmatpush1.msra.mxu0 %v2193
        %2236 = vmatprep.subr.mxu0 0.0
        %2237 = vmatpush2.msra.mxu0 0.0
        %2238 = vmatprep.subr.mxu0 0.0
        %2239 = vmatpush2.msra.mxu0 0.0
        %2240 = vmatprep.subr.mxu0 0.0
        %2241 = vmatpush2.msra.mxu0 0.0
        %2242 = vmatprep.subr.mxu0 0.0
        %2243 = vmatpush2.msra.mxu0 0.0
        %2244 = vmatprep.subr.mxu0 0.0
        %2245 = vmatpush2.msra.mxu0 0.0
        %2246 = vmatprep.subr.mxu0 0.0
        %2247 = vmatpush2.msra.mxu0 0.0
        %2248 = vmatprep.subr.mxu0 0.0
        %2249 = vmatpush2.msra.mxu0 0.0
        %2250 = vmatprep.subr.mxu0 0.0
        %2251 = vmatpush2.msra.mxu0 0.0
        %2252 = vmatprep.subr.mxu0 0.0
        %2253 = vmatpush2.msra.mxu0 0.0
        %2254 = vmatprep.subr.mxu0 0.0
        %2255 = vmatpush2.msra.mxu0 0.0
        %2256 = vmatprep.subr.mxu0 0.0
        %2257 = vmatpush2.msra.mxu0 0.0
        %2258 = vmatprep.subr.mxu0 0.0
        %2259 = vmatpush2.msra.mxu0 0.0
        %2260 = vmatprep.subr.mxu0 0.0
        %2261 = vmatpush2.msra.mxu0 0.0
        %2262 = vmatprep.subr.mxu0 0.0
        %2263 = vmatpush2.msra.mxu0 0.0
        %2264 = vmatprep.subr.mxu0 0.0
        %2265 = vmatpush2.msra.mxu0 0.0
        %2266 = vmatprep.subr.mxu0 0.0
        %2267 = vmatpush2.msra.mxu0 0.0
        %2268 = vmatprep.mubr.f32.mxu0 0.0
        %2269 = vmatmul.mubr.f32.gmra.mxu0 %v2199
        %v2270 = vpop.f32.mrf.mxu0
        %v2271 = vadd.f32 0.0, %v2270
        %v2272 = vpop.f32.mrf.mxu0
        %2273 = vmatprep.mubr.f32.mxu0 0.0
        %2274 = vmatmul.mubr.f32.gmra.mxu0 %v2202
        %v2275 = vpop.f32.mrf.mxu0
        %v2276 = vadd.f32 0.0, %v2275
        %v2277 = vpop.f32.mrf.mxu0
        %2278 = vdwg.mxu0
        %2279 = vrot.lane.b32.xlu0 %v1002, 64
        %v2280 = vpop.permute.xlu0 %2279
        %2281 = vrot.lane.b32.xlu0 %v1004, 64
        %v2282 = vpop.permute.xlu0 %2281
        %v2286 = vsel %vm1754, %v1923, 0
        %v2289 = vsel %vm1754, %v1924, 0
        %2291 = vmatprep.subr.mxu0 0.0
        %2292 = vmatpush1.msra.mxu0 0.0
        %2293 = vmatprep.subr.mxu0 0.0
        %2294 = vmatpush1.msra.mxu0 0.0
        %2295 = vmatprep.subr.mxu0 0.0
        %2296 = vmatpush1.msra.mxu0 0.0
        %2297 = vmatprep.subr.mxu0 0.0
        %2298 = vmatpush1.msra.mxu0 0.0
        %2299 = vmatprep.subr.mxu0 0.0
        %2300 = vmatpush1.msra.mxu0 0.0
        %2301 = vmatprep.subr.mxu0 0.0
        %2302 = vmatpush1.msra.mxu0 0.0
        %2303 = vmatprep.subr.mxu0 0.0
        %2304 = vmatpush1.msra.mxu0 0.0
        %2305 = vmatprep.subr.mxu0 0.0
        %2306 = vmatpush1.msra.mxu0 0.0
        %2307 = vmatprep.subr.mxu0 0.0
        %2308 = vmatpush1.msra.mxu0 0.0
        %2309 = vmatprep.subr.mxu0 0.0
        %2310 = vmatpush1.msra.mxu0 0.0
        %2311 = vmatprep.subr.mxu0 0.0
        %2312 = vmatpush1.msra.mxu0 0.0
        %2313 = vmatprep.subr.mxu0 0.0
        %2314 = vmatpush1.msra.mxu0 0.0
        %2315 = vmatprep.subr.mxu0 0.0
        %2316 = vmatpush1.msra.mxu0 0.0
        %2317 = vmatprep.subr.mxu0 0.0
        %2318 = vmatpush1.msra.mxu0 0.0
        %2319 = vmatprep.subr.mxu0 0.0
        %2320 = vmatpush1.msra.mxu0 %v2282
        %2321 = vmatprep.subr.mxu0 0.0
        %2322 = vmatpush1.msra.mxu0 %v2280
        %2323 = vmatprep.subr.mxu0 0.0
        %2324 = vmatpush2.msra.mxu0 0.0
        %2325 = vmatprep.subr.mxu0 0.0
        %2326 = vmatpush2.msra.mxu0 0.0
        %2327 = vmatprep.subr.mxu0 0.0
        %2328 = vmatpush2.msra.mxu0 0.0
        %2329 = vmatprep.subr.mxu0 0.0
        %2330 = vmatpush2.msra.mxu0 0.0
        %2331 = vmatprep.subr.mxu0 0.0
        %2332 = vmatpush2.msra.mxu0 0.0
        %2333 = vmatprep.subr.mxu0 0.0
        %2334 = vmatpush2.msra.mxu0 0.0
        %2335 = vmatprep.subr.mxu0 0.0
        %2336 = vmatpush2.msra.mxu0 0.0
        %2337 = vmatprep.subr.mxu0 0.0
        %2338 = vmatpush2.msra.mxu0 0.0
        %2339 = vmatprep.subr.mxu0 0.0
        %2340 = vmatpush2.msra.mxu0 0.0
        %2341 = vmatprep.subr.mxu0 0.0
        %2342 = vmatpush2.msra.mxu0 0.0
        %2343 = vmatprep.subr.mxu0 0.0
        %2344 = vmatpush2.msra.mxu0 0.0
        %2345 = vmatprep.subr.mxu0 0.0
        %2346 = vmatpush2.msra.mxu0 0.0
        %2347 = vmatprep.subr.mxu0 0.0
        %2348 = vmatpush2.msra.mxu0 0.0
        %2349 = vmatprep.subr.mxu0 0.0
        %2350 = vmatpush2.msra.mxu0 0.0
        %2351 = vmatprep.subr.mxu0 0.0
        %2352 = vmatpush2.msra.mxu0 0.0
        %2353 = vmatprep.subr.mxu0 0.0
        %2354 = vmatpush2.msra.mxu0 0.0
        %2355 = vmatprep.mubr.f32.mxu0 0.0
        %2356 = vmatmul.mubr.f32.gmra.mxu0 %v2286
        %v2357 = vpop.f32.mrf.mxu0
        %v2358 = vadd.f32 0.0, %v2357
        %v2359 = vpop.f32.mrf.mxu0
        %2360 = vmatprep.mubr.f32.mxu0 0.0
        %2361 = vmatmul.mubr.f32.gmra.mxu0 %v2289
        %v2362 = vpop.f32.mrf.mxu0
        %v2363 = vadd.f32 0.0, %v2362
        %v2364 = vpop.f32.mrf.mxu0
        %2365 = vdwg.mxu0
        %2366 = vrot.lane.b32.xlu0 %v1006, 64
        %v2367 = vpop.permute.xlu0 %2366
        %2368 = vrot.lane.b32.xlu0 %v1008, 64
        %v2369 = vpop.permute.xlu0 %2368
        %v2373 = vsel %vm1754, %v1925, 0
        %v2376 = vsel %vm1754, %v1926, 0
        %2378 = vmatprep.subr.mxu0 0.0
        %2379 = vmatpush1.msra.mxu0 0.0
        %2380 = vmatprep.subr.mxu0 0.0
        %2381 = vmatpush1.msra.mxu0 0.0
        %2382 = vmatprep.subr.mxu0 0.0
        %2383 = vmatpush1.msra.mxu0 0.0
        %2384 = vmatprep.subr.mxu0 0.0
        %2385 = vmatpush1.msra.mxu0 0.0
        %2386 = vmatprep.subr.mxu0 0.0
        %2387 = vmatpush1.msra.mxu0 0.0
        %2388 = vmatprep.subr.mxu0 0.0
        %2389 = vmatpush1.msra.mxu0 0.0
        %2390 = vmatprep.subr.mxu0 0.0
        %2391 = vmatpush1.msra.mxu0 0.0
        %2392 = vmatprep.subr.mxu0 0.0
        %2393 = vmatpush1.msra.mxu0 0.0
        %2394 = vmatprep.subr.mxu0 0.0
        %2395 = vmatpush1.msra.mxu0 0.0
        %2396 = vmatprep.subr.mxu0 0.0
        %2397 = vmatpush1.msra.mxu0 0.0
        %2398 = vmatprep.subr.mxu0 0.0
        %2399 = vmatpush1.msra.mxu0 0.0
        %2400 = vmatprep.subr.mxu0 0.0
        %2401 = vmatpush1.msra.mxu0 0.0
        %2402 = vmatprep.subr.mxu0 0.0
        %2403 = vmatpush1.msra.mxu0 0.0
        %2404 = vmatprep.subr.mxu0 0.0
        %2405 = vmatpush1.msra.mxu0 0.0
        %2406 = vmatprep.subr.mxu0 0.0
        %2407 = vmatpush1.msra.mxu0 %v2369
        %2408 = vmatprep.subr.mxu0 0.0
        %2409 = vmatpush1.msra.mxu0 %v2367
        %2410 = vmatprep.subr.mxu0 0.0
        %2411 = vmatpush2.msra.mxu0 0.0
        %2412 = vmatprep.subr.mxu0 0.0
        %2413 = vmatpush2.msra.mxu0 0.0
        %2414 = vmatprep.subr.mxu0 0.0
        %2415 = vmatpush2.msra.mxu0 0.0
        %2416 = vmatprep.subr.mxu0 0.0
        %2417 = vmatpush2.msra.mxu0 0.0
        %2418 = vmatprep.subr.mxu0 0.0
        %2419 = vmatpush2.msra.mxu0 0.0
        %2420 = vmatprep.subr.mxu0 0.0
        %2421 = vmatpush2.msra.mxu0 0.0
        %2422 = vmatprep.subr.mxu0 0.0
        %2423 = vmatpush2.msra.mxu0 0.0
        %2424 = vmatprep.subr.mxu0 0.0
        %2425 = vmatpush2.msra.mxu0 0.0
        %2426 = vmatprep.subr.mxu0 0.0
        %2427 = vmatpush2.msra.mxu0 0.0
        %2428 = vmatprep.subr.mxu0 0.0
        %2429 = vmatpush2.msra.mxu0 0.0
        %2430 = vmatprep.subr.mxu0 0.0
        %2431 = vmatpush2.msra.mxu0 0.0
        %2432 = vmatprep.subr.mxu0 0.0
        %2433 = vmatpush2.msra.mxu0 0.0
        %2434 = vmatprep.subr.mxu0 0.0
        %2435 = vmatpush2.msra.mxu0 0.0
        %2436 = vmatprep.subr.mxu0 0.0
        %2437 = vmatpush2.msra.mxu0 0.0
        %2438 = vmatprep.subr.mxu0 0.0
        %2439 = vmatpush2.msra.mxu0 0.0
        %2440 = vmatprep.subr.mxu0 0.0
        %2441 = vmatpush2.msra.mxu0 0.0
        %2442 = vmatprep.mubr.f32.mxu0 0.0
        %2443 = vmatmul.mubr.f32.gmra.mxu0 %v2373
        %v2444 = vpop.f32.mrf.mxu0
        %v2445 = vadd.f32 0.0, %v2444
        %v2446 = vpop.f32.mrf.mxu0
        %2447 = vmatprep.mubr.f32.mxu0 0.0
        %2448 = vmatmul.mubr.f32.gmra.mxu0 %v2376
        %v2449 = vpop.f32.mrf.mxu0
        %v2450 = vadd.f32 0.0, %v2449
        %v2451 = vpop.f32.mrf.mxu0
        %2452 = vdwg.mxu0
        %2453 = vrot.lane.b32.xlu0 %v1010, 64
        %v2454 = vpop.permute.xlu0 %2453
        %2455 = vrot.lane.b32.xlu0 %v1012, 64
        %v2456 = vpop.permute.xlu0 %2455
        %v2460 = vsel %vm1754, %v1927, 0
        %v2463 = vsel %vm1754, %v1928, 0
        %2465 = vmatprep.subr.mxu0 0.0
        %2466 = vmatpush1.msra.mxu0 0.0
        %2467 = vmatprep.subr.mxu0 0.0
        %2468 = vmatpush1.msra.mxu0 0.0
        %2469 = vmatprep.subr.mxu0 0.0
        %2470 = vmatpush1.msra.mxu0 0.0
        %2471 = vmatprep.subr.mxu0 0.0
        %2472 = vmatpush1.msra.mxu0 0.0
        %2473 = vmatprep.subr.mxu0 0.0
        %2474 = vmatpush1.msra.mxu0 0.0
        %2475 = vmatprep.subr.mxu0 0.0
        %2476 = vmatpush1.msra.mxu0 0.0
        %2477 = vmatprep.subr.mxu0 0.0
        %2478 = vmatpush1.msra.mxu0 0.0
        %2479 = vmatprep.subr.mxu0 0.0
        %2480 = vmatpush1.msra.mxu0 0.0
        %2481 = vmatprep.subr.mxu0 0.0
        %2482 = vmatpush1.msra.mxu0 0.0
        %2483 = vmatprep.subr.mxu0 0.0
        %2484 = vmatpush1.msra.mxu0 0.0
        %2485 = vmatprep.subr.mxu0 0.0
        %2486 = vmatpush1.msra.mxu0 0.0
        %2487 = vmatprep.subr.mxu0 0.0
        %2488 = vmatpush1.msra.mxu0 0.0
        %2489 = vmatprep.subr.mxu0 0.0
        %2490 = vmatpush1.msra.mxu0 0.0
        %2491 = vmatprep.subr.mxu0 0.0
        %2492 = vmatpush1.msra.mxu0 0.0
        %2493 = vmatprep.subr.mxu0 0.0
        %2494 = vmatpush1.msra.mxu0 %v2456
        %2495 = vmatprep.subr.mxu0 0.0
        %2496 = vmatpush1.msra.mxu0 %v2454
        %2497 = vmatprep.subr.mxu0 0.0
        %2498 = vmatpush2.msra.mxu0 0.0
        %2499 = vmatprep.subr.mxu0 0.0
        %2500 = vmatpush2.msra.mxu0 0.0
        %2501 = vmatprep.subr.mxu0 0.0
        %2502 = vmatpush2.msra.mxu0 0.0
        %2503 = vmatprep.subr.mxu0 0.0
        %2504 = vmatpush2.msra.mxu0 0.0
        %2505 = vmatprep.subr.mxu0 0.0
        %2506 = vmatpush2.msra.mxu0 0.0
        %2507 = vmatprep.subr.mxu0 0.0
        %2508 = vmatpush2.msra.mxu0 0.0
        %2509 = vmatprep.subr.mxu0 0.0
        %2510 = vmatpush2.msra.mxu0 0.0
        %2511 = vmatprep.subr.mxu0 0.0
        %2512 = vmatpush2.msra.mxu0 0.0
        %2513 = vmatprep.subr.mxu0 0.0
        %2514 = vmatpush2.msra.mxu0 0.0
        %2515 = vmatprep.subr.mxu0 0.0
        %2516 = vmatpush2.msra.mxu0 0.0
        %2517 = vmatprep.subr.mxu0 0.0
        %2518 = vmatpush2.msra.mxu0 0.0
        %2519 = vmatprep.subr.mxu0 0.0
        %2520 = vmatpush2.msra.mxu0 0.0
        %2521 = vmatprep.subr.mxu0 0.0
        %2522 = vmatpush2.msra.mxu0 0.0
        %2523 = vmatprep.subr.mxu0 0.0
        %2524 = vmatpush2.msra.mxu0 0.0
        %2525 = vmatprep.subr.mxu0 0.0
        %2526 = vmatpush2.msra.mxu0 0.0
        %2527 = vmatprep.subr.mxu0 0.0
        %2528 = vmatpush2.msra.mxu0 0.0
        %2529 = vmatprep.mubr.f32.mxu0 0.0
        %2530 = vmatmul.mubr.f32.gmra.mxu0 %v2460
        %v2531 = vpop.f32.mrf.mxu0
        %v2532 = vadd.f32 0.0, %v2531
        %v2533 = vpop.f32.mrf.mxu0
        %2534 = vmatprep.mubr.f32.mxu0 0.0
        %2535 = vmatmul.mubr.f32.gmra.mxu0 %v2463
        %v2536 = vpop.f32.mrf.mxu0
        %v2537 = vadd.f32 0.0, %v2536
        %v2538 = vpop.f32.mrf.mxu0
        %2539 = vdwg.mxu0
        %2540 = vrot.lane.b32.xlu0 %v1014, 64
        %v2541 = vpop.permute.xlu0 %2540
        %2542 = vrot.lane.b32.xlu0 %v1016, 64
        %v2543 = vpop.permute.xlu0 %2542
        %v2547 = vsel %vm1754, %v1929, 0
        %v2550 = vsel %vm1754, %v1930, 0
        %2552 = vmatprep.subr.mxu0 0.0
        %2553 = vmatpush1.msra.mxu0 0.0
        %2554 = vmatprep.subr.mxu0 0.0
        %2555 = vmatpush1.msra.mxu0 0.0
        %2556 = vmatprep.subr.mxu0 0.0
        %2557 = vmatpush1.msra.mxu0 0.0
        %2558 = vmatprep.subr.mxu0 0.0
        %2559 = vmatpush1.msra.mxu0 0.0
        %2560 = vmatprep.subr.mxu0 0.0
        %2561 = vmatpush1.msra.mxu0 0.0
        %2562 = vmatprep.subr.mxu0 0.0
        %2563 = vmatpush1.msra.mxu0 0.0
        %2564 = vmatprep.subr.mxu0 0.0
        %2565 = vmatpush1.msra.mxu0 0.0
        %2566 = vmatprep.subr.mxu0 0.0
        %2567 = vmatpush1.msra.mxu0 0.0
        %2568 = vmatprep.subr.mxu0 0.0
        %2569 = vmatpush1.msra.mxu0 0.0
        %2570 = vmatprep.subr.mxu0 0.0
        %2571 = vmatpush1.msra.mxu0 0.0
        %2572 = vmatprep.subr.mxu0 0.0
        %2573 = vmatpush1.msra.mxu0 0.0
        %2574 = vmatprep.subr.mxu0 0.0
        %2575 = vmatpush1.msra.mxu0 0.0
        %2576 = vmatprep.subr.mxu0 0.0
        %2577 = vmatpush1.msra.mxu0 0.0
        %2578 = vmatprep.subr.mxu0 0.0
        %2579 = vmatpush1.msra.mxu0 0.0
        %2580 = vmatprep.subr.mxu0 0.0
        %2581 = vmatpush1.msra.mxu0 %v2543
        %2582 = vmatprep.subr.mxu0 0.0
        %2583 = vmatpush1.msra.mxu0 %v2541
        %2584 = vmatprep.subr.mxu0 0.0
        %2585 = vmatpush2.msra.mxu0 0.0
        %2586 = vmatprep.subr.mxu0 0.0
        %2587 = vmatpush2.msra.mxu0 0.0
        %2588 = vmatprep.subr.mxu0 0.0
        %2589 = vmatpush2.msra.mxu0 0.0
        %2590 = vmatprep.subr.mxu0 0.0
        %2591 = vmatpush2.msra.mxu0 0.0
        %2592 = vmatprep.subr.mxu0 0.0
        %2593 = vmatpush2.msra.mxu0 0.0
        %2594 = vmatprep.subr.mxu0 0.0
        %2595 = vmatpush2.msra.mxu0 0.0
        %2596 = vmatprep.subr.mxu0 0.0
        %2597 = vmatpush2.msra.mxu0 0.0
        %2598 = vmatprep.subr.mxu0 0.0
        %2599 = vmatpush2.msra.mxu0 0.0
        %2600 = vmatprep.subr.mxu0 0.0
        %2601 = vmatpush2.msra.mxu0 0.0
        %2602 = vmatprep.subr.mxu0 0.0
        %2603 = vmatpush2.msra.mxu0 0.0
        %2604 = vmatprep.subr.mxu0 0.0
        %2605 = vmatpush2.msra.mxu0 0.0
        %2606 = vmatprep.subr.mxu0 0.0
        %2607 = vmatpush2.msra.mxu0 0.0
        %2608 = vmatprep.subr.mxu0 0.0
        %2609 = vmatpush2.msra.mxu0 0.0
        %2610 = vmatprep.subr.mxu0 0.0
        %2611 = vmatpush2.msra.mxu0 0.0
        %2612 = vmatprep.subr.mxu0 0.0
        %2613 = vmatpush2.msra.mxu0 0.0
        %2614 = vmatprep.subr.mxu0 0.0
        %2615 = vmatpush2.msra.mxu0 0.0
        %2616 = vmatprep.mubr.f32.mxu0 0.0
        %2617 = vmatmul.mubr.f32.gmra.mxu0 %v2547
        %v2618 = vpop.f32.mrf.mxu0
        %v2619 = vadd.f32 0.0, %v2618
        %v2620 = vpop.f32.mrf.mxu0
        %2621 = vmatprep.mubr.f32.mxu0 0.0
        %2622 = vmatmul.mubr.f32.gmra.mxu0 %v2550
        %v2623 = vpop.f32.mrf.mxu0
        %v2624 = vadd.f32 0.0, %v2623
        %v2625 = vpop.f32.mrf.mxu0
        %2626 = vdwg.mxu0
        %2631 = vrot.lane.b32.xlu0 %v2184, 8
        %v2632 = vpop.permute.xlu0 %2631
        %2633 = vrot.lane.b32.xlu0 %v2189, 8
        %v2634 = vpop.permute.xlu0 %2633
        %2635 = vrot.lane.b32.xlu0 %v2271, 8
        %v2636 = vpop.permute.xlu0 %2635
        %2637 = vrot.lane.b32.xlu0 %v2276, 8
        %v2638 = vpop.permute.xlu0 %2637
        %2647 = vrot.lane.b32.xlu0 %v2358, 16
        %v2648 = vpop.permute.xlu0 %2647
        %2649 = vrot.lane.b32.xlu0 %v2363, 16
        %v2650 = vpop.permute.xlu0 %2649
        %2651 = vrot.lane.b32.xlu0 %v2445, 16
        %v2652 = vpop.permute.xlu0 %2651
        %2653 = vrot.lane.b32.xlu0 %v2450, 16
        %v2654 = vpop.permute.xlu0 %2653
        %2663 = vrot.lane.b32.xlu0 %v2532, 24
        %v2664 = vpop.permute.xlu0 %2663
        %2665 = vrot.lane.b32.xlu0 %v2537, 24
        %v2666 = vpop.permute.xlu0 %2665
        %2667 = vrot.lane.b32.xlu0 %v2619, 24
        %v2668 = vpop.permute.xlu0 %2667
        %2669 = vrot.lane.b32.xlu0 %v2624, 24
        %v2670 = vpop.permute.xlu0 %2669
        %v2675 = vsel %vm1021, %v2010, %v2632
        %v2676 = vsel %vm1021, %v2015, %v2634
        %v2677 = vsel %vm1021, %v2097, %v2636
        %v2678 = vsel %vm1021, %v2102, %v2638
        %v2679 = vsel %vm1754, %v2675, %v2648
        %v2680 = vsel %vm1754, %v2676, %v2650
        %v2681 = vsel %vm1754, %v2677, %v2652
        %v2682 = vsel %vm1754, %v2678, %v2654
        %vm2683 = vcmask 195584
        %v2684 = vsel %vm2683, %v2679, %v2664
        %v2685 = vsel %vm2683, %v2680, %v2666
        %v2686 = vsel %vm2683, %v2681, %v2668
        %v2687 = vsel %vm2683, %v2682, %v2670
        %v2688 = vld [vmem:[%s726] sm:$0xff]
        %v2689 = vld [vmem:[%s726 + $0x8] sm:$0xff]
        %v2690 = vld [vmem:[%s726 + $0x10] sm:$0xff]
        %v2691 = vld [vmem:[%s726 + $0x18] sm:$0xff]
        %v2692 = vld [vmem:[%s729] sm:$0x1]
        %v2694 = vlaneseq
        %v2695 = vshrl.u32 %v2694, 7
        %v2696 = vsub.s32 0, %v2695
        %v2697 = vrot.slane %v2692, %v2696
        %v2700 = vsel %vm779, %v2684, 0
        %v2703 = vsel %vm779, %v2685, 0
        %v2706 = vsel %vm779, %v2686, 0
        %v2709 = vsel %vm779, %v2687, 0
        %2711 = vmatprep.subr.mxu0 0.0
        %2712 = vmatpush1.msra.mxu0 0.0
        %2713 = vmatprep.subr.mxu0 0.0
        %2714 = vmatpush1.msra.mxu0 0.0
        %2715 = vmatprep.subr.mxu0 0.0
        %2716 = vmatpush1.msra.mxu0 0.0
        %2717 = vmatprep.subr.mxu0 0.0
        %2718 = vmatpush1.msra.mxu0 0.0
        %2719 = vmatprep.subr.mxu0 0.0
        %2720 = vmatpush1.msra.mxu0 0.0
        %2721 = vmatprep.subr.mxu0 0.0
        %2722 = vmatpush1.msra.mxu0 0.0
        %2723 = vmatprep.subr.mxu0 0.0
        %2724 = vmatpush1.msra.mxu0 0.0
        %2725 = vmatprep.subr.mxu0 0.0
        %2726 = vmatpush1.msra.mxu0 0.0
        %2727 = vmatprep.subr.mxu0 0.0
        %2728 = vmatpush1.msra.mxu0 0.0
        %2729 = vmatprep.subr.mxu0 0.0
        %2730 = vmatpush1.msra.mxu0 0.0
        %2731 = vmatprep.subr.mxu0 0.0
        %2732 = vmatpush1.msra.mxu0 0.0
        %2733 = vmatprep.subr.mxu0 0.0
        %2734 = vmatpush1.msra.mxu0 0.0
        %2735 = vmatprep.subr.mxu0 0.0
        %2736 = vmatpush1.msra.mxu0 %v2691
        %2737 = vmatprep.subr.mxu0 0.0
        %2738 = vmatpush1.msra.mxu0 %v2690
        %2739 = vmatprep.subr.mxu0 0.0
        %2740 = vmatpush1.msra.mxu0 %v2689
        %2741 = vmatprep.subr.mxu0 0.0
        %2742 = vmatpush1.msra.mxu0 %v2688
        %2743 = vmatprep.subr.mxu0 0.0
        %2744 = vmatpush2.msra.mxu0 0.0
        %2745 = vmatprep.subr.mxu0 0.0
        %2746 = vmatpush2.msra.mxu0 0.0
        %2747 = vmatprep.subr.mxu0 0.0
        %2748 = vmatpush2.msra.mxu0 0.0
        %2749 = vmatprep.subr.mxu0 0.0
        %2750 = vmatpush2.msra.mxu0 0.0
        %2751 = vmatprep.subr.mxu0 0.0
        %2752 = vmatpush2.msra.mxu0 0.0
        %2753 = vmatprep.subr.mxu0 0.0
        %2754 = vmatpush2.msra.mxu0 0.0
        %2755 = vmatprep.subr.mxu0 0.0
        %2756 = vmatpush2.msra.mxu0 0.0
        %2757 = vmatprep.subr.mxu0 0.0
        %2758 = vmatpush2.msra.mxu0 0.0
        %2759 = vmatprep.subr.mxu0 0.0
        %2760 = vmatpush2.msra.mxu0 0.0
        %2761 = vmatprep.subr.mxu0 0.0
        %2762 = vmatpush2.msra.mxu0 0.0
        %2763 = vmatprep.subr.mxu0 0.0
        %2764 = vmatpush2.msra.mxu0 0.0
        %2765 = vmatprep.subr.mxu0 0.0
        %2766 = vmatpush2.msra.mxu0 0.0
        %2767 = vmatprep.subr.mxu0 0.0
        %2768 = vmatpush2.msra.mxu0 0.0
        %2769 = vmatprep.subr.mxu0 0.0
        %2770 = vmatpush2.msra.mxu0 0.0
        %2771 = vmatprep.subr.mxu0 0.0
        %2772 = vmatpush2.msra.mxu0 0.0
        %2773 = vmatprep.subr.mxu0 0.0
        %2774 = vmatpush2.msra.mxu0 0.0
        %2775 = vmatprep.mubr.f32.mxu0 0.0
        %2776 = vmatmul.mubr.f32.gmra.mxu0 %v2700
        %v2777 = vpop.f32.mrf.mxu0
        %v2778 = vadd.f32 %v2697, %v2777
        %v2779 = vpop.f32.mrf.mxu0
        %2780 = vmatprep.mubr.f32.mxu0 0.0
        %2781 = vmatmul.mubr.f32.gmra.mxu0 %v2703
        %v2782 = vpop.f32.mrf.mxu0
        %v2783 = vadd.f32 %v2697, %v2782
        %v2784 = vpop.f32.mrf.mxu0
        %2785 = vmatprep.mubr.f32.mxu0 0.0
        %2786 = vmatmul.mubr.f32.gmra.mxu0 %v2706
        %v2787 = vpop.f32.mrf.mxu0
        %v2788 = vadd.f32 %v2697, %v2787
        %v2789 = vpop.f32.mrf.mxu0
        %2790 = vmatprep.mubr.f32.mxu0 0.0
        %2791 = vmatmul.mubr.f32.gmra.mxu0 %v2709
        %v2792 = vpop.f32.mrf.mxu0
        %v2793 = vadd.f32 %v2697, %v2792
        %v2794 = vpop.f32.mrf.mxu0
        %2795 = vdwg.mxu0
        %v2796 = vadd.f32 %v761, %v2778
        %v2797 = vadd.f32 %v762, %v2783
        %v2798 = vadd.f32 %v763, %v2788
        %v2799 = vadd.f32 %v764, %v2793
        %v2800 = vld [vmem:[%s732] sm:$0x1]
        %v2801 = vld [vmem:[%s735] sm:$0x1]
        %v2802 = vsel %vm779, %v2796, 0.0
        %2803 = vadd.xlane.f32.xlu0 %v2802
        %v2804 = vpop.xlane.xlu0 %2803
        %v2805 = vsel %vm779, %v2797, 0.0
        %2806 = vadd.xlane.f32.xlu0 %v2805
        %v2807 = vpop.xlane.xlu0 %2806
        %v2808 = vsel %vm779, %v2798, 0.0
        %2809 = vadd.xlane.f32.xlu0 %v2808
        %v2810 = vpop.xlane.xlu0 %2809
        %v2811 = vsel %vm779, %v2799, 0.0
        %2812 = vadd.xlane.f32.xlu0 %v2811
        %v2813 = vpop.xlane.xlu0 %2812
        %v2814 = vmul.f32 %v2804, %v792
        %v2815 = vmul.f32 %v2807, %v792
        %v2816 = vmul.f32 %v2810, %v792
        %v2817 = vmul.f32 %v2813, %v792
        %v2818 = vsub.f32 %v2796, %v2814
        %v2819 = vsub.f32 %v2797, %v2815
        %v2820 = vsub.f32 %v2798, %v2816
        %v2821 = vsub.f32 %v2799, %v2817
        %v2822 = vmul.f32 %v2818, %v2818
        %v2823 = vmul.f32 %v2819, %v2819
        %v2824 = vmul.f32 %v2820, %v2820
        %v2825 = vmul.f32 %v2821, %v2821
        %v2826 = vsel %vm779, %v2822, 0.0
        %2827 = vadd.xlane.f32.xlu0 %v2826
        %v2828 = vpop.xlane.xlu0 %2827
        %v2829 = vsel %vm779, %v2823, 0.0
        %2830 = vadd.xlane.f32.xlu0 %v2829
        %v2831 = vpop.xlane.xlu0 %2830
        %v2832 = vsel %vm779, %v2824, 0.0
        %2833 = vadd.xlane.f32.xlu0 %v2832
        %v2834 = vpop.xlane.xlu0 %2833
        %v2835 = vsel %vm779, %v2825, 0.0
        %2836 = vadd.xlane.f32.xlu0 %v2835
        %v2837 = vpop.xlane.xlu0 %2836
        %v2838 = vmul.f32 %v2828, 0.032258064
        %v2839 = vmul.f32 %v2831, 0.032258064
        %v2840 = vmul.f32 %v2834, 0.032258064
        %v2841 = vmul.f32 %v2837, 0.032258064
        %v2842 = vrsqrt.pop %v2838
        %v2843 = vmul.f32 %v2838, %v2842
        %vm2844 = vcmp.eq.f32.partialorder %v2838, inf
        %v2845 = vsel %vm2844, %v2838, %v2843
        %vm2846 = vcmp.eq.f32.partialorder %v2838, 0.0
        %v2847 = vand.u32 %v2838, 2147483648
        %v2848 = vsel %vm2846, %v2847, %v2845
        %v2849 = vrsqrt.pop %v2839
        %v2850 = vmul.f32 %v2839, %v2849
        %vm2851 = vcmp.eq.f32.partialorder %v2839, inf
        %v2852 = vsel %vm2851, %v2839, %v2850
        %vm2853 = vcmp.eq.f32.partialorder %v2839, 0.0
        %v2854 = vand.u32 %v2839, 2147483648
        %v2855 = vsel %vm2853, %v2854, %v2852
        %v2856 = vrsqrt.pop %v2840
        %v2857 = vmul.f32 %v2840, %v2856
        %vm2858 = vcmp.eq.f32.partialorder %v2840, inf
        %v2859 = vsel %vm2858, %v2840, %v2857
        %vm2860 = vcmp.eq.f32.partialorder %v2840, 0.0
        %v2861 = vand.u32 %v2840, 2147483648
        %v2862 = vsel %vm2860, %v2861, %v2859
        %v2863 = vrsqrt.pop %v2841
        %v2864 = vmul.f32 %v2841, %v2863
        %vm2865 = vcmp.eq.f32.partialorder %v2841, inf
        %v2866 = vsel %vm2865, %v2841, %v2864
        %vm2867 = vcmp.eq.f32.partialorder %v2841, 0.0
        %v2868 = vand.u32 %v2841, 2147483648
        %v2869 = vsel %vm2867, %v2868, %v2866
        %v2870 = vadd.f32 %v2848, 1e-06
        %v2871 = vadd.f32 %v2855, 1e-06
        %v2872 = vadd.f32 %v2862, 1e-06
        %v2873 = vadd.f32 %v2869, 1e-06
        %v2874 = vrcp.pop %v2870
        %v2875 = vrcp.pop %v2871
        %v2876 = vrcp.pop %v2872
        %v2877 = vrcp.pop %v2873
        %v2878 = vmul.f32 %v2818, %v2874
        %v2879 = vmul.f32 %v2819, %v2875
        %v2880 = vmul.f32 %v2820, %v2876
        %v2881 = vmul.f32 %v2821, %v2877
        %v2883 = vlaneseq
        %v2884 = vshrl.u32 %v2883, 7
        %v2885 = vsub.s32 0, %v2884
        %v2886 = vrot.slane %v2800, %v2885
        %v2888 = vmul.f32 %v2886, %v2878
        %v2889 = vmul.f32 %v2886, %v2879
        %v2890 = vmul.f32 %v2886, %v2880
        %v2891 = vmul.f32 %v2886, %v2881
        %v2893 = vlaneseq
        %v2894 = vshrl.u32 %v2893, 7
        %v2895 = vsub.s32 0, %v2894
        %v2896 = vrot.slane %v2801, %v2895
        %v2898 = vadd.f32 %v2888, %v2896
        %v2899 = vadd.f32 %v2889, %v2896
        %v2900 = vadd.f32 %v2890, %v2896
        %v2901 = vadd.f32 %v2891, %v2896
        %v2902 = vld [vmem:[%s611] sm:$0xff]
        %v2903 = vld [vmem:[%s611 + $0x8] sm:$0xff]
        %v2904 = vld [vmem:[%s611 + $0x10] sm:$0xff]
        %v2905 = vld [vmem:[%s611 + $0x18] sm:$0xff]
        %v2906 = vld [vmem:[%s738] sm:$0x1]
        %v2908 = vlaneseq
        %v2909 = vshrl.u32 %v2908, 7
        %v2910 = vsub.s32 0, %v2909
        %v2911 = vrot.slane %v2906, %v2910
        %v2914 = vsel %vm779, %v2898, 0
        %v2917 = vsel %vm779, %v2899, 0
        %v2920 = vsel %vm779, %v2900, 0
        %v2923 = vsel %vm779, %v2901, 0
        %2925 = vmatprep.subr.mxu0 0.0
        %2926 = vmatpush1.msra.mxu0 0.0
        %2927 = vmatprep.subr.mxu0 0.0
        %2928 = vmatpush1.msra.mxu0 0.0
        %2929 = vmatprep.subr.mxu0 0.0
        %2930 = vmatpush1.msra.mxu0 0.0
        %2931 = vmatprep.subr.mxu0 0.0
        %2932 = vmatpush1.msra.mxu0 0.0
        %2933 = vmatprep.subr.mxu0 0.0
        %2934 = vmatpush1.msra.mxu0 0.0
        %2935 = vmatprep.subr.mxu0 0.0
        %2936 = vmatpush1.msra.mxu0 0.0
        %2937 = vmatprep.subr.mxu0 0.0
        %2938 = vmatpush1.msra.mxu0 0.0
        %2939 = vmatprep.subr.mxu0 0.0
        %2940 = vmatpush1.msra.mxu0 0.0
        %2941 = vmatprep.subr.mxu0 0.0
        %2942 = vmatpush1.msra.mxu0 0.0
        %2943 = vmatprep.subr.mxu0 0.0
        %2944 = vmatpush1.msra.mxu0 0.0
        %2945 = vmatprep.subr.mxu0 0.0
        %2946 = vmatpush1.msra.mxu0 0.0
        %2947 = vmatprep.subr.mxu0 0.0
        %2948 = vmatpush1.msra.mxu0 0.0
        %2949 = vmatprep.subr.mxu0 0.0
        %2950 = vmatpush1.msra.mxu0 %v2905
        %2951 = vmatprep.subr.mxu0 0.0
        %2952 = vmatpush1.msra.mxu0 %v2904
        %2953 = vmatprep.subr.mxu0 0.0
        %2954 = vmatpush1.msra.mxu0 %v2903
        %2955 = vmatprep.subr.mxu0 0.0
        %2956 = vmatpush1.msra.mxu0 %v2902
        %2957 = vmatprep.subr.mxu0 0.0
        %2958 = vmatpush2.msra.mxu0 0.0
        %2959 = vmatprep.subr.mxu0 0.0
        %2960 = vmatpush2.msra.mxu0 0.0
        %2961 = vmatprep.subr.mxu0 0.0
        %2962 = vmatpush2.msra.mxu0 0.0
        %2963 = vmatprep.subr.mxu0 0.0
        %2964 = vmatpush2.msra.mxu0 0.0
        %2965 = vmatprep.subr.mxu0 0.0
        %2966 = vmatpush2.msra.mxu0 0.0
        %2967 = vmatprep.subr.mxu0 0.0
        %2968 = vmatpush2.msra.mxu0 0.0
        %2969 = vmatprep.subr.mxu0 0.0
        %2970 = vmatpush2.msra.mxu0 0.0
        %2971 = vmatprep.subr.mxu0 0.0
        %2972 = vmatpush2.msra.mxu0 0.0
        %2973 = vmatprep.subr.mxu0 0.0
        %2974 = vmatpush2.msra.mxu0 0.0
        %2975 = vmatprep.subr.mxu0 0.0
        %2976 = vmatpush2.msra.mxu0 0.0
        %2977 = vmatprep.subr.mxu0 0.0
        %2978 = vmatpush2.msra.mxu0 0.0
        %2979 = vmatprep.subr.mxu0 0.0
        %2980 = vmatpush2.msra.mxu0 0.0
        %2981 = vmatprep.subr.mxu0 0.0
        %2982 = vmatpush2.msra.mxu0 0.0
        %2983 = vmatprep.subr.mxu0 0.0
        %2984 = vmatpush2.msra.mxu0 0.0
        %2985 = vmatprep.subr.mxu0 0.0
        %2986 = vmatpush2.msra.mxu0 0.0
        %2987 = vmatprep.subr.mxu0 0.0
        %2988 = vmatpush2.msra.mxu0 0.0
        %2989 = vmatprep.mubr.f32.mxu0 0.0
        %2990 = vmatmul.mubr.f32.gmra.mxu0 %v2914
        %v2991 = vpop.f32.mrf.mxu0
        %v2992 = vadd.f32 %v2911, %v2991
        %v2993 = vpop.f32.mrf.mxu0
        %2994 = vmatprep.mubr.f32.mxu0 0.0
        %2995 = vmatmul.mubr.f32.gmra.mxu0 %v2917
        %v2996 = vpop.f32.mrf.mxu0
        %v2997 = vadd.f32 %v2911, %v2996
        %v2998 = vpop.f32.mrf.mxu0
        %2999 = vmatprep.mubr.f32.mxu0 0.0
        %3000 = vmatmul.mubr.f32.gmra.mxu0 %v2920
        %v3001 = vpop.f32.mrf.mxu0
        %v3002 = vadd.f32 %v2911, %v3001
        %v3003 = vpop.f32.mrf.mxu0
        %3004 = vmatprep.mubr.f32.mxu0 0.0
        %3005 = vmatmul.mubr.f32.gmra.mxu0 %v2923
        %v3006 = vpop.f32.mrf.mxu0
        %v3007 = vadd.f32 %v2911, %v3006
        %v3008 = vpop.f32.mrf.mxu0
        %3009 = vdwg.mxu0
        %v3010 = vmax.f32 %v2992, 0.0
        %v3011 = vmax.f32 %v2997, 0.0
        %v3012 = vmax.f32 %v3002, 0.0
        %v3013 = vmax.f32 %v3007, 0.0
        %v3014 = vld [vmem:[%s743] sm:$0xff]
        %v3015 = vld [vmem:[%s743 + $0x8] sm:$0xff]
        %v3016 = vld [vmem:[%s743 + $0x10] sm:$0xff]
        %v3017 = vld [vmem:[%s743 + $0x18] sm:$0xff]
        %v3018 = vld [vmem:[%s743 + $0x20] sm:$0xff]
        %v3019 = vld [vmem:[%s743 + $0x28] sm:$0xff]
        %v3020 = vld [vmem:[%s743 + $0x30] sm:$0xff]
        %v3021 = vld [vmem:[%s743 + $0x38] sm:$0xff]
        %v3022 = vld [vmem:[%s746] sm:$0x1]
        %v3024 = vlaneseq
        %v3025 = vshrl.u32 %v3024, 7
        %v3026 = vsub.s32 0, %v3025
        %v3027 = vrot.slane %v3022, %v3026
        %vm3029 = vcmask 523264
        %v3031 = vsel %vm3029, %v3010, 0
        %v3034 = vsel %vm3029, %v3011, 0
        %v3037 = vsel %vm3029, %v3012, 0
        %v3040 = vsel %vm3029, %v3013, 0
        %3042 = vmatprep.subr.mxu0 0.0
        %3043 = vmatpush1.msra.mxu0 0.0
        %3044 = vmatprep.subr.mxu0 0.0
        %3045 = vmatpush1.msra.mxu0 0.0
        %3046 = vmatprep.subr.mxu0 0.0
        %3047 = vmatpush1.msra.mxu0 0.0
        %3048 = vmatprep.subr.mxu0 0.0
        %3049 = vmatpush1.msra.mxu0 0.0
        %3050 = vmatprep.subr.mxu0 0.0
        %3051 = vmatpush1.msra.mxu0 0.0
        %3052 = vmatprep.subr.mxu0 0.0
        %3053 = vmatpush1.msra.mxu0 0.0
        %3054 = vmatprep.subr.mxu0 0.0
        %3055 = vmatpush1.msra.mxu0 0.0
        %3056 = vmatprep.subr.mxu0 0.0
        %3057 = vmatpush1.msra.mxu0 0.0
        %3058 = vmatprep.subr.mxu0 0.0
        %3059 = vmatpush1.msra.mxu0 %v3021
        %3060 = vmatprep.subr.mxu0 0.0
        %3061 = vmatpush1.msra.mxu0 %v3020
        %3062 = vmatprep.subr.mxu0 0.0
        %3063 = vmatpush1.msra.mxu0 %v3019
        %3064 = vmatprep.subr.mxu0 0.0
        %3065 = vmatpush1.msra.mxu0 %v3018
        %3066 = vmatprep.subr.mxu0 0.0
        %3067 = vmatpush1.msra.mxu0 %v3017
        %3068 = vmatprep.subr.mxu0 0.0
        %3069 = vmatpush1.msra.mxu0 %v3016
        %3070 = vmatprep.subr.mxu0 0.0
        %3071 = vmatpush1.msra.mxu0 %v3015
        %3072 = vmatprep.subr.mxu0 0.0
        %3073 = vmatpush1.msra.mxu0 %v3014
        %3074 = vmatprep.subr.mxu0 0.0
        %3075 = vmatpush2.msra.mxu0 0.0
        %3076 = vmatprep.subr.mxu0 0.0
        %3077 = vmatpush2.msra.mxu0 0.0
        %3078 = vmatprep.subr.mxu0 0.0
        %3079 = vmatpush2.msra.mxu0 0.0
        %3080 = vmatprep.subr.mxu0 0.0
        %3081 = vmatpush2.msra.mxu0 0.0
        %3082 = vmatprep.subr.mxu0 0.0
        %3083 = vmatpush2.msra.mxu0 0.0
        %3084 = vmatprep.subr.mxu0 0.0
        %3085 = vmatpush2.msra.mxu0 0.0
        %3086 = vmatprep.subr.mxu0 0.0
        %3087 = vmatpush2.msra.mxu0 0.0
        %3088 = vmatprep.subr.mxu0 0.0
        %3089 = vmatpush2.msra.mxu0 0.0
        %3090 = vmatprep.subr.mxu0 0.0
        %3091 = vmatpush2.msra.mxu0 0.0
        %3092 = vmatprep.subr.mxu0 0.0
        %3093 = vmatpush2.msra.mxu0 0.0
        %3094 = vmatprep.subr.mxu0 0.0
        %3095 = vmatpush2.msra.mxu0 0.0
        %3096 = vmatprep.subr.mxu0 0.0
        %3097 = vmatpush2.msra.mxu0 0.0
        %3098 = vmatprep.subr.mxu0 0.0
        %3099 = vmatpush2.msra.mxu0 0.0
        %3100 = vmatprep.subr.mxu0 0.0
        %3101 = vmatpush2.msra.mxu0 0.0
        %3102 = vmatprep.subr.mxu0 0.0
        %3103 = vmatpush2.msra.mxu0 0.0
        %3104 = vmatprep.subr.mxu0 0.0
        %3105 = vmatpush2.msra.mxu0 0.0
        %3106 = vmatprep.mubr.f32.mxu0 0.0
        %3107 = vmatmul.mubr.f32.gmra.mxu0 %v3031
        %v3108 = vpop.f32.mrf.mxu0
        %v3109 = vadd.f32 %v3027, %v3108
        %v3110 = vpop.f32.mrf.mxu0
        %3111 = vmatprep.mubr.f32.mxu0 0.0
        %3112 = vmatmul.mubr.f32.gmra.mxu0 %v3034
        %v3113 = vpop.f32.mrf.mxu0
        %v3114 = vadd.f32 %v3027, %v3113
        %v3115 = vpop.f32.mrf.mxu0
        %3116 = vmatprep.mubr.f32.mxu0 0.0
        %3117 = vmatmul.mubr.f32.gmra.mxu0 %v3037
        %v3118 = vpop.f32.mrf.mxu0
        %v3119 = vadd.f32 %v3027, %v3118
        %v3120 = vpop.f32.mrf.mxu0
        %3121 = vmatprep.mubr.f32.mxu0 0.0
        %3122 = vmatmul.mubr.f32.gmra.mxu0 %v3040
        %v3123 = vpop.f32.mrf.mxu0
        %v3124 = vadd.f32 %v3027, %v3123
        %v3125 = vpop.f32.mrf.mxu0
        %3126 = vdwg.mxu0
        %v3127 = vadd.f32 %v2796, %v3109
        %v3128 = vadd.f32 %v2797, %v3114
        %v3129 = vadd.f32 %v2798, %v3119
        %v3130 = vadd.f32 %v2799, %v3124
        %3131 = vst.msk [vmem:[#allocation2] sm:$0xff] %vm779, %v3127
        %3132 = vst.msk [vmem:[#allocation2 + $0x8] sm:$0xff] %vm779, %v3128
        %3133 = vst.msk [vmem:[#allocation2 + $0x10] sm:$0xff] %vm779, %v3129
        %3134 = vst.msk [vmem:[#allocation2 + $0x18] sm:$0xff] %vm779, %v3130
        %p3135 = scmp.eq.s32.totalorder %s45, 1
        // Predicated region
        $region93: #{tpu_custom_call.1} parent=79 // pred_check
          %p3136 = pneg %p3135
        $region94: #{tpu_custom_call.1} parent=79 // pred_check_branch
          %3138 = sbr.rel (%p3136) target = $region96
        $region95: #{tpu_custom_call.1} parent=79 // pred_region
          %v3139 = vld [vmem:[%s14] sm:$0x1]
          %v3140 = vld [vmem:[%s15] sm:$0x1]
          %v3141 = vsel %vm779, %v3127, 0.0
          %3142 = vadd.xlane.f32.xlu0 %v3141
          %v3143 = vpop.xlane.xlu0 %3142
          %v3144 = vsel %vm779, %v3128, 0.0
          %3145 = vadd.xlane.f32.xlu0 %v3144
          %v3146 = vpop.xlane.xlu0 %3145
          %v3147 = vsel %vm779, %v3129, 0.0
          %3148 = vadd.xlane.f32.xlu0 %v3147
          %v3149 = vpop.xlane.xlu0 %3148
          %v3150 = vsel %vm779, %v3130, 0.0
          %3151 = vadd.xlane.f32.xlu0 %v3150
          %v3152 = vpop.xlane.xlu0 %3151
          %v3153 = vmul.f32 %v3143, %v792
          %v3154 = vmul.f32 %v3146, %v792
          %v3155 = vmul.f32 %v3149, %v792
          %v3156 = vmul.f32 %v3152, %v792
          %v3157 = vsub.f32 %v3127, %v3153
          %v3158 = vsub.f32 %v3128, %v3154
          %v3159 = vsub.f32 %v3129, %v3155
          %v3160 = vsub.f32 %v3130, %v3156
          %v3161 = vmul.f32 %v3157, %v3157
          %v3162 = vmul.f32 %v3158, %v3158
          %v3163 = vmul.f32 %v3159, %v3159
          %v3164 = vmul.f32 %v3160, %v3160
          %v3165 = vsel %vm779, %v3161, 0.0
          %3166 = vadd.xlane.f32.xlu0 %v3165
          %v3167 = vpop.xlane.xlu0 %3166
          %v3168 = vsel %vm779, %v3162, 0.0
          %3169 = vadd.xlane.f32.xlu0 %v3168
          %v3170 = vpop.xlane.xlu0 %3169
          %v3171 = vsel %vm779, %v3163, 0.0
          %3172 = vadd.xlane.f32.xlu0 %v3171
          %v3173 = vpop.xlane.xlu0 %3172
          %v3174 = vsel %vm779, %v3164, 0.0
          %3175 = vadd.xlane.f32.xlu0 %v3174
          %v3176 = vpop.xlane.xlu0 %3175
          %v3177 = vmul.f32 %v3167, 0.032258064
          %v3178 = vmul.f32 %v3170, 0.032258064
          %v3179 = vmul.f32 %v3173, 0.032258064
          %v3180 = vmul.f32 %v3176, 0.032258064
          %v3181 = vrsqrt.pop %v3177
          %v3182 = vmul.f32 %v3177, %v3181
          %vm3183 = vcmp.eq.f32.partialorder %v3177, inf
          %v3184 = vsel %vm3183, %v3177, %v3182
          %vm3185 = vcmp.eq.f32.partialorder %v3177, 0.0
          %v3186 = vand.u32 %v3177, 2147483648
          %v3187 = vsel %vm3185, %v3186, %v3184
          %v3188 = vrsqrt.pop %v3178
          %v3189 = vmul.f32 %v3178, %v3188
          %vm3190 = vcmp.eq.f32.partialorder %v3178, inf
          %v3191 = vsel %vm3190, %v3178, %v3189
          %vm3192 = vcmp.eq.f32.partialorder %v3178, 0.0
          %v3193 = vand.u32 %v3178, 2147483648
          %v3194 = vsel %vm3192, %v3193, %v3191
          %v3195 = vrsqrt.pop %v3179
          %v3196 = vmul.f32 %v3179, %v3195
          %vm3197 = vcmp.eq.f32.partialorder %v3179, inf
          %v3198 = vsel %vm3197, %v3179, %v3196
          %vm3199 = vcmp.eq.f32.partialorder %v3179, 0.0
          %v3200 = vand.u32 %v3179, 2147483648
          %v3201 = vsel %vm3199, %v3200, %v3198
          %v3202 = vrsqrt.pop %v3180
          %v3203 = vmul.f32 %v3180, %v3202
          %vm3204 = vcmp.eq.f32.partialorder %v3180, inf
          %v3205 = vsel %vm3204, %v3180, %v3203
          %vm3206 = vcmp.eq.f32.partialorder %v3180, 0.0
          %v3207 = vand.u32 %v3180, 2147483648
          %v3208 = vsel %vm3206, %v3207, %v3205
          %v3209 = vadd.f32 %v3187, 1e-06
          %v3210 = vadd.f32 %v3194, 1e-06
          %v3211 = vadd.f32 %v3201, 1e-06
          %v3212 = vadd.f32 %v3208, 1e-06
          %v3213 = vrcp.pop %v3209
          %v3214 = vrcp.pop %v3210
          %v3215 = vrcp.pop %v3211
          %v3216 = vrcp.pop %v3212
          %v3217 = vmul.f32 %v3157, %v3213
          %v3218 = vmul.f32 %v3158, %v3214
          %v3219 = vmul.f32 %v3159, %v3215
          %v3220 = vmul.f32 %v3160, %v3216
          %v3222 = vlaneseq
          %v3223 = vshrl.u32 %v3222, 7
          %v3224 = vsub.s32 0, %v3223
          %v3225 = vrot.slane %v3139, %v3224
          %v3227 = vmul.f32 %v3225, %v3217
          %v3228 = vmul.f32 %v3225, %v3218
          %v3229 = vmul.f32 %v3225, %v3219
          %v3230 = vmul.f32 %v3225, %v3220
          %v3232 = vlaneseq
          %v3233 = vshrl.u32 %v3232, 7
          %v3234 = vsub.s32 0, %v3233
          %v3235 = vrot.slane %v3140, %v3234
          %v3237 = vadd.f32 %v3227, %v3235
          %v3238 = vadd.f32 %v3228, %v3235
          %v3239 = vadd.f32 %v3229, %v3235
          %v3240 = vadd.f32 %v3230, %v3235
          %3241 = vst.msk [vmem:[%s703] sm:$0xff] %vm779, %v3237
          %3242 = vst.msk [vmem:[%s703 + $0x8] sm:$0xff] %vm779, %v3238
          %3243 = vst.msk [vmem:[%s703 + $0x10] sm:$0xff] %vm779, %v3239
          %3244 = vst.msk [vmem:[%s703 + $0x18] sm:$0xff] %vm779, %v3240
        $region96: #{tpu_custom_call.1} parent=79 // pred_fallthru
          _
        %s3245 = sand.u32 %s440, 1
        %s3246 = scalar_lea.sflag [#allocation7], %s3245
        %s3247 = sand.u32 %s440, 1
        %s3248 = smul.addr %s3247, 32
        %s3249 = scalar_lea.vmem [#allocation10], %s3248
        // Predicated region
        $region97: #{tpu_custom_call.1} parent=79 // pred_check
          %p3250 = pneg %p450
        $region98: #{tpu_custom_call.1} parent=79 // pred_check_branch
          %3252 = sbr.rel (%p3250) target = $region100
        $region99: #{tpu_custom_call.1} parent=79 // pred_region
          %s3253 = smul.u32 2, %s44
          %s3255 = ssub.s32 512, 512
          %3256 = vsyncadd %s3246, %s3255
          %s3257 = smul.addr %s3253, 2
          %s3258 = smul.addr %s3257, 128
          %s3259 = scalar_lea.hbm %s16, %s3258
          %s3260 = sshll.u32 %s3249, 4
          %s3261 = int_to_ptr.vmem [resolvable:$true] %s3260
          %3266 = dma.vmem_to_hbm [thread:$0]  %s3261, 512, %s3259, %s3246, 128, 128, 8
        $region100: #{tpu_custom_call.1} parent=79 // pred_fallthru
          _
      $region80: #{tpu_custom_call.1} parent=5 // pred_fallthru
        _
      %p3267 = scmp.le.s32.totalorder 2, %s35
      // Predicated region
      $region101: #{tpu_custom_call.1} parent=5 // pred_check
        %p3268 = pneg %p3267
      $region102: #{tpu_custom_call.1} parent=5 // pred_check_branch
        %3270 = sbr.rel (%p3268) target = $region104
      $region103: #{tpu_custom_call.1} parent=5 // pred_region
        %s3271 = ssub.s32 %s35, 2
        // Predicated region
        $region105: #{tpu_custom_call.1} parent=103 // pred_check
          %p3272 = pneg %p456
        $region106: #{tpu_custom_call.1} parent=103 // pred_check_branch
          %3274 = sbr.rel (%p3272) target = $region108
        $region107: #{tpu_custom_call.1} parent=103 // pred_region
          %s3275 = sand.u32 %s441, 1
          %s3276 = scalar_lea.sflag [#allocation7], %s3275
          %s3277 = sand.u32 %s441, 1
          %s3278 = smul.addr %s3277, 32
          %s3279 = scalar_lea.vmem [#allocation10], %s3278
          %3280 = dma.done %s3276, 512
        $region108: #{tpu_custom_call.1} parent=103 // pred_fallthru
          _
      $region104: #{tpu_custom_call.1} parent=5 // pred_fallthru
        _
    $region6: #{tpu_custom_call.1} parent=1 // loop_footer
      %s39 = sadd.s32 1, %s35
    $region7: #{tpu_custom_call.1} parent=1 // loop_footer_branch
      %34 = sbr.rel target = $region3
    $region8: #{tpu_custom_call.1} parent=1 // loop_exit
      _
    %3281 = vsyncpa [#allocation6], 1
    %s3282 = scalar_lea.sflag [#allocation6], 1
    %3283 = vsyncpa %s3282, 1
    %3284 = vsyncpa [#allocation9], 1
    %s3285 = scalar_lea.sflag [#allocation9], 1
    %3286 = vsyncpa %s3285, 1
    %3287 = vsyncpa [#allocation7], 1
    %s3288 = scalar_lea.sflag [#allocation7], 1
    %3289 = vsyncpa %s3288, 1

</llo_original>
